<compile_context>
chip_gen: v7x
topology: tpu7x:2x2x1
jax: 0.10.0
libtpu: 0.0.40
codegen_flags: <defaults>
</compile_context>

<pallas_src>
import functools

import jax
import jax.numpy as jnp
from jax.experimental import pallas as pl
from jax.experimental.pallas import tpu as pltpu


def _choose_block(n):
    """Batch-block size: amortize per-grid-step overhead, but keep the grid
    length >= 2 so both TensorCores are used on v7x."""
    for b in (4, 2, 1):
        if n % b == 0 and n // b >= 2:
            return b
    return 1


# ---------------------------------------------------------------------------
# Kernel 1: conv (single K = KH*KW*C contraction) + bias + ReLU + 2x2 max-pool
# ---------------------------------------------------------------------------
def _conv_pool_kernel(x_ref, w_ref, b_ref, o_ref, *, ow, pool):
    """x_ref: (B*R, Kp) bf16 im2col rows (dense row p = i*ow + j per sample),
    w_ref: (Kp, OCp) bf16, b_ref: (1, OCp) f32, o_ref: (B*R, OCp) bf16."""
    acc = jnp.dot(x_ref[...], w_ref[...], preferred_element_type=jnp.float32)
    acc = jnp.maximum(acc + b_ref[...], 0.0)            # bias + ReLU (f32)
    if pool:
        # 2x2/stride-2 max-pool via XLU rolls (separable: +1 then +ow).
        # Valid pooled values land on rows p = 2a*ow + 2b; the wrapper
        # subsamples those.  For valid rows, p + ow + 1 <= R - 1, so reads
        # never cross a sample boundary; the circular wrap only corrupts
        # rows that are discarded.
        n_rows = acc.shape[0]
        acc = jnp.maximum(acc, pltpu.roll(acc, n_rows - 1, axis=0))
        acc = jnp.maximum(acc, pltpu.roll(acc, n_rows - ow, axis=0))
    o_ref[...] = acc.astype(o_ref.dtype)


def conv_pool_layer(x_fold, w, b, *, ow, pool, block_b):
    """x_fold: (N, R, Kp) bf16; w: (Kp, OCp) bf16; b: (1, OCp) f32."""
    n, r, kp = x_fold.shape
    ocp = w.shape[1]
    nb = n // block_b
    xb = x_fold.reshape(nb, block_b * r, kp)             # B samples stacked on M
    out = pl.pallas_call(
        functools.partial(_conv_pool_kernel, ow=ow, pool=pool),
        grid=(nb,),
        in_specs=[
            pl.BlockSpec((None, block_b * r, kp), lambda i: (i, 0, 0)),
            pl.BlockSpec((kp, ocp), lambda i: (0, 0)),
            pl.BlockSpec((1, ocp), lambda i: (0, 0)),
        ],
        out_specs=pl.BlockSpec((None, block_b * r, ocp), lambda i: (i, 0, 0)),
        out_shape=jax.ShapeDtypeStruct((nb, block_b * r, ocp), jnp.bfloat16),
        compiler_params=pltpu.CompilerParams(
            dimension_semantics=("parallel",),
            vmem_limit_bytes=32 * 1024 * 1024),
    )(xb, w, b)
    return out.reshape(n, r, ocp)


# ---------------------------------------------------------------------------
# Kernel 2: conv3 + bias + ReLU + fc1 + ReLU + fc2 fused
# ---------------------------------------------------------------------------
def _conv3_fc_kernel(x_ref, w3_ref, b3_ref, w1_ref, b1_ref, w2_ref, b2_ref,
                     o_ref, *, bb):
    """x_ref: (16*bb, Kp3) bf16, rows position-major (row = p*bb + b)."""
    # conv3: one dot over K = 25*64 (zero-padded), then bias + ReLU.
    a3 = jnp.dot(x_ref[...], w3_ref[...], preferred_element_type=jnp.float32)
    a3 = jnp.maximum(a3 + b3_ref[...], 0.0).astype(jnp.bfloat16)   # (16*bb, 64)
    # fc1: contract the 16 spatial positions with position-pre-permuted weights.
    h = jnp.zeros((bb, w1_ref.shape[2]), jnp.float32)
    for p in range(16):
        h = h + jnp.dot(a3[p * bb:(p + 1) * bb, :], w1_ref[p],
                        preferred_element_type=jnp.float32)
    h = jnp.maximum(h + b1_ref[...], 0.0).astype(jnp.bfloat16)
    # fc2 (output zero-padded to 128 lanes; wrapper slices [:, :43]).
    o_ref[...] = (jnp.dot(h, w2_ref[...], preferred_element_type=jnp.float32)
                  + b2_ref[...])


def conv3_fc_layer(x_fold, w3, b3, w1, b1, w2, b2, *, block_b):
    """x_fold: (N, 16, Kp3) bf16.  Returns (N, 128) f32 padded logits."""
    n, npos, kp = x_fold.shape
    bb = block_b
    nb = n // bb
    ocp = w2.shape[1]
    # Position-major rows within each batch block (row = p*bb + b) so the fc1
    # loop uses contiguous static slices.
    xb = (x_fold.reshape(nb, bb, npos, kp)
                .transpose(0, 2, 1, 3)
                .reshape(nb, npos * bb, kp))
    out = pl.pallas_call(
        functools.partial(_conv3_fc_kernel, bb=bb),
        grid=(nb,),
        in_specs=[
            pl.BlockSpec((None, npos * bb, kp), lambda i: (i, 0, 0)),
            pl.BlockSpec(w3.shape, lambda i: (0, 0)),
            pl.BlockSpec(b3.shape, lambda i: (0, 0)),
            pl.BlockSpec(w1.shape, lambda i: (0, 0, 0)),
            pl.BlockSpec(b1.shape, lambda i: (0, 0)),
            pl.BlockSpec(w2.shape, lambda i: (0, 0)),
            pl.BlockSpec(b2.shape, lambda i: (0, 0)),
        ],
        out_specs=pl.BlockSpec((None, bb, ocp), lambda i: (i, 0, 0)),
        out_shape=jax.ShapeDtypeStruct((nb, bb, ocp), jnp.float32),
        compiler_params=pltpu.CompilerParams(
            dimension_semantics=("parallel",),
            vmem_limit_bytes=32 * 1024 * 1024),
    )(xb, w3, b3, w1, b1, w2, b2)
    return out.reshape(n, ocp)


# ---------------------------------------------------------------------------
# Wrapper-side layout prep (tiny tensors, pure XLA glue)
# ---------------------------------------------------------------------------
def _im2col_5x5(a_nhwc, k_pad):
    """5x5 / stride-1 / pad-1 patches: (N,H,W,C) -> (N,(H-2)*(W-2), k_pad)."""
    n, h, w, c = a_nhwc.shape
    oh, ow = h - 2, w - 2
    ap = jnp.pad(a_nhwc, ((0, 0), (1, 1), (1, 1), (0, 0)))
    cols = [ap[:, di:di + oh, dj:dj + ow, :]
            for di in range(5) for dj in range(5)]
    x = jnp.concatenate(cols, axis=-1).reshape(n, oh * ow, 25 * c)
    if k_pad > 25 * c:
        x = jnp.pad(x, ((0, 0), (0, 0), (0, k_pad - 25 * c)))
    return x


# ---------------------------------------------------------------------------
# Full forward pass (matches PyTorch CNN.forward, eval-mode dropout)
# ---------------------------------------------------------------------------
def cnn_forward(x, pp):
    x = x.reshape(-1, 3, 30, 30)                          # view(-1, 3, 30, 30)
    a = jnp.transpose(x, (0, 2, 3, 1)).astype(jnp.bfloat16)   # NHWC
    n = a.shape[0]
    bb = _choose_block(n)

    # conv1 + ReLU + pool1
    # TODO(synk): F.dropout(p=0.25) (training-mode in the reference) treated as
    # identity (inference semantics) for deterministic output.
    xf = _im2col_5x5(a, 128)                              # (N, 784, 128)
    o = conv_pool_layer(xf, pp["w1"], pp["b1"], ow=28, pool=True, block_b=bb)
    a = o.reshape(n, 28, 28, -1)[:, 0::2, 0::2, :32]      # (N, 14, 14, 32)

    # conv2 + ReLU + pool2 (+ identity dropout)
    xf = _im2col_5x5(a, 896)                              # (N, 144, 896)
    o = conv_pool_layer(xf, pp["w2"], pp["b2"], ow=12, pool=True, block_b=bb)
    a = o.reshape(n, 12, 12, -1)[:, 0::2, 0::2, :64]      # (N, 6, 6, 64)

    # conv3 + ReLU + fc1 + ReLU + fc2 (fused in one kernel)
    xf = _im2col_5x5(a, 1664)                             # (N, 16, 1664)
    logits = conv3_fc_layer(xf, pp["w3"], pp["b3"], pp["w_fc1p"], pp["b_fc1"],
                            pp["w_fc2p"], pp["b_fc2"], block_b=bb)
    return logits[:, :43]


# ---------------------------------------------------------------------------
# Parameter init (PyTorch layouts) and one-time packing into kernel layouts
# ---------------------------------------------------------------------------
def init_params(key):
    ks = jax.random.split(key, 10)

    def u(k, shape, fan_in):
        bound = 1.0 / jnp.sqrt(fan_in)
        return jax.random.uniform(k, shape, jnp.float32, -bound, bound)

    return {
        "w1": u(ks[0], (32, 3, 5, 5), 3 * 5 * 5),
        "b1": u(ks[1], (32,), 3 * 5 * 5),
        "w2": u(ks[2], (64, 32, 5, 5), 32 * 5 * 5),
        "b2": u(ks[3], (64,), 32 * 5 * 5),
        "w3": u(ks[4], (64, 64, 5, 5), 64 * 5 * 5),
        "b3": u(ks[5], (64,), 64 * 5 * 5),
        "w_fc1": u(ks[6], (64, 4 * 4 * 64), 4 * 4 * 64),
        "b_fc1": u(ks[7], (64,), 4 * 4 * 64),
        "w_fc2": u(ks[8], (43, 64), 64),
        "b_fc2": u(ks[9], (43,), 64),
    }


def pack_params(p):
    """One-time re-layout of the PyTorch parameters for the kernels."""
    bf16, f32 = jnp.bfloat16, jnp.float32

    def pack_conv(w, b, k_pad, oc_pad):
        # (OC, C, KH, KW) -> (KH*KW*C, OC), K zero-padded to a 128 multiple,
        # OC zero-padded for lane-dense stores.
        oc, c, kh, kw = w.shape
        wp = jnp.transpose(w, (2, 3, 1, 0)).reshape(kh * kw * c, oc)
        wp = jnp.pad(wp, ((0, k_pad - kh * kw * c), (0, oc_pad - oc)))
        bp = jnp.pad(b, (0, oc_pad - oc)).reshape(1, oc_pad)
        return wp.astype(bf16), bp.astype(f32)

    w1, b1 = pack_conv(p["w1"], p["b1"], 128, 128)
    w2, b2 = pack_conv(p["w2"], p["b2"], 896, 128)
    w3, b3 = pack_conv(p["w3"], p["b3"], 1664, 64)

    # fc1: PyTorch flattens conv3 NCHW -> feature f = c*16 + p (p = oh*4 + ow).
    # The fused kernel consumes conv3's output position-major; pre-permute the
    # weights to (p, c, out) so fc1 is 16 tiny per-position matmuls.
    w_fc1p = jnp.transpose(p["w_fc1"].reshape(64, 64, 16), (2, 1, 0))  # (16,64,64)

    # fc2: transpose and zero-pad the 43 logits out to 128 lanes.
    w_fc2p = jnp.pad(jnp.transpose(p["w_fc2"]), ((0, 0), (0, 128 - 43)))
    b_fc2p = jnp.pad(p["b_fc2"], (0, 128 - 43)).reshape(1, 128)

    return {
        "w1": w1, "b1": b1,
        "w2": w2, "b2": b2,
        "w3": w3, "b3": b3,
        "w_fc1p": w_fc1p.astype(bf16),
        "b_fc1": p["b_fc1"].reshape(1, 64).astype(f32),
        "w_fc2p": w_fc2p.astype(bf16),
        "b_fc2": b_fc2p.astype(f32),
    }


if __name__ == "__main__":
    key = jax.random.PRNGKey(0)
    pkey, xkey = jax.random.split(key)
    params = pack_params(init_params(pkey))              # packed once, not per call
    x = jax.random.normal(xkey, (2, 3, 30, 30), dtype=jnp.float32)

    out = jax.jit(cnn_forward)(x, params)
    out = jax.block_until_ready(out)

    assert out.shape == (2, 43), out.shape
    assert bool(jnp.all(jnp.isfinite(out)))
    print("KERNEL_OK")
</pallas_src>

<mosaic_0001>
module attributes {stable_mosaic.version = 11 : i64} {
  func.func @_conv_pool_kernel(%arg0: i32, %arg1: memref<1x784x128xbf16, #tpu.memory_space<vmem>>, %arg2: memref<128x128xbf16, #tpu.memory_space<vmem>>, %arg3: memref<1x128xf32, #tpu.memory_space<vmem>>, %arg4: memref<1x784x128xbf16, #tpu.memory_space<vmem>>) attributes {dimension_semantics = [#tpu.dimension_semantics<parallel>], iteration_bounds = array<i64: 2>, scalar_prefetch = 0 : i64, scratch_operands = 0 : i64, tpu.core_type = #tpu.core_type<tc>, window_params = [{transform_indices = @transform_0, window_bounds = array<i64: 1, 784, 128>}, {pipeline_mode = #tpu.pipeline_mode<synchronous>, transform_indices = @transform_1, window_bounds = array<i64: 128, 128>}, {pipeline_mode = #tpu.pipeline_mode<synchronous>, transform_indices = @transform_2, window_bounds = array<i64: 1, 128>}, {transform_indices = @transform_3, window_bounds = array<i64: 1, 784, 128>}]} {
    %c0 = arith.constant 0 : index
    %c0_0 = arith.constant 0 : index
    %c0_1 = arith.constant 0 : index
    %0 = vector.load %arg1[%c0, %c0_0, %c0_1] : memref<1x784x128xbf16, #tpu.memory_space<vmem>>, vector<1x784x128xbf16>
    %1 = vector.shape_cast %0 : vector<1x784x128xbf16> to vector<784x128xbf16>
    %c0_2 = arith.constant 0 : index
    %c0_3 = arith.constant 0 : index
    %2 = vector.load %arg2[%c0_2, %c0_3] : memref<128x128xbf16, #tpu.memory_space<vmem>>, vector<128x128xbf16>
    %cst = arith.constant dense<0.000000e+00> : vector<784x128xf32>
    %3 = tpu.matmul %1, %2, %cst {dimension_numbers = #tpu.dot_dimension_numbers<[1], [0], [0], [1], [0, 0, 1, 1], [], []>} : vector<784x128xbf16>, vector<128x128xbf16>, vector<784x128xf32> -> vector<784x128xf32>
    %c0_4 = arith.constant 0 : index
    %c0_5 = arith.constant 0 : index
    %4 = vector.load %arg3[%c0_4, %c0_5] : memref<1x128xf32, #tpu.memory_space<vmem>>, vector<1x128xf32>
    %5 = vector.broadcast %4 : vector<1x128xf32> to vector<784x128xf32>
    %6 = arith.addf %3, %5 : vector<784x128xf32>
    %cst_6 = arith.constant 0.000000e+00 : f32
    %7 = vector.broadcast %cst_6 : f32 to vector<784x128xf32>
    %8 = arith.maximumf %6, %7 : vector<784x128xf32>
    %c783_i32 = arith.constant 783 : i32
    %9 = tpu.dynamic_rotate %8 by %c783_i32 dim 0 : vector<784x128xf32>, i32 -> vector<784x128xf32>
    %10 = arith.maximumf %8, %9 : vector<784x128xf32>
    %c756_i32 = arith.constant 756 : i32
    %11 = tpu.dynamic_rotate %10 by %c756_i32 dim 0 : vector<784x128xf32>, i32 -> vector<784x128xf32>
    %12 = arith.maximumf %10, %11 : vector<784x128xf32>
    %13 = arith.truncf %12 : vector<784x128xf32> to vector<784x128xbf16>
    %c0_7 = arith.constant 0 : index
    %c0_8 = arith.constant 0 : index
    %c0_9 = arith.constant 0 : index
    %14 = vector.load %arg4[%c0_7, %c0_8, %c0_9] : memref<1x784x128xbf16, #tpu.memory_space<vmem>>, vector<1x784x128xbf16>
    %15 = vector.shape_cast %14 : vector<1x784x128xbf16> to vector<784x128xbf16>
    %16 = vector.shape_cast %13 : vector<784x128xbf16> to vector<1x784x128xbf16>
    tpu.vector_store %arg4[%c0_7, %c0_8, %c0_9], %16 {strides = array<i32>} : memref<1x784x128xbf16, #tpu.memory_space<vmem>>, vector<1x784x128xbf16>,
    return
  }
  func.func @transform_0(%arg0: i32) -> (i32, i32, i32) {
    %c0_i32 = arith.constant 0 : i32
    %c0_i32_0 = arith.constant 0 : i32
    %c0_i32_1 = arith.constant 0 : i32
    return %arg0, %c0_i32, %c0_i32_0 : i32, i32, i32
  }
  func.func @transform_1(%arg0: i32) -> (i32, i32) {
    %c0_i32 = arith.constant 0 : i32
    %c0_i32_0 = arith.constant 0 : i32
    %c0_i32_1 = arith.constant 0 : i32
    return %c0_i32, %c0_i32_0 : i32, i32
  }
  func.func @transform_2(%arg0: i32) -> (i32, i32) {
    %c0_i32 = arith.constant 0 : i32
    %c0_i32_0 = arith.constant 0 : i32
    %c0_i32_1 = arith.constant 0 : i32
    return %c0_i32, %c0_i32_0 : i32, i32
  }
  func.func @transform_3(%arg0: i32) -> (i32, i32, i32) {
    %c0_i32 = arith.constant 0 : i32
    %c0_i32_0 = arith.constant 0 : i32
    %c0_i32_1 = arith.constant 0 : i32
    return %arg0, %c0_i32, %c0_i32_0 : i32, i32, i32
  }
}

module attributes {stable_mosaic.version = 11 : i64} {
  func.func @_conv_pool_kernel(%arg0: i32, %arg1: memref<1x144x896xbf16, #tpu.memory_space<vmem>>, %arg2: memref<896x128xbf16, #tpu.memory_space<vmem>>, %arg3: memref<1x128xf32, #tpu.memory_space<vmem>>, %arg4: memref<1x144x128xbf16, #tpu.memory_space<vmem>>) attributes {dimension_semantics = [#tpu.dimension_semantics<parallel>], iteration_bounds = array<i64: 2>, scalar_prefetch = 0 : i64, scratch_operands = 0 : i64, tpu.core_type = #tpu.core_type<tc>, window_params = [{transform_indices = @transform_0, window_bounds = array<i64: 1, 144, 896>}, {pipeline_mode = #tpu.pipeline_mode<synchronous>, transform_indices = @transform_1, window_bounds = array<i64: 896, 128>}, {pipeline_mode = #tpu.pipeline_mode<synchronous>, transform_indices = @transform_2, window_bounds = array<i64: 1, 128>}, {transform_indices = @transform_3, window_bounds = array<i64: 1, 144, 128>}]} {
    %c0 = arith.constant 0 : index
    %c0_0 = arith.constant 0 : index
    %c0_1 = arith.constant 0 : index
    %0 = vector.load %arg1[%c0, %c0_0, %c0_1] : memref<1x144x896xbf16, #tpu.memory_space<vmem>>, vector<1x144x896xbf16>
    %1 = vector.shape_cast %0 : vector<1x144x896xbf16> to vector<144x896xbf16>
    %c0_2 = arith.constant 0 : index
    %c0_3 = arith.constant 0 : index
    %2 = vector.load %arg2[%c0_2, %c0_3] : memref<896x128xbf16, #tpu.memory_space<vmem>>, vector<896x128xbf16>
    %cst = arith.constant dense<0.000000e+00> : vector<144x128xf32>
    %3 = tpu.matmul %1, %2, %cst {dimension_numbers = #tpu.dot_dimension_numbers<[1], [0], [0], [1], [0, 0, 1, 1], [], []>} : vector<144x896xbf16>, vector<896x128xbf16>, vector<144x128xf32> -> vector<144x128xf32>
    %c0_4 = arith.constant 0 : index
    %c0_5 = arith.constant 0 : index
    %4 = vector.load %arg3[%c0_4, %c0_5] : memref<1x128xf32, #tpu.memory_space<vmem>>, vector<1x128xf32>
    %5 = vector.broadcast %4 : vector<1x128xf32> to vector<144x128xf32>
    %6 = arith.addf %3, %5 : vector<144x128xf32>
    %cst_6 = arith.constant 0.000000e+00 : f32
    %7 = vector.broadcast %cst_6 : f32 to vector<144x128xf32>
    %8 = arith.maximumf %6, %7 : vector<144x128xf32>
    %c143_i32 = arith.constant 143 : i32
    %9 = tpu.dynamic_rotate %8 by %c143_i32 dim 0 : vector<144x128xf32>, i32 -> vector<144x128xf32>
    %10 = arith.maximumf %8, %9 : vector<144x128xf32>
    %c132_i32 = arith.constant 132 : i32
    %11 = tpu.dynamic_rotate %10 by %c132_i32 dim 0 : vector<144x128xf32>, i32 -> vector<144x128xf32>
    %12 = arith.maximumf %10, %11 : vector<144x128xf32>
    %13 = arith.truncf %12 : vector<144x128xf32> to vector<144x128xbf16>
    %c0_7 = arith.constant 0 : index
    %c0_8 = arith.constant 0 : index
    %c0_9 = arith.constant 0 : index
    %14 = vector.load %arg4[%c0_7, %c0_8, %c0_9] : memref<1x144x128xbf16, #tpu.memory_space<vmem>>, vector<1x144x128xbf16>
    %15 = vector.shape_cast %14 : vector<1x144x128xbf16> to vector<144x128xbf16>
    %16 = vector.shape_cast %13 : vector<144x128xbf16> to vector<1x144x128xbf16>
    tpu.vector_store %arg4[%c0_7, %c0_8, %c0_9], %16 {strides = array<i32>} : memref<1x144x128xbf16, #tpu.memory_space<vmem>>, vector<1x144x128xbf16>,
    return
  }
  func.func @transform_0(%arg0: i32) -> (i32, i32, i32) {
    %c0_i32 = arith.constant 0 : i32
    %c0_i32_0 = arith.constant 0 : i32
    %c0_i32_1 = arith.constant 0 : i32
    return %arg0, %c0_i32, %c0_i32_0 : i32, i32, i32
  }
  func.func @transform_1(%arg0: i32) -> (i32, i32) {
    %c0_i32 = arith.constant 0 : i32
    %c0_i32_0 = arith.constant 0 : i32
    %c0_i32_1 = arith.constant 0 : i32
    return %c0_i32, %c0_i32_0 : i32, i32
  }
  func.func @transform_2(%arg0: i32) -> (i32, i32) {
    %c0_i32 = arith.constant 0 : i32
    %c0_i32_0 = arith.constant 0 : i32
    %c0_i32_1 = arith.constant 0 : i32
    return %c0_i32, %c0_i32_0 : i32, i32
  }
  func.func @transform_3(%arg0: i32) -> (i32, i32, i32) {
    %c0_i32 = arith.constant 0 : i32
    %c0_i32_0 = arith.constant 0 : i32
    %c0_i32_1 = arith.constant 0 : i32
    return %arg0, %c0_i32, %c0_i32_0 : i32, i32, i32
  }
}

module attributes {stable_mosaic.version = 11 : i64} {
  func.func @_conv3_fc_kernel(%arg0: i32, %arg1: memref<1x16x1664xbf16, #tpu.memory_space<vmem>>, %arg2: memref<1664x64xbf16, #tpu.memory_space<vmem>>, %arg3: memref<1x64xf32, #tpu.memory_space<vmem>>, %arg4: memref<16x64x64xbf16, #tpu.memory_space<vmem>>, %arg5: memref<1x64xf32, #tpu.memory_space<vmem>>, %arg6: memref<64x128xbf16, #tpu.memory_space<vmem>>, %arg7: memref<1x128xf32, #tpu.memory_space<vmem>>, %arg8: memref<1x1x128xf32, #tpu.memory_space<vmem>>) attributes {dimension_semantics = [#tpu.dimension_semantics<parallel>], iteration_bounds = array<i64: 2>, scalar_prefetch = 0 : i64, scratch_operands = 0 : i64, tpu.core_type = #tpu.core_type<tc>, window_params = [{transform_indices = @transform_0, window_bounds = array<i64: 1, 16, 1664>}, {pipeline_mode = #tpu.pipeline_mode<synchronous>, transform_indices = @transform_1, window_bounds = array<i64: 1664, 64>}, {pipeline_mode = #tpu.pipeline_mode<synchronous>, transform_indices = @transform_2, window_bounds = array<i64: 1, 64>}, {pipeline_mode = #tpu.pipeline_mode<synchronous>, transform_indices = @transform_3, window_bounds = array<i64: 16, 64, 64>}, {pipeline_mode = #tpu.pipeline_mode<synchronous>, transform_indices = @transform_4, window_bounds = array<i64: 1, 64>}, {pipeline_mode = #tpu.pipeline_mode<synchronous>, transform_indices = @transform_5, window_bounds = array<i64: 64, 128>}, {pipeline_mode = #tpu.pipeline_mode<synchronous>, transform_indices = @transform_6, window_bounds = array<i64: 1, 128>}, {transform_indices = @transform_7, window_bounds = array<i64: 1, 1, 128>}]} {
    %c0 = arith.constant 0 : index
    %c0_0 = arith.constant 0 : index
    %c0_1 = arith.constant 0 : index
    %0 = vector.load %arg1[%c0, %c0_0, %c0_1] : memref<1x16x1664xbf16, #tpu.memory_space<vmem>>, vector<1x16x1664xbf16>
    %1 = vector.shape_cast %0 : vector<1x16x1664xbf16> to vector<16x1664xbf16>
    %c0_2 = arith.constant 0 : index
    %c0_3 = arith.constant 0 : index
    %2 = vector.load %arg2[%c0_2, %c0_3] : memref<1664x64xbf16, #tpu.memory_space<vmem>>, vector<1664x64xbf16>
    %cst = arith.constant dense<0.000000e+00> : vector<16x64xf32>
    %3 = tpu.matmul %1, %2, %cst {dimension_numbers = #tpu.dot_dimension_numbers<[1], [0], [0], [1], [0, 0, 1, 1], [], []>} : vector<16x1664xbf16>, vector<1664x64xbf16>, vector<16x64xf32> -> vector<16x64xf32>
    %c0_4 = arith.constant 0 : index
    %c0_5 = arith.constant 0 : index
    %4 = vector.load %arg3[%c0_4, %c0_5] : memref<1x64xf32, #tpu.memory_space<vmem>>, vector<1x64xf32>
    %5 = vector.broadcast %4 : vector<1x64xf32> to vector<16x64xf32>
    %6 = arith.addf %3, %5 : vector<16x64xf32>
    %cst_6 = arith.constant 0.000000e+00 : f32
    %7 = vector.broadcast %cst_6 : f32 to vector<16x64xf32>
    %8 = arith.maximumf %6, %7 : vector<16x64xf32>
    %9 = arith.truncf %8 : vector<16x64xf32> to vector<16x64xbf16>
    %cst_7 = arith.constant 0.000000e+00 : f32
    %10 = vector.broadcast %cst_7 : f32 to vector<1x64xf32>
    %11 = vector.extract_strided_slice %9 {offsets = [0, 0], sizes = [1, 64], strides = [1, 1]} : vector<16x64xbf16> to vector<1x64xbf16>
    %c0_8 = arith.constant 0 : index
    %c0_9 = arith.constant 0 : index
    %c0_10 = arith.constant 0 : index
    %12 = vector.load %arg4[%c0_8, %c0_9, %c0_10] : memref<16x64x64xbf16, #tpu.memory_space<vmem>>, vector<1x64x64xbf16>
    %13 = vector.shape_cast %12 : vector<1x64x64xbf16> to vector<64x64xbf16>
    %cst_11 = arith.constant dense<0.000000e+00> : vector<1x64xf32>
    %14 = tpu.matmul %11, %13, %cst_11 {dimension_numbers = #tpu.dot_dimension_numbers<[1], [0], [0], [1], [0, 0, 1, 1], [], []>} : vector<1x64xbf16>, vector<64x64xbf16>, vector<1x64xf32> -> vector<1x64xf32>
    %15 = arith.addf %10, %14 : vector<1x64xf32>
    %16 = vector.extract_strided_slice %9 {offsets = [1, 0], sizes = [1, 64], strides = [1, 1]} : vector<16x64xbf16> to vector<1x64xbf16>
    %c1 = arith.constant 1 : index
    %c0_12 = arith.constant 0 : index
    %c0_13 = arith.constant 0 : index
    %17 = vector.load %arg4[%c1, %c0_12, %c0_13] : memref<16x64x64xbf16, #tpu.memory_space<vmem>>, vector<1x64x64xbf16>
    %18 = vector.shape_cast %17 : vector<1x64x64xbf16> to vector<64x64xbf16>
    %cst_14 = arith.constant dense<0.000000e+00> : vector<1x64xf32>
    %19 = tpu.matmul %16, %18, %cst_14 {dimension_numbers = #tpu.dot_dimension_numbers<[1], [0], [0], [1], [0, 0, 1, 1], [], []>} : vector<1x64xbf16>, vector<64x64xbf16>, vector<1x64xf32> -> vector<1x64xf32>
    %20 = arith.addf %15, %19 : vector<1x64xf32>
    %21 = vector.extract_strided_slice %9 {offsets = [2, 0], sizes = [1, 64], strides = [1, 1]} : vector<16x64xbf16> to vector<1x64xbf16>
    %c2 = arith.constant 2 : index
    %c0_15 = arith.constant 0 : index
    %c0_16 = arith.constant 0 : index
    %22 = vector.load %arg4[%c2, %c0_15, %c0_16] : memref<16x64x64xbf16, #tpu.memory_space<vmem>>, vector<1x64x64xbf16>
    %23 = vector.shape_cast %22 : vector<1x64x64xbf16> to vector<64x64xbf16>
    %cst_17 = arith.constant dense<0.000000e+00> : vector<1x64xf32>
    %24 = tpu.matmul %21, %23, %cst_17 {dimension_numbers = #tpu.dot_dimension_numbers<[1], [0], [0], [1], [0, 0, 1, 1], [], []>} : vector<1x64xbf16>, vector<64x64xbf16>, vector<1x64xf32> -> vector<1x64xf32>
    %25 = arith.addf %20, %24 : vector<1x64xf32>
    %26 = vector.extract_strided_slice %9 {offsets = [3, 0], sizes = [1, 64], strides = [1, 1]} : vector<16x64xbf16> to vector<1x64xbf16>
    %c3 = arith.constant 3 : index
    %c0_18 = arith.constant 0 : index
    %c0_19 = arith.constant 0 : index
    %27 = vector.load %arg4[%c3, %c0_18, %c0_19] : memref<16x64x64xbf16, #tpu.memory_space<vmem>>, vector<1x64x64xbf16>
    %28 = vector.shape_cast %27 : vector<1x64x64xbf16> to vector<64x64xbf16>
    %cst_20 = arith.constant dense<0.000000e+00> : vector<1x64xf32>
    %29 = tpu.matmul %26, %28, %cst_20 {dimension_numbers = #tpu.dot_dimension_numbers<[1], [0], [0], [1], [0, 0, 1, 1], [], []>} : vector<1x64xbf16>, vector<64x64xbf16>, vector<1x64xf32> -> vector<1x64xf32>
    %30 = arith.addf %25, %29 : vector<1x64xf32>
    %31 = vector.extract_strided_slice %9 {offsets = [4, 0], sizes = [1, 64], strides = [1, 1]} : vector<16x64xbf16> to vector<1x64xbf16>
    %c4 = arith.constant 4 : index
    %c0_21 = arith.constant 0 : index
    %c0_22 = arith.constant 0 : index
    %32 = vector.load %arg4[%c4, %c0_21, %c0_22] : memref<16x64x64xbf16, #tpu.memory_space<vmem>>, vector<1x64x64xbf16>
    %33 = vector.shape_cast %32 : vector<1x64x64xbf16> to vector<64x64xbf16>
    %cst_23 = arith.constant dense<0.000000e+00> : vector<1x64xf32>
    %34 = tpu.matmul %31, %33, %cst_23 {dimension_numbers = #tpu.dot_dimension_numbers<[1], [0], [0], [1], [0, 0, 1, 1], [], []>} : vector<1x64xbf16>, vector<64x64xbf16>, vector<1x64xf32> -> vector<1x64xf32>
    %35 = arith.addf %30, %34 : vector<1x64xf32>
    %36 = vector.extract_strided_slice %9 {offsets = [5, 0], sizes = [1, 64], strides = [1, 1]} : vector<16x64xbf16> to vector<1x64xbf16>
    %c5 = arith.constant 5 : index
    %c0_24 = arith.constant 0 : index
    %c0_25 = arith.constant 0 : index
    %37 = vector.load %arg4[%c5, %c0_24, %c0_25] : memref<16x64x64xbf16, #tpu.memory_space<vmem>>, vector<1x64x64xbf16>
    %38 = vector.shape_cast %37 : vector<1x64x64xbf16> to vector<64x64xbf16>
    %cst_26 = arith.constant dense<0.000000e+00> : vector<1x64xf32>
    %39 = tpu.matmul %36, %38, %cst_26 {dimension_numbers = #tpu.dot_dimension_numbers<[1], [0], [0], [1], [0, 0, 1, 1], [], []>} : vector<1x64xbf16>, vector<64x64xbf16>, vector<1x64xf32> -> vector<1x64xf32>
    %40 = arith.addf %35, %39 : vector<1x64xf32>
    %41 = vector.extract_strided_slice %9 {offsets = [6, 0], sizes = [1, 64], strides = [1, 1]} : vector<16x64xbf16> to vector<1x64xbf16>
    %c6 = arith.constant 6 : index
    %c0_27 = arith.constant 0 : index
    %c0_28 = arith.constant 0 : index
    %42 = vector.load %arg4[%c6, %c0_27, %c0_28] : memref<16x64x64xbf16, #tpu.memory_space<vmem>>, vector<1x64x64xbf16>
    %43 = vector.shape_cast %42 : vector<1x64x64xbf16> to vector<64x64xbf16>
    %cst_29 = arith.constant dense<0.000000e+00> : vector<1x64xf32>
    %44 = tpu.matmul %41, %43, %cst_29 {dimension_numbers = #tpu.dot_dimension_numbers<[1], [0], [0], [1], [0, 0, 1, 1], [], []>} : vector<1x64xbf16>, vector<64x64xbf16>, vector<1x64xf32> -> vector<1x64xf32>
    %45 = arith.addf %40, %44 : vector<1x64xf32>
    %46 = vector.extract_strided_slice %9 {offsets = [7, 0], sizes = [1, 64], strides = [1, 1]} : vector<16x64xbf16> to vector<1x64xbf16>
    %c7 = arith.constant 7 : index
    %c0_30 = arith.constant 0 : index
    %c0_31 = arith.constant 0 : index
    %47 = vector.load %arg4[%c7, %c0_30, %c0_31] : memref<16x64x64xbf16, #tpu.memory_space<vmem>>, vector<1x64x64xbf16>
    %48 = vector.shape_cast %47 : vector<1x64x64xbf16> to vector<64x64xbf16>
    %cst_32 = arith.constant dense<0.000000e+00> : vector<1x64xf32>
    %49 = tpu.matmul %46, %48, %cst_32 {dimension_numbers = #tpu.dot_dimension_numbers<[1], [0], [0], [1], [0, 0, 1, 1], [], []>} : vector<1x64xbf16>, vector<64x64xbf16>, vector<1x64xf32> -> vector<1x64xf32>
    %50 = arith.addf %45, %49 : vector<1x64xf32>
    %51 = vector.extract_strided_slice %9 {offsets = [8, 0], sizes = [1, 64], strides = [1, 1]} : vector<16x64xbf16> to vector<1x64xbf16>
    %c8 = arith.constant 8 : index
    %c0_33 = arith.constant 0 : index
    %c0_34 = arith.constant 0 : index
    %52 = vector.load %arg4[%c8, %c0_33, %c0_34] : memref<16x64x64xbf16, #tpu.memory_space<vmem>>, vector<1x64x64xbf16>
    %53 = vector.shape_cast %52 : vector<1x64x64xbf16> to vector<64x64xbf16>
    %cst_35 = arith.constant dense<0.000000e+00> : vector<1x64xf32>
    %54 = tpu.matmul %51, %53, %cst_35 {dimension_numbers = #tpu.dot_dimension_numbers<[1], [0], [0], [1], [0, 0, 1, 1], [], []>} : vector<1x64xbf16>, vector<64x64xbf16>, vector<1x64xf32> -> vector<1x64xf32>
    %55 = arith.addf %50, %54 : vector<1x64xf32>
    %56 = vector.extract_strided_slice %9 {offsets = [9, 0], sizes = [1, 64], strides = [1, 1]} : vector<16x64xbf16> to vector<1x64xbf16>
    %c9 = arith.constant 9 : index
    %c0_36 = arith.constant 0 : index
    %c0_37 = arith.constant 0 : index
    %57 = vector.load %arg4[%c9, %c0_36, %c0_37] : memref<16x64x64xbf16, #tpu.memory_space<vmem>>, vector<1x64x64xbf16>
    %58 = vector.shape_cast %57 : vector<1x64x64xbf16> to vector<64x64xbf16>
    %cst_38 = arith.constant dense<0.000000e+00> : vector<1x64xf32>
    %59 = tpu.matmul %56, %58, %cst_38 {dimension_numbers = #tpu.dot_dimension_numbers<[1], [0], [0], [1], [0, 0, 1, 1], [], []>} : vector<1x64xbf16>, vector<64x64xbf16>, vector<1x64xf32> -> vector<1x64xf32>
    %60 = arith.addf %55, %59 : vector<1x64xf32>
    %61 = vector.extract_strided_slice %9 {offsets = [10, 0], sizes = [1, 64], strides = [1, 1]} : vector<16x64xbf16> to vector<1x64xbf16>
    %c10 = arith.constant 10 : index
    %c0_39 = arith.constant 0 : index
    %c0_40 = arith.constant 0 : index
    %62 = vector.load %arg4[%c10, %c0_39, %c0_40] : memref<16x64x64xbf16, #tpu.memory_space<vmem>>, vector<1x64x64xbf16>
    %63 = vector.shape_cast %62 : vector<1x64x64xbf16> to vector<64x64xbf16>
    %cst_41 = arith.constant dense<0.000000e+00> : vector<1x64xf32>
    %64 = tpu.matmul %61, %63, %cst_41 {dimension_numbers = #tpu.dot_dimension_numbers<[1], [0], [0], [1], [0, 0, 1, 1], [], []>} : vector<1x64xbf16>, vector<64x64xbf16>, vector<1x64xf32> -> vector<1x64xf32>
    %65 = arith.addf %60, %64 : vector<1x64xf32>
    %66 = vector.extract_strided_slice %9 {offsets = [11, 0], sizes = [1, 64], strides = [1, 1]} : vector<16x64xbf16> to vector<1x64xbf16>
    %c11 = arith.constant 11 : index
    %c0_42 = arith.constant 0 : index
    %c0_43 = arith.constant 0 : index
    %67 = vector.load %arg4[%c11, %c0_42, %c0_43] : memref<16x64x64xbf16, #tpu.memory_space<vmem>>, vector<1x64x64xbf16>
    %68 = vector.shape_cast %67 : vector<1x64x64xbf16> to vector<64x64xbf16>
    %cst_44 = arith.constant dense<0.000000e+00> : vector<1x64xf32>
    %69 = tpu.matmul %66, %68, %cst_44 {dimension_numbers = #tpu.dot_dimension_numbers<[1], [0], [0], [1], [0, 0, 1, 1], [], []>} : vector<1x64xbf16>, vector<64x64xbf16>, vector<1x64xf32> -> vector<1x64xf32>
    %70 = arith.addf %65, %69 : vector<1x64xf32>
    %71 = vector.extract_strided_slice %9 {offsets = [12, 0], sizes = [1, 64], strides = [1, 1]} : vector<16x64xbf16> to vector<1x64xbf16>
    %c12 = arith.constant 12 : index
    %c0_45 = arith.constant 0 : index
    %c0_46 = arith.constant 0 : index
    %72 = vector.load %arg4[%c12, %c0_45, %c0_46] : memref<16x64x64xbf16, #tpu.memory_space<vmem>>, vector<1x64x64xbf16>
    %73 = vector.shape_cast %72 : vector<1x64x64xbf16> to vector<64x64xbf16>
    %cst_47 = arith.constant dense<0.000000e+00> : vector<1x64xf32>
    %74 = tpu.matmul %71, %73, %cst_47 {dimension_numbers = #tpu.dot_dimension_numbers<[1], [0], [0], [1], [0, 0, 1, 1], [], []>} : vector<1x64xbf16>, vector<64x64xbf16>, vector<1x64xf32> -> vector<1x64xf32>
    %75 = arith.addf %70, %74 : vector<1x64xf32>
    %76 = vector.extract_strided_slice %9 {offsets = [13, 0], sizes = [1, 64], strides = [1, 1]} : vector<16x64xbf16> to vector<1x64xbf16>
    %c13 = arith.constant 13 : index
    %c0_48 = arith.constant 0 : index
    %c0_49 = arith.constant 0 : index
    %77 = vector.load %arg4[%c13, %c0_48, %c0_49] : memref<16x64x64xbf16, #tpu.memory_space<vmem>>, vector<1x64x64xbf16>
    %78 = vector.shape_cast %77 : vector<1x64x64xbf16> to vector<64x64xbf16>
    %cst_50 = arith.constant dense<0.000000e+00> : vector<1x64xf32>
    %79 = tpu.matmul %76, %78, %cst_50 {dimension_numbers = #tpu.dot_dimension_numbers<[1], [0], [0], [1], [0, 0, 1, 1], [], []>} : vector<1x64xbf16>, vector<64x64xbf16>, vector<1x64xf32> -> vector<1x64xf32>
    %80 = arith.addf %75, %79 : vector<1x64xf32>
    %81 = vector.extract_strided_slice %9 {offsets = [14, 0], sizes = [1, 64], strides = [1, 1]} : vector<16x64xbf16> to vector<1x64xbf16>
    %c14 = arith.constant 14 : index
    %c0_51 = arith.constant 0 : index
    %c0_52 = arith.constant 0 : index
    %82 = vector.load %arg4[%c14, %c0_51, %c0_52] : memref<16x64x64xbf16, #tpu.memory_space<vmem>>, vector<1x64x64xbf16>
    %83 = vector.shape_cast %82 : vector<1x64x64xbf16> to vector<64x64xbf16>
    %cst_53 = arith.constant dense<0.000000e+00> : vector<1x64xf32>
    %84 = tpu.matmul %81, %83, %cst_53 {dimension_numbers = #tpu.dot_dimension_numbers<[1], [0], [0], [1], [0, 0, 1, 1], [], []>} : vector<1x64xbf16>, vector<64x64xbf16>, vector<1x64xf32> -> vector<1x64xf32>
    %85 = arith.addf %80, %84 : vector<1x64xf32>
    %86 = vector.extract_strided_slice %9 {offsets = [15, 0], sizes = [1, 64], strides = [1, 1]} : vector<16x64xbf16> to vector<1x64xbf16>
    %c15 = arith.constant 15 : index
    %c0_54 = arith.constant 0 : index
    %c0_55 = arith.constant 0 : index
    %87 = vector.load %arg4[%c15, %c0_54, %c0_55] : memref<16x64x64xbf16, #tpu.memory_space<vmem>>, vector<1x64x64xbf16>
    %88 = vector.shape_cast %87 : vector<1x64x64xbf16> to vector<64x64xbf16>
    %cst_56 = arith.constant dense<0.000000e+00> : vector<1x64xf32>
    %89 = tpu.matmul %86, %88, %cst_56 {dimension_numbers = #tpu.dot_dimension_numbers<[1], [0], [0], [1], [0, 0, 1, 1], [], []>} : vector<1x64xbf16>, vector<64x64xbf16>, vector<1x64xf32> -> vector<1x64xf32>
    %90 = arith.addf %85, %89 : vector<1x64xf32>
    %c0_57 = arith.constant 0 : index
    %c0_58 = arith.constant 0 : index
    %91 = vector.load %arg5[%c0_57, %c0_58] : memref<1x64xf32, #tpu.memory_space<vmem>>, vector<1x64xf32>
    %92 = arith.addf %90, %91 : vector<1x64xf32>
    %cst_59 = arith.constant 0.000000e+00 : f32
    %93 = vector.broadcast %cst_59 : f32 to vector<1x64xf32>
    %94 = arith.maximumf %92, %93 : vector<1x64xf32>
    %95 = arith.truncf %94 : vector<1x64xf32> to vector<1x64xbf16>
    %c0_60 = arith.constant 0 : index
    %c0_61 = arith.constant 0 : index
    %96 = vector.load %arg6[%c0_60, %c0_61] : memref<64x128xbf16, #tpu.memory_space<vmem>>, vector<64x128xbf16>
    %cst_62 = arith.constant dense<0.000000e+00> : vector<1x128xf32>
    %97 = tpu.matmul %95, %96, %cst_62 {dimension_numbers = #tpu.dot_dimension_numbers<[1], [0], [0], [1], [0, 0, 1, 1], [], []>} : vector<1x64xbf16>, vector<64x128xbf16>, vector<1x128xf32> -> vector<1x128xf32>
    %c0_63 = arith.constant 0 : index
    %c0_64 = arith.constant 0 : index
    %98 = vector.load %arg7[%c0_63, %c0_64] : memref<1x128xf32, #tpu.memory_space<vmem>>, vector<1x128xf32>
    %99 = arith.addf %97, %98 : vector<1x128xf32>
    %c0_65 = arith.constant 0 : index
    %c0_66 = arith.constant 0 : index
    %c0_67 = arith.constant 0 : index
    %100 = vector.load %arg8[%c0_65, %c0_66, %c0_67] : memref<1x1x128xf32, #tpu.memory_space<vmem>>, vector<1x1x128xf32>
    %101 = vector.shape_cast %100 : vector<1x1x128xf32> to vector<1x128xf32>
    %102 = vector.shape_cast %99 : vector<1x128xf32> to vector<1x1x128xf32>
    tpu.vector_store %arg8[%c0_65, %c0_66, %c0_67], %102 {strides = array<i32>} : memref<1x1x128xf32, #tpu.memory_space<vmem>>, vector<1x1x128xf32>,
    return
  }
  func.func @transform_0(%arg0: i32) -> (i32, i32, i32) {
    %c0_i32 = arith.constant 0 : i32
    %c0_i32_0 = arith.constant 0 : i32
    %c0_i32_1 = arith.constant 0 : i32
    return %arg0, %c0_i32, %c0_i32_0 : i32, i32, i32
  }
  func.func @transform_1(%arg0: i32) -> (i32, i32) {
    %c0_i32 = arith.constant 0 : i32
    %c0_i32_0 = arith.constant 0 : i32
    %c0_i32_1 = arith.constant 0 : i32
    return %c0_i32, %c0_i32_0 : i32, i32
  }
  func.func @transform_2(%arg0: i32) -> (i32, i32) {
    %c0_i32 = arith.constant 0 : i32
    %c0_i32_0 = arith.constant 0 : i32
    %c0_i32_1 = arith.constant 0 : i32
    return %c0_i32, %c0_i32_0 : i32, i32
  }
  func.func @transform_3(%arg0: i32) -> (i32, i32, i32) {
    %c0_i32 = arith.constant 0 : i32
    %c0_i32_0 = arith.constant 0 : i32
    %c0_i32_1 = arith.constant 0 : i32
    %c0_i32_2 = arith.constant 0 : i32
    return %c0_i32, %c0_i32_0, %c0_i32_1 : i32, i32, i32
  }
  func.func @transform_4(%arg0: i32) -> (i32, i32) {
    %c0_i32 = arith.constant 0 : i32
    %c0_i32_0 = arith.constant 0 : i32
    %c0_i32_1 = arith.constant 0 : i32
    return %c0_i32, %c0_i32_0 : i32, i32
  }
  func.func @transform_5(%arg0: i32) -> (i32, i32) {
    %c0_i32 = arith.constant 0 : i32
    %c0_i32_0 = arith.constant 0 : i32
    %c0_i32_1 = arith.constant 0 : i32
    return %c0_i32, %c0_i32_0 : i32, i32
  }
  func.func @transform_6(%arg0: i32) -> (i32, i32) {
    %c0_i32 = arith.constant 0 : i32
    %c0_i32_0 = arith.constant 0 : i32
    %c0_i32_1 = arith.constant 0 : i32
    return %c0_i32, %c0_i32_0 : i32, i32
  }
  func.func @transform_7(%arg0: i32) -> (i32, i32, i32) {
    %c0_i32 = arith.constant 0 : i32
    %c0_i32_0 = arith.constant 0 : i32
    %c0_i32_1 = arith.constant 0 : i32
    return %arg0, %c0_i32, %c0_i32_0 : i32, i32, i32
  }
}

</mosaic_0001>

<llo_original>
// kernel: cnn_forward.3
$region0: #{cnn_forward.3}
  #allocation0 [shape = 'u32[]', space=smem, size = 0x4, offset = 0x4, fixed_abs, tag = 'smem constant byte address 0x4 - core index']
  #allocation1 [shape = 'u32[144,128]{1,0:T(1,128)}', space=vmem, size = 0x12000, scoped, tag = 'internal scratch']
  %s0 = inlined_call_operand.vmem [shape: bf16[2,784,128], index: 0, kind: input, shape index: {}]
  %s1 = inlined_call_operand.vmem [shape: bf16[128,128], index: 1, kind: input, shape index: {}]
  %s2 = inlined_call_operand.vmem [shape: f32[1,128], index: 2, kind: input, shape index: {}]
  %s3 = inlined_call_operand.vmem [shape: bf16[2,784,128], index: 3, kind: output, shape index: {}]
  %s4 = sld [smem:[#allocation0]]
  $region45: #{cnn_forward.3} parent=0
    _
  %s6 = ssub.s32 1, %s4
  %s7 = scalar_select 0, %s6, %s4
  loop: start=0, step=1, limit=4
  $region2: #{cnn_forward.3} parent=0 // loop_pre_header
    _
  $region3: #{cnn_forward.3} parent=0 // loop_header
    %s9 = sphi 0, %s13
    %p10 = scmp.ge.s32.totalorder %s9, 4
    %s19 = sphi 0, %s21
    %s22 = sphi 0, %s19
    %s23 = sphi 0, %s22
    %s39 = sphi 0, %s23
    %s43 = sphi 0, %s43
    %s45 = sphi 0, %s43
    %s46 = sphi 0, %s45
    %s60 = sphi 0, %s46
    %s64 = sphi 0, %s64
    %s66 = sphi 0, %s64
    %s67 = sphi 0, %s66
    %s81 = sphi 0, %s67
    %s87 = sphi 0, %s89
    %s90 = sphi 0, %s87
    %s91 = sphi 0, %s90
    %s107 = sphi 0, %s91
  $region4: #{cnn_forward.3} parent=0 // loop_header_branch
    %12 = sbr.rel (%p10) target = $region8
  $region5: #{cnn_forward.3} parent=0 // loop_body
    %s14 = ssub.s32 %s9, 1
    %s15 = ssub.s32 %s9, 2
    %s16 = sadd.s32 %s9, 1
    %s17 = ssub.s32 %s9, %s16
    %p18 = scmp.eq.s32.totalorder %s17, 0
    %s20 = sadd.s32 %s19, 1
    %s21 = scalar_select %p18, %s19, %s20
    %p24 = pneg %p18
    %p25 = scmp.eq.s32.totalorder %s9, 1
    %p26 = por %p24, %p25
    %p27 = scmp.ne.s32.totalorder %s19, %s22
    %p28 = scmp.eq.s32.totalorder %s9, 0
    %p29 = por %p27, %p28
    %p30 = scmp.ne.s32.totalorder %s19, %s22
    %p31 = scmp.eq.s32.totalorder %s14, 1
    %p32 = por %p30, %p31
    %p33 = scmp.ne.s32.totalorder %s22, %s23
    %p34 = scmp.eq.s32.totalorder %s14, 0
    %p35 = por %p33, %p34
    %p36 = scmp.ne.s32.totalorder %s22, %s23
    %p37 = scmp.eq.s32.totalorder %s15, 1
    %p38 = por %p36, %p37
    %p40 = scmp.ne.s32.totalorder %s23, %s39
    %p41 = scmp.eq.s32.totalorder %s15, 0
    %p42 = por %p40, %p41
    %s44 = sadd.s32 %s43, 1
    %p47 = scmp.eq.s32.totalorder %s9, 1
    %p48 = scmp.ne.s32.totalorder %s43, %s45
    %p49 = scmp.eq.s32.totalorder %s9, 0
    %p50 = por %p48, %p49
    %p51 = scmp.ne.s32.totalorder %s43, %s45
    %p52 = scmp.eq.s32.totalorder %s14, 1
    %p53 = por %p51, %p52
    %p54 = scmp.ne.s32.totalorder %s45, %s46
    %p55 = scmp.eq.s32.totalorder %s14, 0
    %p56 = por %p54, %p55
    %p57 = scmp.ne.s32.totalorder %s45, %s46
    %p58 = scmp.eq.s32.totalorder %s15, 1
    %p59 = por %p57, %p58
    %p61 = scmp.ne.s32.totalorder %s46, %s60
    %p62 = scmp.eq.s32.totalorder %s15, 0
    %p63 = por %p61, %p62
    %s65 = sadd.s32 %s64, 1
    %p68 = scmp.eq.s32.totalorder %s9, 1
    %p69 = scmp.ne.s32.totalorder %s64, %s66
    %p70 = scmp.eq.s32.totalorder %s9, 0
    %p71 = por %p69, %p70
    %p72 = scmp.ne.s32.totalorder %s64, %s66
    %p73 = scmp.eq.s32.totalorder %s14, 1
    %p74 = por %p72, %p73
    %p75 = scmp.ne.s32.totalorder %s66, %s67
    %p76 = scmp.eq.s32.totalorder %s14, 0
    %p77 = por %p75, %p76
    %p78 = scmp.ne.s32.totalorder %s66, %s67
    %p79 = scmp.eq.s32.totalorder %s15, 1
    %p80 = por %p78, %p79
    %p82 = scmp.ne.s32.totalorder %s67, %s81
    %p83 = scmp.eq.s32.totalorder %s15, 0
    %p84 = por %p82, %p83
    %s85 = ssub.s32 %s9, %s16
    %p86 = scmp.eq.s32.totalorder %s85, 0
    %s88 = sadd.s32 %s87, 1
    %s89 = scalar_select %p86, %s87, %s88
    %p92 = pneg %p86
    %p93 = scmp.eq.s32.totalorder %s9, 1
    %p94 = por %p92, %p93
    %p95 = scmp.ne.s32.totalorder %s87, %s90
    %p96 = scmp.eq.s32.totalorder %s9, 0
    %p97 = por %p95, %p96
    %p98 = scmp.ne.s32.totalorder %s87, %s90
    %p99 = scmp.eq.s32.totalorder %s14, 1
    %p100 = por %p98, %p99
    %p101 = scmp.ne.s32.totalorder %s90, %s91
    %p102 = scmp.eq.s32.totalorder %s14, 0
    %p103 = por %p101, %p102
    %p104 = scmp.ne.s32.totalorder %s90, %s91
    %p105 = scmp.eq.s32.totalorder %s15, 1
    %p106 = por %p104, %p105
    %p108 = scmp.ne.s32.totalorder %s91, %s107
    %p109 = scmp.eq.s32.totalorder %s15, 0
    %p110 = por %p108, %p109
    %p111 = scmp.le.s32.totalorder 1, %s9
    %p112 = scmp.lt.s32.totalorder %s9, 3
    %p113 = pnand %p111, %p112
    %p114 = pneg %p113
    // Predicated region
    $region9: #{cnn_forward.3} parent=5 // pred_check
      _
    $region10: #{cnn_forward.3} parent=5 // pred_check_branch
      %116 = sbr.rel (%p113) target = $region12
    $region11: #{cnn_forward.3} parent=5 // pred_region
      %s117 = ssub.s32 %s9, 1
      // Predicated region
      $region13: #{cnn_forward.3} parent=11 // pred_check
        %p118 = pneg %p56
      $region14: #{cnn_forward.3} parent=11 // pred_check_branch
        %120 = sbr.rel (%p118) target = $region16
      $region15: #{cnn_forward.3} parent=11 // pred_region
        _
      $region16: #{cnn_forward.3} parent=11 // pred_fallthru
        _
      // Predicated region
      $region17: #{cnn_forward.3} parent=11 // pred_check
        %p121 = pneg %p77
      $region18: #{cnn_forward.3} parent=11 // pred_check_branch
        %123 = sbr.rel (%p121) target = $region20
      $region19: #{cnn_forward.3} parent=11 // pred_region
        _
      $region20: #{cnn_forward.3} parent=11 // pred_fallthru
        _
    $region12: #{cnn_forward.3} parent=5 // pred_fallthru
      _
    %p124 = scmp.lt.s32.totalorder %s9, 2
    // Predicated region
    $region21: #{cnn_forward.3} parent=5 // pred_check
      %p125 = pneg %p124
    $region22: #{cnn_forward.3} parent=5 // pred_check_branch
      %127 = sbr.rel (%p125) target = $region24
    $region23: #{cnn_forward.3} parent=5 // pred_region
      // Predicated region
      $region25: #{cnn_forward.3} parent=23 // pred_check
        %p128 = pneg %p29
      $region26: #{cnn_forward.3} parent=23 // pred_check_branch
        %130 = sbr.rel (%p128) target = $region28
      $region27: #{cnn_forward.3} parent=23 // pred_region
        %p131 = scmp.lt.s32.totalorder %s9, 1
        %s132 = scalar_select %p131, %s9, 1
        %s133 = smul.addr %s132, 98
        %s134 = smul.addr %s133, 4
        %s135 = scalar_lea.vmem %s0, %s134
      $region28: #{cnn_forward.3} parent=23 // pred_fallthru
        _
    $region24: #{cnn_forward.3} parent=5 // pred_fallthru
      _
    %p136 = scmp.le.s32.totalorder 1, %s9
    %p137 = scmp.lt.s32.totalorder %s9, 3
    %p138 = pnand %p136, %p137
    %p139 = pneg %p138
    // Predicated region
    $region29: #{cnn_forward.3} parent=5 // pred_check
      _
    $region30: #{cnn_forward.3} parent=5 // pred_check_branch
      %141 = sbr.rel (%p138) target = $region32
    $region31: #{cnn_forward.3} parent=5 // pred_region
      %s142 = ssub.s32 %s9, 1
      %p143 = scmp.lt.s32.totalorder %s14, 1
      %s144 = scalar_select %p143, %s14, 1
      %s145 = smul.addr %s144, 98
      %s146 = smul.addr %s145, 4
      %s147 = scalar_lea.vmem %s0, %s146
      %p148 = pneg %p35
      %p149 = pneg %p32
      %p150 = pneg %p56
      %p151 = pneg %p53
      %p152 = pneg %p77
      %p153 = pneg %p74
      %p154 = pneg %p103
      %p155 = pneg %p100
      %p156 = scmp.lt.s32.totalorder %s14, 1
      %s157 = scalar_select %p156, %s14, 1
      %s158 = smul.addr %s157, 98
      %s159 = smul.addr %s158, 4
      %s160 = scalar_lea.vmem %s3, %s159
      %p161 = scmp.lt.s32.totalorder %s14, 1
      %s162 = scalar_select %p161, %s14, 1
      %s163 = smul.addr %s162, 98
      %s164 = smul.addr %s163, 4
      %s165 = scalar_lea.vmem %s0, %s164
      %p166 = scmp.lt.s32.totalorder %s14, 1
      %s167 = scalar_select %p166, %s14, 1
      %s168 = smul.addr %s167, 98
      %s169 = smul.addr %s168, 4
      %s170 = scalar_lea.vmem %s3, %s169
      %v172 = vld [vmem:[%s165] sm:$0xf]
      %v173 = vld [vmem:[%s165 + $0x4] sm:$0xf]
      %v174 = vld [vmem:[%s165 + $0x8] sm:$0xf]
      %v175 = vld [vmem:[%s165 + $0xc] sm:$0xf]
      %v176 = vld [vmem:[%s165 + $0x10] sm:$0xf]
      %v177 = vld [vmem:[%s165 + $0x14] sm:$0xf]
      %v178 = vld [vmem:[%s165 + $0x18] sm:$0xf]
      %v179 = vld [vmem:[%s165 + $0x1c] sm:$0xf]
      %v180 = vld [vmem:[%s165 + $0x20] sm:$0xf]
      %v181 = vld [vmem:[%s165 + $0x24] sm:$0xf]
      %v182 = vld [vmem:[%s165 + $0x28] sm:$0xf]
      %v183 = vld [vmem:[%s165 + $0x2c] sm:$0xf]
      %v184 = vld [vmem:[%s165 + $0x30] sm:$0xf]
      %v185 = vld [vmem:[%s165 + $0x34] sm:$0xf]
      %v186 = vld [vmem:[%s165 + $0x38] sm:$0xf]
      %v187 = vld [vmem:[%s165 + $0x3c] sm:$0xf]
      %v188 = vld [vmem:[%s165 + $0x40] sm:$0xf]
      %v189 = vld [vmem:[%s165 + $0x44] sm:$0xf]
      %v190 = vld [vmem:[%s165 + $0x48] sm:$0xf]
      %v191 = vld [vmem:[%s165 + $0x4c] sm:$0xf]
      %v192 = vld [vmem:[%s165 + $0x50] sm:$0xf]
      %v193 = vld [vmem:[%s165 + $0x54] sm:$0xf]
      %v194 = vld [vmem:[%s165 + $0x58] sm:$0xf]
      %v195 = vld [vmem:[%s165 + $0x5c] sm:$0xf]
      %v196 = vld [vmem:[%s165 + $0x60] sm:$0xf]
      %v197 = vld [vmem:[%s165 + $0x64] sm:$0xf]
      %v198 = vld [vmem:[%s165 + $0x68] sm:$0xf]
      %v199 = vld [vmem:[%s165 + $0x6c] sm:$0xf]
      %v200 = vld [vmem:[%s165 + $0x70] sm:$0xf]
      %v201 = vld [vmem:[%s165 + $0x74] sm:$0xf]
      %v202 = vld [vmem:[%s165 + $0x78] sm:$0xf]
      %v203 = vld [vmem:[%s165 + $0x7c] sm:$0xf]
      %v204 = vld [vmem:[%s165 + $0x80] sm:$0xf]
      %v205 = vld [vmem:[%s165 + $0x84] sm:$0xf]
      %v206 = vld [vmem:[%s165 + $0x88] sm:$0xf]
      %v207 = vld [vmem:[%s165 + $0x8c] sm:$0xf]
      %v208 = vld [vmem:[%s165 + $0x90] sm:$0xf]
      %v209 = vld [vmem:[%s165 + $0x94] sm:$0xf]
      %v210 = vld [vmem:[%s165 + $0x98] sm:$0xf]
      %v211 = vld [vmem:[%s165 + $0x9c] sm:$0xf]
      %v212 = vld [vmem:[%s165 + $0xa0] sm:$0xf]
      %v213 = vld [vmem:[%s165 + $0xa4] sm:$0xf]
      %v214 = vld [vmem:[%s165 + $0xa8] sm:$0xf]
      %v215 = vld [vmem:[%s165 + $0xac] sm:$0xf]
      %v216 = vld [vmem:[%s165 + $0xb0] sm:$0xf]
      %v217 = vld [vmem:[%s165 + $0xb4] sm:$0xf]
      %v218 = vld [vmem:[%s165 + $0xb8] sm:$0xf]
      %v219 = vld [vmem:[%s165 + $0xbc] sm:$0xf]
      %v220 = vld [vmem:[%s165 + $0xc0] sm:$0xf]
      %v221 = vld [vmem:[%s165 + $0xc4] sm:$0xf]
      %v222 = vld [vmem:[%s165 + $0xc8] sm:$0xf]
      %v223 = vld [vmem:[%s165 + $0xcc] sm:$0xf]
      %v224 = vld [vmem:[%s165 + $0xd0] sm:$0xf]
      %v225 = vld [vmem:[%s165 + $0xd4] sm:$0xf]
      %v226 = vld [vmem:[%s165 + $0xd8] sm:$0xf]
      %v227 = vld [vmem:[%s165 + $0xdc] sm:$0xf]
      %v228 = vld [vmem:[%s165 + $0xe0] sm:$0xf]
      %v229 = vld [vmem:[%s165 + $0xe4] sm:$0xf]
      %v230 = vld [vmem:[%s165 + $0xe8] sm:$0xf]
      %v231 = vld [vmem:[%s165 + $0xec] sm:$0xf]
      %v232 = vld [vmem:[%s165 + $0xf0] sm:$0xf]
      %v233 = vld [vmem:[%s165 + $0xf4] sm:$0xf]
      %v234 = vld [vmem:[%s165 + $0xf8] sm:$0xf]
      %v235 = vld [vmem:[%s165 + $0xfc] sm:$0xf]
      %v236 = vld [vmem:[%s165 + $0x100] sm:$0xf]
      %v237 = vld [vmem:[%s165 + $0x104] sm:$0xf]
      %v238 = vld [vmem:[%s165 + $0x108] sm:$0xf]
      %v239 = vld [vmem:[%s165 + $0x10c] sm:$0xf]
      %v240 = vld [vmem:[%s165 + $0x110] sm:$0xf]
      %v241 = vld [vmem:[%s165 + $0x114] sm:$0xf]
      %v242 = vld [vmem:[%s165 + $0x118] sm:$0xf]
      %v243 = vld [vmem:[%s165 + $0x11c] sm:$0xf]
      %v244 = vld [vmem:[%s165 + $0x120] sm:$0xf]
      %v245 = vld [vmem:[%s165 + $0x124] sm:$0xf]
      %v246 = vld [vmem:[%s165 + $0x128] sm:$0xf]
      %v247 = vld [vmem:[%s165 + $0x12c] sm:$0xf]
      %v248 = vld [vmem:[%s165 + $0x130] sm:$0xf]
      %v249 = vld [vmem:[%s165 + $0x134] sm:$0xf]
      %v250 = vld [vmem:[%s165 + $0x138] sm:$0xf]
      %v251 = vld [vmem:[%s165 + $0x13c] sm:$0xf]
      %v252 = vld [vmem:[%s165 + $0x140] sm:$0xf]
      %v253 = vld [vmem:[%s165 + $0x144] sm:$0xf]
      %v254 = vld [vmem:[%s165 + $0x148] sm:$0xf]
      %v255 = vld [vmem:[%s165 + $0x14c] sm:$0xf]
      %v256 = vld [vmem:[%s165 + $0x150] sm:$0xf]
      %v257 = vld [vmem:[%s165 + $0x154] sm:$0xf]
      %v258 = vld [vmem:[%s165 + $0x158] sm:$0xf]
      %v259 = vld [vmem:[%s165 + $0x15c] sm:$0xf]
      %v260 = vld [vmem:[%s165 + $0x160] sm:$0xf]
      %v261 = vld [vmem:[%s165 + $0x164] sm:$0xf]
      %v262 = vld [vmem:[%s165 + $0x168] sm:$0xf]
      %v263 = vld [vmem:[%s165 + $0x16c] sm:$0xf]
      %v264 = vld [vmem:[%s165 + $0x170] sm:$0xf]
      %v265 = vld [vmem:[%s165 + $0x174] sm:$0xf]
      %v266 = vld [vmem:[%s165 + $0x178] sm:$0xf]
      %v267 = vld [vmem:[%s165 + $0x17c] sm:$0xf]
      %v268 = vld [vmem:[%s165 + $0x180] sm:$0xf]
      %v269 = vld [vmem:[%s165 + $0x184] sm:$0xf]
      %v270 = vld [vmem:[%s1] sm:$0xf]
      %v271 = vld [vmem:[%s1 + $0x4] sm:$0xf]
      %v272 = vld [vmem:[%s1 + $0x8] sm:$0xf]
      %v273 = vld [vmem:[%s1 + $0xc] sm:$0xf]
      %v274 = vld [vmem:[%s1 + $0x10] sm:$0xf]
      %v275 = vld [vmem:[%s1 + $0x14] sm:$0xf]
      %v276 = vld [vmem:[%s1 + $0x18] sm:$0xf]
      %v277 = vld [vmem:[%s1 + $0x1c] sm:$0xf]
      %v278 = vld [vmem:[%s1 + $0x20] sm:$0xf]
      %v279 = vld [vmem:[%s1 + $0x24] sm:$0xf]
      %v280 = vld [vmem:[%s1 + $0x28] sm:$0xf]
      %v281 = vld [vmem:[%s1 + $0x2c] sm:$0xf]
      %v282 = vld [vmem:[%s1 + $0x30] sm:$0xf]
      %v283 = vld [vmem:[%s1 + $0x34] sm:$0xf]
      %v284 = vld [vmem:[%s1 + $0x38] sm:$0xf]
      %v285 = vld [vmem:[%s1 + $0x3c] sm:$0xf]
      %v286 = vld [vmem:[%s2] sm:$0x1]
      %v288 = vlaneseq
      %v289 = vshrl.u32 %v288, 7
      %v290 = vsub.s32 0, %v289
      %v291 = vrot.slane %v286, %v290
      %v391 = vunpack.c.l.b16 %v172
      %v392 = vunpack.c.l.b16 %v173
      %v393 = vunpack.c.l.b16 %v174
      %v394 = vunpack.c.l.b16 %v175
      %v395 = vunpack.c.l.b16 %v176
      %v396 = vunpack.c.l.b16 %v177
      %v397 = vunpack.c.l.b16 %v178
      %v398 = vunpack.c.l.b16 %v179
      %v399 = vunpack.c.l.b16 %v180
      %v400 = vunpack.c.l.b16 %v181
      %v401 = vunpack.c.l.b16 %v182
      %v402 = vunpack.c.l.b16 %v183
      %v403 = vunpack.c.l.b16 %v184
      %v404 = vunpack.c.l.b16 %v185
      %v405 = vunpack.c.l.b16 %v186
      %v406 = vunpack.c.l.b16 %v187
      %v407 = vunpack.c.l.b16 %v188
      %v408 = vunpack.c.l.b16 %v189
      %v409 = vunpack.c.l.b16 %v190
      %v410 = vunpack.c.l.b16 %v191
      %v411 = vunpack.c.l.b16 %v192
      %v412 = vunpack.c.l.b16 %v193
      %v413 = vunpack.c.l.b16 %v194
      %v414 = vunpack.c.l.b16 %v195
      %v415 = vunpack.c.l.b16 %v196
      %v416 = vunpack.c.l.b16 %v197
      %v417 = vunpack.c.l.b16 %v198
      %v418 = vunpack.c.l.b16 %v199
      %v419 = vunpack.c.l.b16 %v200
      %v420 = vunpack.c.l.b16 %v201
      %v421 = vunpack.c.l.b16 %v202
      %v422 = vunpack.c.l.b16 %v203
      %v423 = vunpack.c.l.b16 %v204
      %v424 = vunpack.c.l.b16 %v205
      %v425 = vunpack.c.l.b16 %v206
      %v426 = vunpack.c.l.b16 %v207
      %v427 = vunpack.c.l.b16 %v208
      %v428 = vunpack.c.l.b16 %v209
      %v429 = vunpack.c.l.b16 %v210
      %v430 = vunpack.c.l.b16 %v211
      %v431 = vunpack.c.l.b16 %v212
      %v432 = vunpack.c.l.b16 %v213
      %v433 = vunpack.c.l.b16 %v214
      %v434 = vunpack.c.l.b16 %v215
      %v435 = vunpack.c.l.b16 %v216
      %v436 = vunpack.c.l.b16 %v217
      %v437 = vunpack.c.l.b16 %v218
      %v438 = vunpack.c.l.b16 %v219
      %v439 = vunpack.c.l.b16 %v220
      %v440 = vunpack.c.l.b16 %v221
      %v441 = vunpack.c.l.b16 %v222
      %v442 = vunpack.c.l.b16 %v223
      %v443 = vunpack.c.l.b16 %v224
      %v444 = vunpack.c.l.b16 %v225
      %v445 = vunpack.c.l.b16 %v226
      %v446 = vunpack.c.l.b16 %v227
      %v447 = vunpack.c.l.b16 %v228
      %v448 = vunpack.c.l.b16 %v229
      %v449 = vunpack.c.l.b16 %v230
      %v450 = vunpack.c.l.b16 %v231
      %v451 = vunpack.c.l.b16 %v232
      %v452 = vunpack.c.l.b16 %v233
      %v453 = vunpack.c.l.b16 %v234
      %v454 = vunpack.c.l.b16 %v235
      %v455 = vunpack.c.l.b16 %v236
      %v456 = vunpack.c.l.b16 %v237
      %v457 = vunpack.c.l.b16 %v238
      %v458 = vunpack.c.l.b16 %v239
      %v459 = vunpack.c.l.b16 %v240
      %v460 = vunpack.c.l.b16 %v241
      %v461 = vunpack.c.l.b16 %v242
      %v462 = vunpack.c.l.b16 %v243
      %v463 = vunpack.c.l.b16 %v244
      %v464 = vunpack.c.l.b16 %v245
      %v465 = vunpack.c.l.b16 %v246
      %v466 = vunpack.c.l.b16 %v247
      %v467 = vunpack.c.l.b16 %v248
      %v468 = vunpack.c.l.b16 %v249
      %v469 = vunpack.c.l.b16 %v250
      %v470 = vunpack.c.l.b16 %v251
      %v471 = vunpack.c.l.b16 %v252
      %v472 = vunpack.c.l.b16 %v253
      %v473 = vunpack.c.l.b16 %v254
      %v474 = vunpack.c.l.b16 %v255
      %v475 = vunpack.c.l.b16 %v256
      %v476 = vunpack.c.l.b16 %v257
      %v477 = vunpack.c.l.b16 %v258
      %v478 = vunpack.c.l.b16 %v259
      %v479 = vunpack.c.l.b16 %v260
      %v480 = vunpack.c.l.b16 %v261
      %v481 = vunpack.c.l.b16 %v262
      %v482 = vunpack.c.l.b16 %v263
      %v483 = vunpack.c.l.b16 %v264
      %v484 = vunpack.c.l.b16 %v265
      %v485 = vunpack.c.l.b16 %v266
      %v486 = vunpack.c.l.b16 %v267
      %v487 = vunpack.c.l.b16 %v268
      %v488 = vunpack.c.l.b16 %v269
      %v489 = vpack.c.b16 %v392, %v391
      %v490 = vpack.c.b16 %v394, %v393
      %v491 = vpack.c.b16 %v396, %v395
      %v492 = vpack.c.b16 %v398, %v397
      %v493 = vpack.c.b16 %v400, %v399
      %v494 = vpack.c.b16 %v402, %v401
      %v495 = vpack.c.b16 %v404, %v403
      %v496 = vpack.c.b16 %v406, %v405
      %v497 = vpack.c.b16 %v408, %v407
      %v498 = vpack.c.b16 %v410, %v409
      %v499 = vpack.c.b16 %v412, %v411
      %v500 = vpack.c.b16 %v414, %v413
      %v501 = vpack.c.b16 %v416, %v415
      %v502 = vpack.c.b16 %v418, %v417
      %v503 = vpack.c.b16 %v420, %v419
      %v504 = vpack.c.b16 %v422, %v421
      %v505 = vpack.c.b16 %v424, %v423
      %v506 = vpack.c.b16 %v426, %v425
      %v507 = vpack.c.b16 %v428, %v427
      %v508 = vpack.c.b16 %v430, %v429
      %v509 = vpack.c.b16 %v432, %v431
      %v510 = vpack.c.b16 %v434, %v433
      %v511 = vpack.c.b16 %v436, %v435
      %v512 = vpack.c.b16 %v438, %v437
      %v513 = vpack.c.b16 %v440, %v439
      %v514 = vpack.c.b16 %v442, %v441
      %v515 = vpack.c.b16 %v444, %v443
      %v516 = vpack.c.b16 %v446, %v445
      %v517 = vpack.c.b16 %v448, %v447
      %v518 = vpack.c.b16 %v450, %v449
      %v519 = vpack.c.b16 %v452, %v451
      %v520 = vpack.c.b16 %v454, %v453
      %v521 = vpack.c.b16 %v456, %v455
      %v522 = vpack.c.b16 %v458, %v457
      %v523 = vpack.c.b16 %v460, %v459
      %v524 = vpack.c.b16 %v462, %v461
      %v525 = vpack.c.b16 %v464, %v463
      %v526 = vpack.c.b16 %v466, %v465
      %v527 = vpack.c.b16 %v468, %v467
      %v528 = vpack.c.b16 %v470, %v469
      %v529 = vpack.c.b16 %v472, %v471
      %v530 = vpack.c.b16 %v474, %v473
      %v531 = vpack.c.b16 %v476, %v475
      %v532 = vpack.c.b16 %v478, %v477
      %v533 = vpack.c.b16 %v480, %v479
      %v534 = vpack.c.b16 %v482, %v481
      %v535 = vpack.c.b16 %v484, %v483
      %v536 = vpack.c.b16 %v486, %v485
      %v537 = vpack.c.b16 %v488, %v487
      %v603 = vunpack.c.l.b16 %v270
      %v604 = vunpack.c.l.b16 %v271
      %v605 = vunpack.c.l.b16 %v272
      %v606 = vunpack.c.l.b16 %v273
      %v607 = vunpack.c.l.b16 %v274
      %v608 = vunpack.c.l.b16 %v275
      %v609 = vunpack.c.l.b16 %v276
      %v610 = vunpack.c.l.b16 %v277
      %v611 = vunpack.c.l.b16 %v278
      %v612 = vunpack.c.l.b16 %v279
      %v613 = vunpack.c.l.b16 %v280
      %v614 = vunpack.c.l.b16 %v281
      %v615 = vunpack.c.l.b16 %v282
      %v616 = vunpack.c.l.b16 %v283
      %v617 = vunpack.c.l.b16 %v284
      %v618 = vunpack.c.l.b16 %v285
      %v619 = vpack.c.b16 %v604, %v603
      %v620 = vpack.c.b16 %v606, %v605
      %v621 = vpack.c.b16 %v608, %v607
      %v622 = vpack.c.b16 %v610, %v609
      %v623 = vpack.c.b16 %v612, %v611
      %v624 = vpack.c.b16 %v614, %v613
      %v625 = vpack.c.b16 %v616, %v615
      %v626 = vpack.c.b16 %v618, %v617
      %635 = vmatprep.subr.bf16.mxu0 0
      %636 = vmatpush1.bf16.msra.mxu0 %v619
      %637 = vmatprep.subr.bf16.mxu0 0
      %638 = vmatpush1.bf16.msra.mxu0 %v620
      %639 = vmatprep.subr.bf16.mxu0 0
      %640 = vmatpush1.bf16.msra.mxu0 %v621
      %641 = vmatprep.subr.bf16.mxu0 0
      %642 = vmatpush1.bf16.msra.mxu0 %v622
      %643 = vmatprep.subr.bf16.mxu0 0
      %644 = vmatpush1.bf16.msra.mxu0 %v623
      %645 = vmatprep.subr.bf16.mxu0 0
      %646 = vmatpush1.bf16.msra.mxu0 %v624
      %647 = vmatprep.subr.bf16.mxu0 0
      %648 = vmatpush1.bf16.msra.mxu0 %v625
      %649 = vmatprep.subr.bf16.mxu0 0
      %650 = vmatpush1.bf16.msra.mxu0 %v626
      %651 = vmatprep.subr.bf16.mxu0 0
      %652 = vmatpush1.bf16.msra.mxu0 0
      %653 = vmatprep.subr.bf16.mxu0 0
      %654 = vmatpush1.bf16.msra.mxu0 0
      %655 = vmatprep.subr.bf16.mxu0 0
      %656 = vmatpush1.bf16.msra.mxu0 0
      %657 = vmatprep.subr.bf16.mxu0 0
      %658 = vmatpush1.bf16.msra.mxu0 0
      %659 = vmatprep.subr.bf16.mxu0 0
      %660 = vmatpush1.bf16.msra.mxu0 0
      %661 = vmatprep.subr.bf16.mxu0 0
      %662 = vmatpush1.bf16.msra.mxu0 0
      %663 = vmatprep.subr.bf16.mxu0 0
      %664 = vmatpush1.bf16.msra.mxu0 0
      %665 = vmatprep.subr.bf16.mxu0 0
      %666 = vmatpush1.bf16.msra.mxu0 0
      %667 = vmatprep.mubr.bf16.mxu0 0
      %668 = vmatmul.mubr.bf16.gmra.mrb[0].mxu0 %v489
      %v669 = vpop.f32.mrb[0].mxu0
      %v670 = vadd.f32 %v291, %v669
      %v671 = vpop.f32.mrb[0].mxu0
      %v672 = vpop.f32.mrb[0].mxu0
      %v673 = vadd.f32 %v291, %v672
      %v674 = vpop.f32.mrb[0].mxu0
      %675 = vmatprep.mubr.bf16.mxu0 0
      %676 = vmatmul.mubr.bf16.gmra.mrb[0].mxu0 %v490
      %v677 = vpop.f32.mrb[0].mxu0
      %v678 = vadd.f32 %v291, %v677
      %v679 = vpop.f32.mrb[0].mxu0
      %v680 = vpop.f32.mrb[0].mxu0
      %v681 = vadd.f32 %v291, %v680
      %v682 = vpop.f32.mrb[0].mxu0
      %683 = vmatprep.mubr.bf16.mxu0 0
      %684 = vmatmul.mubr.bf16.gmra.mrb[0].mxu0 %v491
      %v685 = vpop.f32.mrb[0].mxu0
      %v686 = vadd.f32 %v291, %v685
      %v687 = vpop.f32.mrb[0].mxu0
      %v688 = vpop.f32.mrb[0].mxu0
      %v689 = vadd.f32 %v291, %v688
      %v690 = vpop.f32.mrb[0].mxu0
      %691 = vmatprep.mubr.bf16.mxu0 0
      %692 = vmatmul.mubr.bf16.gmra.mrb[0].mxu0 %v492
      %v693 = vpop.f32.mrb[0].mxu0
      %v694 = vadd.f32 %v291, %v693
      %v695 = vpop.f32.mrb[0].mxu0
      %v696 = vpop.f32.mrb[0].mxu0
      %v697 = vadd.f32 %v291, %v696
      %v698 = vpop.f32.mrb[0].mxu0
      %699 = vmatprep.mubr.bf16.mxu0 0
      %700 = vmatmul.mubr.bf16.gmra.mrb[0].mxu0 %v493
      %v701 = vpop.f32.mrb[0].mxu0
      %v702 = vadd.f32 %v291, %v701
      %v703 = vpop.f32.mrb[0].mxu0
      %v704 = vpop.f32.mrb[0].mxu0
      %v705 = vadd.f32 %v291, %v704
      %v706 = vpop.f32.mrb[0].mxu0
      %707 = vmatprep.mubr.bf16.mxu0 0
      %708 = vmatmul.mubr.bf16.gmra.mrb[0].mxu0 %v494
      %v709 = vpop.f32.mrb[0].mxu0
      %v710 = vadd.f32 %v291, %v709
      %v711 = vpop.f32.mrb[0].mxu0
      %v712 = vpop.f32.mrb[0].mxu0
      %v713 = vadd.f32 %v291, %v712
      %v714 = vpop.f32.mrb[0].mxu0
      %715 = vmatprep.mubr.bf16.mxu0 0
      %716 = vmatmul.mubr.bf16.gmra.mrb[0].mxu0 %v495
      %v717 = vpop.f32.mrb[0].mxu0
      %v718 = vadd.f32 %v291, %v717
      %v719 = vpop.f32.mrb[0].mxu0
      %v720 = vpop.f32.mrb[0].mxu0
      %v721 = vadd.f32 %v291, %v720
      %v722 = vpop.f32.mrb[0].mxu0
      %723 = vmatprep.mubr.bf16.mxu0 0
      %724 = vmatmul.mubr.bf16.gmra.mrb[0].mxu0 %v496
      %v725 = vpop.f32.mrb[0].mxu0
      %v726 = vadd.f32 %v291, %v725
      %v727 = vpop.f32.mrb[0].mxu0
      %v728 = vpop.f32.mrb[0].mxu0
      %v729 = vadd.f32 %v291, %v728
      %v730 = vpop.f32.mrb[0].mxu0
      %731 = vmatprep.mubr.bf16.mxu0 0
      %732 = vmatmul.mubr.bf16.gmra.mrb[0].mxu0 %v497
      %v733 = vpop.f32.mrb[0].mxu0
      %v734 = vadd.f32 %v291, %v733
      %v735 = vpop.f32.mrb[0].mxu0
      %v736 = vpop.f32.mrb[0].mxu0
      %v737 = vadd.f32 %v291, %v736
      %v738 = vpop.f32.mrb[0].mxu0
      %739 = vmatprep.mubr.bf16.mxu0 0
      %740 = vmatmul.mubr.bf16.gmra.mrb[0].mxu0 %v498
      %v741 = vpop.f32.mrb[0].mxu0
      %v742 = vadd.f32 %v291, %v741
      %v743 = vpop.f32.mrb[0].mxu0
      %v744 = vpop.f32.mrb[0].mxu0
      %v745 = vadd.f32 %v291, %v744
      %v746 = vpop.f32.mrb[0].mxu0
      %747 = vmatprep.mubr.bf16.mxu0 0
      %748 = vmatmul.mubr.bf16.gmra.mrb[0].mxu0 %v499
      %v749 = vpop.f32.mrb[0].mxu0
      %v750 = vadd.f32 %v291, %v749
      %v751 = vpop.f32.mrb[0].mxu0
      %v752 = vpop.f32.mrb[0].mxu0
      %v753 = vadd.f32 %v291, %v752
      %v754 = vpop.f32.mrb[0].mxu0
      %755 = vmatprep.mubr.bf16.mxu0 0
      %756 = vmatmul.mubr.bf16.gmra.mrb[0].mxu0 %v500
      %v757 = vpop.f32.mrb[0].mxu0
      %v758 = vadd.f32 %v291, %v757
      %v759 = vpop.f32.mrb[0].mxu0
      %v760 = vpop.f32.mrb[0].mxu0
      %v761 = vadd.f32 %v291, %v760
      %v762 = vpop.f32.mrb[0].mxu0
      %763 = vmatprep.mubr.bf16.mxu0 0
      %764 = vmatmul.mubr.bf16.gmra.mrb[0].mxu0 %v501
      %v765 = vpop.f32.mrb[0].mxu0
      %v766 = vadd.f32 %v291, %v765
      %v767 = vpop.f32.mrb[0].mxu0
      %v768 = vpop.f32.mrb[0].mxu0
      %v769 = vadd.f32 %v291, %v768
      %v770 = vpop.f32.mrb[0].mxu0
      %771 = vmatprep.mubr.bf16.mxu0 0
      %772 = vmatmul.mubr.bf16.gmra.mrb[0].mxu0 %v502
      %v773 = vpop.f32.mrb[0].mxu0
      %v774 = vadd.f32 %v291, %v773
      %v775 = vpop.f32.mrb[0].mxu0
      %v776 = vpop.f32.mrb[0].mxu0
      %v777 = vadd.f32 %v291, %v776
      %v778 = vpop.f32.mrb[0].mxu0
      %779 = vmatprep.mubr.bf16.mxu0 0
      %780 = vmatmul.mubr.bf16.gmra.mrb[0].mxu0 %v503
      %v781 = vpop.f32.mrb[0].mxu0
      %v782 = vadd.f32 %v291, %v781
      %v783 = vpop.f32.mrb[0].mxu0
      %v784 = vpop.f32.mrb[0].mxu0
      %v785 = vadd.f32 %v291, %v784
      %v786 = vpop.f32.mrb[0].mxu0
      %787 = vmatprep.mubr.bf16.mxu0 0
      %788 = vmatmul.mubr.bf16.gmra.mrb[0].mxu0 %v504
      %v789 = vpop.f32.mrb[0].mxu0
      %v790 = vadd.f32 %v291, %v789
      %v791 = vpop.f32.mrb[0].mxu0
      %v792 = vpop.f32.mrb[0].mxu0
      %v793 = vadd.f32 %v291, %v792
      %v794 = vpop.f32.mrb[0].mxu0
      %795 = vmatprep.mubr.bf16.mxu0 0
      %796 = vmatmul.mubr.bf16.gmra.mrb[0].mxu0 %v505
      %v797 = vpop.f32.mrb[0].mxu0
      %v798 = vadd.f32 %v291, %v797
      %v799 = vpop.f32.mrb[0].mxu0
      %v800 = vpop.f32.mrb[0].mxu0
      %v801 = vadd.f32 %v291, %v800
      %v802 = vpop.f32.mrb[0].mxu0
      %803 = vmatprep.mubr.bf16.mxu0 0
      %804 = vmatmul.mubr.bf16.gmra.mrb[0].mxu0 %v506
      %v805 = vpop.f32.mrb[0].mxu0
      %v806 = vadd.f32 %v291, %v805
      %v807 = vpop.f32.mrb[0].mxu0
      %v808 = vpop.f32.mrb[0].mxu0
      %v809 = vadd.f32 %v291, %v808
      %v810 = vpop.f32.mrb[0].mxu0
      %811 = vmatprep.mubr.bf16.mxu0 0
      %812 = vmatmul.mubr.bf16.gmra.mrb[0].mxu0 %v507
      %v813 = vpop.f32.mrb[0].mxu0
      %v814 = vadd.f32 %v291, %v813
      %v815 = vpop.f32.mrb[0].mxu0
      %v816 = vpop.f32.mrb[0].mxu0
      %v817 = vadd.f32 %v291, %v816
      %v818 = vpop.f32.mrb[0].mxu0
      %819 = vmatprep.mubr.bf16.mxu0 0
      %820 = vmatmul.mubr.bf16.gmra.mrb[0].mxu0 %v508
      %v821 = vpop.f32.mrb[0].mxu0
      %v822 = vadd.f32 %v291, %v821
      %v823 = vpop.f32.mrb[0].mxu0
      %v824 = vpop.f32.mrb[0].mxu0
      %v825 = vadd.f32 %v291, %v824
      %v826 = vpop.f32.mrb[0].mxu0
      %827 = vmatprep.mubr.bf16.mxu0 0
      %828 = vmatmul.mubr.bf16.gmra.mrb[0].mxu0 %v509
      %v829 = vpop.f32.mrb[0].mxu0
      %v830 = vadd.f32 %v291, %v829
      %v831 = vpop.f32.mrb[0].mxu0
      %v832 = vpop.f32.mrb[0].mxu0
      %v833 = vadd.f32 %v291, %v832
      %v834 = vpop.f32.mrb[0].mxu0
      %835 = vmatprep.mubr.bf16.mxu0 0
      %836 = vmatmul.mubr.bf16.gmra.mrb[0].mxu0 %v510
      %v837 = vpop.f32.mrb[0].mxu0
      %v838 = vadd.f32 %v291, %v837
      %v839 = vpop.f32.mrb[0].mxu0
      %v840 = vpop.f32.mrb[0].mxu0
      %v841 = vadd.f32 %v291, %v840
      %v842 = vpop.f32.mrb[0].mxu0
      %843 = vmatprep.mubr.bf16.mxu0 0
      %844 = vmatmul.mubr.bf16.gmra.mrb[0].mxu0 %v511
      %v845 = vpop.f32.mrb[0].mxu0
      %v846 = vadd.f32 %v291, %v845
      %v847 = vpop.f32.mrb[0].mxu0
      %v848 = vpop.f32.mrb[0].mxu0
      %v849 = vadd.f32 %v291, %v848
      %v850 = vpop.f32.mrb[0].mxu0
      %851 = vmatprep.mubr.bf16.mxu0 0
      %852 = vmatmul.mubr.bf16.gmra.mrb[0].mxu0 %v512
      %v853 = vpop.f32.mrb[0].mxu0
      %v854 = vadd.f32 %v291, %v853
      %v855 = vpop.f32.mrb[0].mxu0
      %v856 = vpop.f32.mrb[0].mxu0
      %v857 = vadd.f32 %v291, %v856
      %v858 = vpop.f32.mrb[0].mxu0
      %859 = vmatprep.mubr.bf16.mxu0 0
      %860 = vmatmul.mubr.bf16.gmra.mrb[0].mxu0 %v513
      %v861 = vpop.f32.mrb[0].mxu0
      %v862 = vadd.f32 %v291, %v861
      %v863 = vpop.f32.mrb[0].mxu0
      %v864 = vpop.f32.mrb[0].mxu0
      %v865 = vadd.f32 %v291, %v864
      %v866 = vpop.f32.mrb[0].mxu0
      %867 = vmatprep.mubr.bf16.mxu0 0
      %868 = vmatmul.mubr.bf16.gmra.mrb[0].mxu0 %v514
      %v869 = vpop.f32.mrb[0].mxu0
      %v870 = vadd.f32 %v291, %v869
      %v871 = vpop.f32.mrb[0].mxu0
      %v872 = vpop.f32.mrb[0].mxu0
      %v873 = vadd.f32 %v291, %v872
      %v874 = vpop.f32.mrb[0].mxu0
      %875 = vmatprep.mubr.bf16.mxu0 0
      %876 = vmatmul.mubr.bf16.gmra.mrb[0].mxu0 %v515
      %v877 = vpop.f32.mrb[0].mxu0
      %v878 = vadd.f32 %v291, %v877
      %v879 = vpop.f32.mrb[0].mxu0
      %v880 = vpop.f32.mrb[0].mxu0
      %v881 = vadd.f32 %v291, %v880
      %v882 = vpop.f32.mrb[0].mxu0
      %883 = vmatprep.mubr.bf16.mxu0 0
      %884 = vmatmul.mubr.bf16.gmra.mrb[0].mxu0 %v516
      %v885 = vpop.f32.mrb[0].mxu0
      %v886 = vadd.f32 %v291, %v885
      %v887 = vpop.f32.mrb[0].mxu0
      %v888 = vpop.f32.mrb[0].mxu0
      %v889 = vadd.f32 %v291, %v888
      %v890 = vpop.f32.mrb[0].mxu0
      %891 = vmatprep.mubr.bf16.mxu0 0
      %892 = vmatmul.mubr.bf16.gmra.mrb[0].mxu0 %v517
      %v893 = vpop.f32.mrb[0].mxu0
      %v894 = vadd.f32 %v291, %v893
      %v895 = vpop.f32.mrb[0].mxu0
      %v896 = vpop.f32.mrb[0].mxu0
      %v897 = vadd.f32 %v291, %v896
      %v898 = vpop.f32.mrb[0].mxu0
      %899 = vmatprep.mubr.bf16.mxu0 0
      %900 = vmatmul.mubr.bf16.gmra.mrb[0].mxu0 %v518
      %v901 = vpop.f32.mrb[0].mxu0
      %v902 = vadd.f32 %v291, %v901
      %v903 = vpop.f32.mrb[0].mxu0
      %v904 = vpop.f32.mrb[0].mxu0
      %v905 = vadd.f32 %v291, %v904
      %v906 = vpop.f32.mrb[0].mxu0
      %907 = vmatprep.mubr.bf16.mxu0 0
      %908 = vmatmul.mubr.bf16.gmra.mrb[0].mxu0 %v519
      %v909 = vpop.f32.mrb[0].mxu0
      %v910 = vadd.f32 %v291, %v909
      %v911 = vpop.f32.mrb[0].mxu0
      %v912 = vpop.f32.mrb[0].mxu0
      %v913 = vadd.f32 %v291, %v912
      %v914 = vpop.f32.mrb[0].mxu0
      %915 = vmatprep.mubr.bf16.mxu0 0
      %916 = vmatmul.mubr.bf16.gmra.mrb[0].mxu0 %v520
      %v917 = vpop.f32.mrb[0].mxu0
      %v918 = vadd.f32 %v291, %v917
      %v919 = vpop.f32.mrb[0].mxu0
      %v920 = vpop.f32.mrb[0].mxu0
      %v921 = vadd.f32 %v291, %v920
      %v922 = vpop.f32.mrb[0].mxu0
      %923 = vmatprep.mubr.bf16.mxu0 0
      %924 = vmatmul.mubr.bf16.gmra.mrb[0].mxu0 %v521
      %v925 = vpop.f32.mrb[0].mxu0
      %v926 = vadd.f32 %v291, %v925
      %v927 = vpop.f32.mrb[0].mxu0
      %v928 = vpop.f32.mrb[0].mxu0
      %v929 = vadd.f32 %v291, %v928
      %v930 = vpop.f32.mrb[0].mxu0
      %931 = vmatprep.mubr.bf16.mxu0 0
      %932 = vmatmul.mubr.bf16.gmra.mrb[0].mxu0 %v522
      %v933 = vpop.f32.mrb[0].mxu0
      %v934 = vadd.f32 %v291, %v933
      %v935 = vpop.f32.mrb[0].mxu0
      %v936 = vpop.f32.mrb[0].mxu0
      %v937 = vadd.f32 %v291, %v936
      %v938 = vpop.f32.mrb[0].mxu0
      %939 = vmatprep.mubr.bf16.mxu0 0
      %940 = vmatmul.mubr.bf16.gmra.mrb[0].mxu0 %v523
      %v941 = vpop.f32.mrb[0].mxu0
      %v942 = vadd.f32 %v291, %v941
      %v943 = vpop.f32.mrb[0].mxu0
      %v944 = vpop.f32.mrb[0].mxu0
      %v945 = vadd.f32 %v291, %v944
      %v946 = vpop.f32.mrb[0].mxu0
      %947 = vmatprep.mubr.bf16.mxu0 0
      %948 = vmatmul.mubr.bf16.gmra.mrb[0].mxu0 %v524
      %v949 = vpop.f32.mrb[0].mxu0
      %v950 = vadd.f32 %v291, %v949
      %v951 = vpop.f32.mrb[0].mxu0
      %v952 = vpop.f32.mrb[0].mxu0
      %v953 = vadd.f32 %v291, %v952
      %v954 = vpop.f32.mrb[0].mxu0
      %955 = vmatprep.mubr.bf16.mxu0 0
      %956 = vmatmul.mubr.bf16.gmra.mrb[0].mxu0 %v525
      %v957 = vpop.f32.mrb[0].mxu0
      %v958 = vadd.f32 %v291, %v957
      %v959 = vpop.f32.mrb[0].mxu0
      %v960 = vpop.f32.mrb[0].mxu0
      %v961 = vadd.f32 %v291, %v960
      %v962 = vpop.f32.mrb[0].mxu0
      %963 = vmatprep.mubr.bf16.mxu0 0
      %964 = vmatmul.mubr.bf16.gmra.mrb[0].mxu0 %v526
      %v965 = vpop.f32.mrb[0].mxu0
      %v966 = vadd.f32 %v291, %v965
      %v967 = vpop.f32.mrb[0].mxu0
      %v968 = vpop.f32.mrb[0].mxu0
      %v969 = vadd.f32 %v291, %v968
      %v970 = vpop.f32.mrb[0].mxu0
      %971 = vmatprep.mubr.bf16.mxu0 0
      %972 = vmatmul.mubr.bf16.gmra.mrb[0].mxu0 %v527
      %v973 = vpop.f32.mrb[0].mxu0
      %v974 = vadd.f32 %v291, %v973
      %v975 = vpop.f32.mrb[0].mxu0
      %v976 = vpop.f32.mrb[0].mxu0
      %v977 = vadd.f32 %v291, %v976
      %v978 = vpop.f32.mrb[0].mxu0
      %979 = vmatprep.mubr.bf16.mxu0 0
      %980 = vmatmul.mubr.bf16.gmra.mrb[0].mxu0 %v528
      %v981 = vpop.f32.mrb[0].mxu0
      %v982 = vadd.f32 %v291, %v981
      %v983 = vpop.f32.mrb[0].mxu0
      %v984 = vpop.f32.mrb[0].mxu0
      %v985 = vadd.f32 %v291, %v984
      %v986 = vpop.f32.mrb[0].mxu0
      %987 = vmatprep.mubr.bf16.mxu0 0
      %988 = vmatmul.mubr.bf16.gmra.mrb[0].mxu0 %v529
      %v989 = vpop.f32.mrb[0].mxu0
      %v990 = vadd.f32 %v291, %v989
      %v991 = vpop.f32.mrb[0].mxu0
      %v992 = vpop.f32.mrb[0].mxu0
      %v993 = vadd.f32 %v291, %v992
      %v994 = vpop.f32.mrb[0].mxu0
      %995 = vmatprep.mubr.bf16.mxu0 0
      %996 = vmatmul.mubr.bf16.gmra.mrb[0].mxu0 %v530
      %v997 = vpop.f32.mrb[0].mxu0
      %v998 = vadd.f32 %v291, %v997
      %v999 = vpop.f32.mrb[0].mxu0
      %v1000 = vpop.f32.mrb[0].mxu0
      %v1001 = vadd.f32 %v291, %v1000
      %v1002 = vpop.f32.mrb[0].mxu0
      %1003 = vmatprep.mubr.bf16.mxu0 0
      %1004 = vmatmul.mubr.bf16.gmra.mrb[0].mxu0 %v531
      %v1005 = vpop.f32.mrb[0].mxu0
      %v1006 = vadd.f32 %v291, %v1005
      %v1007 = vpop.f32.mrb[0].mxu0
      %v1008 = vpop.f32.mrb[0].mxu0
      %v1009 = vadd.f32 %v291, %v1008
      %v1010 = vpop.f32.mrb[0].mxu0
      %1011 = vmatprep.mubr.bf16.mxu0 0
      %1012 = vmatmul.mubr.bf16.gmra.mrb[0].mxu0 %v532
      %v1013 = vpop.f32.mrb[0].mxu0
      %v1014 = vadd.f32 %v291, %v1013
      %v1015 = vpop.f32.mrb[0].mxu0
      %v1016 = vpop.f32.mrb[0].mxu0
      %v1017 = vadd.f32 %v291, %v1016
      %v1018 = vpop.f32.mrb[0].mxu0
      %1019 = vmatprep.mubr.bf16.mxu0 0
      %1020 = vmatmul.mubr.bf16.gmra.mrb[0].mxu0 %v533
      %v1021 = vpop.f32.mrb[0].mxu0
      %v1022 = vadd.f32 %v291, %v1021
      %v1023 = vpop.f32.mrb[0].mxu0
      %v1024 = vpop.f32.mrb[0].mxu0
      %v1025 = vadd.f32 %v291, %v1024
      %v1026 = vpop.f32.mrb[0].mxu0
      %1027 = vmatprep.mubr.bf16.mxu0 0
      %1028 = vmatmul.mubr.bf16.gmra.mrb[0].mxu0 %v534
      %v1029 = vpop.f32.mrb[0].mxu0
      %v1030 = vadd.f32 %v291, %v1029
      %v1031 = vpop.f32.mrb[0].mxu0
      %v1032 = vpop.f32.mrb[0].mxu0
      %v1033 = vadd.f32 %v291, %v1032
      %v1034 = vpop.f32.mrb[0].mxu0
      %1035 = vmatprep.mubr.bf16.mxu0 0
      %1036 = vmatmul.mubr.bf16.gmra.mrb[0].mxu0 %v535
      %v1037 = vpop.f32.mrb[0].mxu0
      %v1038 = vadd.f32 %v291, %v1037
      %v1039 = vpop.f32.mrb[0].mxu0
      %v1040 = vpop.f32.mrb[0].mxu0
      %v1041 = vadd.f32 %v291, %v1040
      %v1042 = vpop.f32.mrb[0].mxu0
      %1043 = vmatprep.mubr.bf16.mxu0 0
      %1044 = vmatmul.mubr.bf16.gmra.mrb[0].mxu0 %v536
      %v1045 = vpop.f32.mrb[0].mxu0
      %v1046 = vadd.f32 %v291, %v1045
      %v1047 = vpop.f32.mrb[0].mxu0
      %v1048 = vpop.f32.mrb[0].mxu0
      %v1049 = vadd.f32 %v291, %v1048
      %v1050 = vpop.f32.mrb[0].mxu0
      %1051 = vmatprep.mubr.bf16.mxu0 0
      %1052 = vmatmul.mubr.bf16.gmra.mrb[0].mxu0 %v537
      %v1053 = vpop.f32.mrb[0].mxu0
      %v1054 = vadd.f32 %v291, %v1053
      %v1055 = vpop.f32.mrb[0].mxu0
      %v1056 = vpop.f32.mrb[0].mxu0
      %v1057 = vadd.f32 %v291, %v1056
      %v1058 = vpop.f32.mrb[0].mxu0
      %1059 = vdwg.mxu0
      %v1060 = vmax.f32 %v670, 0.0
      %v1061 = vmax.f32 %v673, 0.0
      %v1062 = vmax.f32 %v678, 0.0
      %v1063 = vmax.f32 %v681, 0.0
      %v1064 = vmax.f32 %v686, 0.0
      %v1065 = vmax.f32 %v689, 0.0
      %v1066 = vmax.f32 %v694, 0.0
      %v1067 = vmax.f32 %v697, 0.0
      %v1068 = vmax.f32 %v702, 0.0
      %v1069 = vmax.f32 %v705, 0.0
      %v1070 = vmax.f32 %v710, 0.0
      %v1071 = vmax.f32 %v713, 0.0
      %v1072 = vmax.f32 %v718, 0.0
      %v1073 = vmax.f32 %v721, 0.0
      %v1074 = vmax.f32 %v726, 0.0
      %v1075 = vmax.f32 %v729, 0.0
      %v1076 = vmax.f32 %v734, 0.0
      %v1077 = vmax.f32 %v737, 0.0
      %v1078 = vmax.f32 %v742, 0.0
      %v1079 = vmax.f32 %v745, 0.0
      %v1080 = vmax.f32 %v750, 0.0
      %v1081 = vmax.f32 %v753, 0.0
      %v1082 = vmax.f32 %v758, 0.0
      %v1083 = vmax.f32 %v761, 0.0
      %v1084 = vmax.f32 %v766, 0.0
      %v1085 = vmax.f32 %v769, 0.0
      %v1086 = vmax.f32 %v774, 0.0
      %v1087 = vmax.f32 %v777, 0.0
      %v1088 = vmax.f32 %v782, 0.0
      %v1089 = vmax.f32 %v785, 0.0
      %v1090 = vmax.f32 %v790, 0.0
      %v1091 = vmax.f32 %v793, 0.0
      %v1092 = vmax.f32 %v798, 0.0
      %v1093 = vmax.f32 %v801, 0.0
      %v1094 = vmax.f32 %v806, 0.0
      %v1095 = vmax.f32 %v809, 0.0
      %v1096 = vmax.f32 %v814, 0.0
      %v1097 = vmax.f32 %v817, 0.0
      %v1098 = vmax.f32 %v822, 0.0
      %v1099 = vmax.f32 %v825, 0.0
      %v1100 = vmax.f32 %v830, 0.0
      %v1101 = vmax.f32 %v833, 0.0
      %v1102 = vmax.f32 %v838, 0.0
      %v1103 = vmax.f32 %v841, 0.0
      %v1104 = vmax.f32 %v846, 0.0
      %v1105 = vmax.f32 %v849, 0.0
      %v1106 = vmax.f32 %v854, 0.0
      %v1107 = vmax.f32 %v857, 0.0
      %v1108 = vmax.f32 %v862, 0.0
      %v1109 = vmax.f32 %v865, 0.0
      %v1110 = vmax.f32 %v870, 0.0
      %v1111 = vmax.f32 %v873, 0.0
      %v1112 = vmax.f32 %v878, 0.0
      %v1113 = vmax.f32 %v881, 0.0
      %v1114 = vmax.f32 %v886, 0.0
      %v1115 = vmax.f32 %v889, 0.0
      %v1116 = vmax.f32 %v894, 0.0
      %v1117 = vmax.f32 %v897, 0.0
      %v1118 = vmax.f32 %v902, 0.0
      %v1119 = vmax.f32 %v905, 0.0
      %v1120 = vmax.f32 %v910, 0.0
      %v1121 = vmax.f32 %v913, 0.0
      %v1122 = vmax.f32 %v918, 0.0
      %v1123 = vmax.f32 %v921, 0.0
      %v1124 = vmax.f32 %v926, 0.0
      %v1125 = vmax.f32 %v929, 0.0
      %v1126 = vmax.f32 %v934, 0.0
      %v1127 = vmax.f32 %v937, 0.0
      %v1128 = vmax.f32 %v942, 0.0
      %v1129 = vmax.f32 %v945, 0.0
      %v1130 = vmax.f32 %v950, 0.0
      %v1131 = vmax.f32 %v953, 0.0
      %v1132 = vmax.f32 %v958, 0.0
      %v1133 = vmax.f32 %v961, 0.0
      %v1134 = vmax.f32 %v966, 0.0
      %v1135 = vmax.f32 %v969, 0.0
      %v1136 = vmax.f32 %v974, 0.0
      %v1137 = vmax.f32 %v977, 0.0
      %v1138 = vmax.f32 %v982, 0.0
      %v1139 = vmax.f32 %v985, 0.0
      %v1140 = vmax.f32 %v990, 0.0
      %v1141 = vmax.f32 %v993, 0.0
      %v1142 = vmax.f32 %v998, 0.0
      %v1143 = vmax.f32 %v1001, 0.0
      %v1144 = vmax.f32 %v1006, 0.0
      %v1145 = vmax.f32 %v1009, 0.0
      %v1146 = vmax.f32 %v1014, 0.0
      %v1147 = vmax.f32 %v1017, 0.0
      %v1148 = vmax.f32 %v1022, 0.0
      %v1149 = vmax.f32 %v1025, 0.0
      %v1150 = vmax.f32 %v1030, 0.0
      %v1151 = vmax.f32 %v1033, 0.0
      %v1152 = vmax.f32 %v1038, 0.0
      %v1153 = vmax.f32 %v1041, 0.0
      %v1154 = vmax.f32 %v1046, 0.0
      %v1155 = vmax.f32 %v1049, 0.0
      %v1156 = vmax.f32 %v1054, 0.0
      %v1157 = vmax.f32 %v1057, 0.0
      %v1158 = vrot.slane %v1060, 1
      %v1159 = vrot.slane %v1061, 1
      %v1160 = vrot.slane %v1062, 1
      %v1161 = vrot.slane %v1063, 1
      %v1162 = vrot.slane %v1064, 1
      %v1163 = vrot.slane %v1065, 1
      %v1164 = vrot.slane %v1066, 1
      %v1165 = vrot.slane %v1067, 1
      %v1166 = vrot.slane %v1068, 1
      %v1167 = vrot.slane %v1069, 1
      %v1168 = vrot.slane %v1070, 1
      %v1169 = vrot.slane %v1071, 1
      %v1170 = vrot.slane %v1072, 1
      %v1171 = vrot.slane %v1073, 1
      %v1172 = vrot.slane %v1074, 1
      %v1173 = vrot.slane %v1075, 1
      %v1174 = vrot.slane %v1076, 1
      %v1175 = vrot.slane %v1077, 1
      %v1176 = vrot.slane %v1078, 1
      %v1177 = vrot.slane %v1079, 1
      %v1178 = vrot.slane %v1080, 1
      %v1179 = vrot.slane %v1081, 1
      %v1180 = vrot.slane %v1082, 1
      %v1181 = vrot.slane %v1083, 1
      %v1182 = vrot.slane %v1084, 1
      %v1183 = vrot.slane %v1085, 1
      %v1184 = vrot.slane %v1086, 1
      %v1185 = vrot.slane %v1087, 1
      %v1186 = vrot.slane %v1088, 1
      %v1187 = vrot.slane %v1089, 1
      %v1188 = vrot.slane %v1090, 1
      %v1189 = vrot.slane %v1091, 1
      %v1190 = vrot.slane %v1092, 1
      %v1191 = vrot.slane %v1093, 1
      %v1192 = vrot.slane %v1094, 1
      %v1193 = vrot.slane %v1095, 1
      %v1194 = vrot.slane %v1096, 1
      %v1195 = vrot.slane %v1097, 1
      %v1196 = vrot.slane %v1098, 1
      %v1197 = vrot.slane %v1099, 1
      %v1198 = vrot.slane %v1100, 1
      %v1199 = vrot.slane %v1101, 1
      %v1200 = vrot.slane %v1102, 1
      %v1201 = vrot.slane %v1103, 1
      %v1202 = vrot.slane %v1104, 1
      %v1203 = vrot.slane %v1105, 1
      %v1204 = vrot.slane %v1106, 1
      %v1205 = vrot.slane %v1107, 1
      %v1206 = vrot.slane %v1108, 1
      %v1207 = vrot.slane %v1109, 1
      %v1208 = vrot.slane %v1110, 1
      %v1209 = vrot.slane %v1111, 1
      %v1210 = vrot.slane %v1112, 1
      %v1211 = vrot.slane %v1113, 1
      %v1212 = vrot.slane %v1114, 1
      %v1213 = vrot.slane %v1115, 1
      %v1214 = vrot.slane %v1116, 1
      %v1215 = vrot.slane %v1117, 1
      %v1216 = vrot.slane %v1118, 1
      %v1217 = vrot.slane %v1119, 1
      %v1218 = vrot.slane %v1120, 1
      %v1219 = vrot.slane %v1121, 1
      %v1220 = vrot.slane %v1122, 1
      %v1221 = vrot.slane %v1123, 1
      %v1222 = vrot.slane %v1124, 1
      %v1223 = vrot.slane %v1125, 1
      %v1224 = vrot.slane %v1126, 1
      %v1225 = vrot.slane %v1127, 1
      %v1226 = vrot.slane %v1128, 1
      %v1227 = vrot.slane %v1129, 1
      %v1228 = vrot.slane %v1130, 1
      %v1229 = vrot.slane %v1131, 1
      %v1230 = vrot.slane %v1132, 1
      %v1231 = vrot.slane %v1133, 1
      %v1232 = vrot.slane %v1134, 1
      %v1233 = vrot.slane %v1135, 1
      %v1234 = vrot.slane %v1136, 1
      %v1235 = vrot.slane %v1137, 1
      %v1236 = vrot.slane %v1138, 1
      %v1237 = vrot.slane %v1139, 1
      %v1238 = vrot.slane %v1140, 1
      %v1239 = vrot.slane %v1141, 1
      %v1240 = vrot.slane %v1142, 1
      %v1241 = vrot.slane %v1143, 1
      %v1242 = vrot.slane %v1144, 1
      %v1243 = vrot.slane %v1145, 1
      %v1244 = vrot.slane %v1146, 1
      %v1245 = vrot.slane %v1147, 1
      %v1246 = vrot.slane %v1148, 1
      %v1247 = vrot.slane %v1149, 1
      %v1248 = vrot.slane %v1150, 1
      %v1249 = vrot.slane %v1151, 1
      %v1250 = vrot.slane %v1152, 1
      %v1251 = vrot.slane %v1153, 1
      %v1252 = vrot.slane %v1154, 1
      %v1253 = vrot.slane %v1155, 1
      %v1254 = vrot.slane %v1156, 1
      %v1255 = vrot.slane %v1157, 1
      %v1256 = vlaneseq
      %v1257 = vshrl.u32 %v1256, 7
      %vm1258 = vcmp.lt.s32.totalorder %v1257, 7
      %v1259 = vsel %vm1258, %v1254, %v1255
      %v1260 = vsel %vm1258, %v1253, %v1254
      %v1261 = vsel %vm1258, %v1252, %v1253
      %v1262 = vsel %vm1258, %v1251, %v1252
      %v1263 = vsel %vm1258, %v1250, %v1251
      %v1264 = vsel %vm1258, %v1249, %v1250
      %v1265 = vsel %vm1258, %v1248, %v1249
      %v1266 = vsel %vm1258, %v1247, %v1248
      %v1267 = vsel %vm1258, %v1246, %v1247
      %v1268 = vsel %vm1258, %v1245, %v1246
      %v1269 = vsel %vm1258, %v1244, %v1245
      %v1270 = vsel %vm1258, %v1243, %v1244
      %v1271 = vsel %vm1258, %v1242, %v1243
      %v1272 = vsel %vm1258, %v1241, %v1242
      %v1273 = vsel %vm1258, %v1240, %v1241
      %v1274 = vsel %vm1258, %v1239, %v1240
      %v1275 = vsel %vm1258, %v1238, %v1239
      %v1276 = vsel %vm1258, %v1237, %v1238
      %v1277 = vsel %vm1258, %v1236, %v1237
      %v1278 = vsel %vm1258, %v1235, %v1236
      %v1279 = vsel %vm1258, %v1234, %v1235
      %v1280 = vsel %vm1258, %v1233, %v1234
      %v1281 = vsel %vm1258, %v1232, %v1233
      %v1282 = vsel %vm1258, %v1231, %v1232
      %v1283 = vsel %vm1258, %v1230, %v1231
      %v1284 = vsel %vm1258, %v1229, %v1230
      %v1285 = vsel %vm1258, %v1228, %v1229
      %v1286 = vsel %vm1258, %v1227, %v1228
      %v1287 = vsel %vm1258, %v1226, %v1227
      %v1288 = vsel %vm1258, %v1225, %v1226
      %v1289 = vsel %vm1258, %v1224, %v1225
      %v1290 = vsel %vm1258, %v1223, %v1224
      %v1291 = vsel %vm1258, %v1222, %v1223
      %v1292 = vsel %vm1258, %v1221, %v1222
      %v1293 = vsel %vm1258, %v1220, %v1221
      %v1294 = vsel %vm1258, %v1219, %v1220
      %v1295 = vsel %vm1258, %v1218, %v1219
      %v1296 = vsel %vm1258, %v1217, %v1218
      %v1297 = vsel %vm1258, %v1216, %v1217
      %v1298 = vsel %vm1258, %v1215, %v1216
      %v1299 = vsel %vm1258, %v1214, %v1215
      %v1300 = vsel %vm1258, %v1213, %v1214
      %v1301 = vsel %vm1258, %v1212, %v1213
      %v1302 = vsel %vm1258, %v1211, %v1212
      %v1303 = vsel %vm1258, %v1210, %v1211
      %v1304 = vsel %vm1258, %v1209, %v1210
      %v1305 = vsel %vm1258, %v1208, %v1209
      %v1306 = vsel %vm1258, %v1207, %v1208
      %v1307 = vsel %vm1258, %v1206, %v1207
      %v1308 = vsel %vm1258, %v1205, %v1206
      %v1309 = vsel %vm1258, %v1204, %v1205
      %v1310 = vsel %vm1258, %v1203, %v1204
      %v1311 = vsel %vm1258, %v1202, %v1203
      %v1312 = vsel %vm1258, %v1201, %v1202
      %v1313 = vsel %vm1258, %v1200, %v1201
      %v1314 = vsel %vm1258, %v1199, %v1200
      %v1315 = vsel %vm1258, %v1198, %v1199
      %v1316 = vsel %vm1258, %v1197, %v1198
      %v1317 = vsel %vm1258, %v1196, %v1197
      %v1318 = vsel %vm1258, %v1195, %v1196
      %v1319 = vsel %vm1258, %v1194, %v1195
      %v1320 = vsel %vm1258, %v1193, %v1194
      %v1321 = vsel %vm1258, %v1192, %v1193
      %v1322 = vsel %vm1258, %v1191, %v1192
      %v1323 = vsel %vm1258, %v1190, %v1191
      %v1324 = vsel %vm1258, %v1189, %v1190
      %v1325 = vsel %vm1258, %v1188, %v1189
      %v1326 = vsel %vm1258, %v1187, %v1188
      %v1327 = vsel %vm1258, %v1186, %v1187
      %v1328 = vsel %vm1258, %v1185, %v1186
      %v1329 = vsel %vm1258, %v1184, %v1185
      %v1330 = vsel %vm1258, %v1183, %v1184
      %v1331 = vsel %vm1258, %v1182, %v1183
      %v1332 = vsel %vm1258, %v1181, %v1182
      %v1333 = vsel %vm1258, %v1180, %v1181
      %v1334 = vsel %vm1258, %v1179, %v1180
      %v1335 = vsel %vm1258, %v1178, %v1179
      %v1336 = vsel %vm1258, %v1177, %v1178
      %v1337 = vsel %vm1258, %v1176, %v1177
      %v1338 = vsel %vm1258, %v1175, %v1176
      %v1339 = vsel %vm1258, %v1174, %v1175
      %v1340 = vsel %vm1258, %v1173, %v1174
      %v1341 = vsel %vm1258, %v1172, %v1173
      %v1342 = vsel %vm1258, %v1171, %v1172
      %v1343 = vsel %vm1258, %v1170, %v1171
      %v1344 = vsel %vm1258, %v1169, %v1170
      %v1345 = vsel %vm1258, %v1168, %v1169
      %v1346 = vsel %vm1258, %v1167, %v1168
      %v1347 = vsel %vm1258, %v1166, %v1167
      %v1348 = vsel %vm1258, %v1165, %v1166
      %v1349 = vsel %vm1258, %v1164, %v1165
      %v1350 = vsel %vm1258, %v1163, %v1164
      %v1351 = vsel %vm1258, %v1162, %v1163
      %v1352 = vsel %vm1258, %v1161, %v1162
      %v1353 = vsel %vm1258, %v1160, %v1161
      %v1354 = vsel %vm1258, %v1159, %v1160
      %v1355 = vsel %vm1258, %v1158, %v1159
      %v1356 = vsel %vm1258, %v1255, %v1158
      %v1357 = vmax.f32 %v1060, %v1355
      %v1358 = vmax.f32 %v1061, %v1354
      %v1359 = vmax.f32 %v1062, %v1353
      %v1360 = vmax.f32 %v1063, %v1352
      %v1361 = vmax.f32 %v1064, %v1351
      %v1362 = vmax.f32 %v1065, %v1350
      %v1363 = vmax.f32 %v1066, %v1349
      %v1364 = vmax.f32 %v1067, %v1348
      %v1365 = vmax.f32 %v1068, %v1347
      %v1366 = vmax.f32 %v1069, %v1346
      %v1367 = vmax.f32 %v1070, %v1345
      %v1368 = vmax.f32 %v1071, %v1344
      %v1369 = vmax.f32 %v1072, %v1343
      %v1370 = vmax.f32 %v1073, %v1342
      %v1371 = vmax.f32 %v1074, %v1341
      %v1372 = vmax.f32 %v1075, %v1340
      %v1373 = vmax.f32 %v1076, %v1339
      %v1374 = vmax.f32 %v1077, %v1338
      %v1375 = vmax.f32 %v1078, %v1337
      %v1376 = vmax.f32 %v1079, %v1336
      %v1377 = vmax.f32 %v1080, %v1335
      %v1378 = vmax.f32 %v1081, %v1334
      %v1379 = vmax.f32 %v1082, %v1333
      %v1380 = vmax.f32 %v1083, %v1332
      %v1381 = vmax.f32 %v1084, %v1331
      %v1382 = vmax.f32 %v1085, %v1330
      %v1383 = vmax.f32 %v1086, %v1329
      %v1384 = vmax.f32 %v1087, %v1328
      %v1385 = vmax.f32 %v1088, %v1327
      %v1386 = vmax.f32 %v1089, %v1326
      %v1387 = vmax.f32 %v1090, %v1325
      %v1388 = vmax.f32 %v1091, %v1324
      %v1389 = vmax.f32 %v1092, %v1323
      %v1390 = vmax.f32 %v1093, %v1322
      %v1391 = vmax.f32 %v1094, %v1321
      %v1392 = vmax.f32 %v1095, %v1320
      %v1393 = vmax.f32 %v1096, %v1319
      %v1394 = vmax.f32 %v1097, %v1318
      %v1395 = vmax.f32 %v1098, %v1317
      %v1396 = vmax.f32 %v1099, %v1316
      %v1397 = vmax.f32 %v1100, %v1315
      %v1398 = vmax.f32 %v1101, %v1314
      %v1399 = vmax.f32 %v1102, %v1313
      %v1400 = vmax.f32 %v1103, %v1312
      %v1401 = vmax.f32 %v1104, %v1311
      %v1402 = vmax.f32 %v1105, %v1310
      %v1403 = vmax.f32 %v1106, %v1309
      %v1404 = vmax.f32 %v1107, %v1308
      %v1405 = vmax.f32 %v1108, %v1307
      %v1406 = vmax.f32 %v1109, %v1306
      %v1407 = vmax.f32 %v1110, %v1305
      %v1408 = vmax.f32 %v1111, %v1304
      %v1409 = vmax.f32 %v1112, %v1303
      %v1410 = vmax.f32 %v1113, %v1302
      %v1411 = vmax.f32 %v1114, %v1301
      %v1412 = vmax.f32 %v1115, %v1300
      %v1413 = vmax.f32 %v1116, %v1299
      %v1414 = vmax.f32 %v1117, %v1298
      %v1415 = vmax.f32 %v1118, %v1297
      %v1416 = vmax.f32 %v1119, %v1296
      %v1417 = vmax.f32 %v1120, %v1295
      %v1418 = vmax.f32 %v1121, %v1294
      %v1419 = vmax.f32 %v1122, %v1293
      %v1420 = vmax.f32 %v1123, %v1292
      %v1421 = vmax.f32 %v1124, %v1291
      %v1422 = vmax.f32 %v1125, %v1290
      %v1423 = vmax.f32 %v1126, %v1289
      %v1424 = vmax.f32 %v1127, %v1288
      %v1425 = vmax.f32 %v1128, %v1287
      %v1426 = vmax.f32 %v1129, %v1286
      %v1427 = vmax.f32 %v1130, %v1285
      %v1428 = vmax.f32 %v1131, %v1284
      %v1429 = vmax.f32 %v1132, %v1283
      %v1430 = vmax.f32 %v1133, %v1282
      %v1431 = vmax.f32 %v1134, %v1281
      %v1432 = vmax.f32 %v1135, %v1280
      %v1433 = vmax.f32 %v1136, %v1279
      %v1434 = vmax.f32 %v1137, %v1278
      %v1435 = vmax.f32 %v1138, %v1277
      %v1436 = vmax.f32 %v1139, %v1276
      %v1437 = vmax.f32 %v1140, %v1275
      %v1438 = vmax.f32 %v1141, %v1274
      %v1439 = vmax.f32 %v1142, %v1273
      %v1440 = vmax.f32 %v1143, %v1272
      %v1441 = vmax.f32 %v1144, %v1271
      %v1442 = vmax.f32 %v1145, %v1270
      %v1443 = vmax.f32 %v1146, %v1269
      %v1444 = vmax.f32 %v1147, %v1268
      %v1445 = vmax.f32 %v1148, %v1267
      %v1446 = vmax.f32 %v1149, %v1266
      %v1447 = vmax.f32 %v1150, %v1265
      %v1448 = vmax.f32 %v1151, %v1264
      %v1449 = vmax.f32 %v1152, %v1263
      %v1450 = vmax.f32 %v1153, %v1262
      %v1451 = vmax.f32 %v1154, %v1261
      %v1452 = vmax.f32 %v1155, %v1260
      %v1453 = vmax.f32 %v1156, %v1259
      %v1454 = vmax.f32 %v1157, %v1356
      %v1455 = vrot.slane %v1357, 4
      %v1456 = vrot.slane %v1358, 4
      %v1457 = vrot.slane %v1359, 4
      %v1458 = vrot.slane %v1360, 4
      %v1459 = vrot.slane %v1361, 4
      %v1460 = vrot.slane %v1362, 4
      %v1461 = vrot.slane %v1363, 4
      %v1462 = vrot.slane %v1364, 4
      %v1463 = vrot.slane %v1365, 4
      %v1464 = vrot.slane %v1366, 4
      %v1465 = vrot.slane %v1367, 4
      %v1466 = vrot.slane %v1368, 4
      %v1467 = vrot.slane %v1369, 4
      %v1468 = vrot.slane %v1370, 4
      %v1469 = vrot.slane %v1371, 4
      %v1470 = vrot.slane %v1372, 4
      %v1471 = vrot.slane %v1373, 4
      %v1472 = vrot.slane %v1374, 4
      %v1473 = vrot.slane %v1375, 4
      %v1474 = vrot.slane %v1376, 4
      %v1475 = vrot.slane %v1377, 4
      %v1476 = vrot.slane %v1378, 4
      %v1477 = vrot.slane %v1379, 4
      %v1478 = vrot.slane %v1380, 4
      %v1479 = vrot.slane %v1381, 4
      %v1480 = vrot.slane %v1382, 4
      %v1481 = vrot.slane %v1383, 4
      %v1482 = vrot.slane %v1384, 4
      %v1483 = vrot.slane %v1385, 4
      %v1484 = vrot.slane %v1386, 4
      %v1485 = vrot.slane %v1387, 4
      %v1486 = vrot.slane %v1388, 4
      %v1487 = vrot.slane %v1389, 4
      %v1488 = vrot.slane %v1390, 4
      %v1489 = vrot.slane %v1391, 4
      %v1490 = vrot.slane %v1392, 4
      %v1491 = vrot.slane %v1393, 4
      %v1492 = vrot.slane %v1394, 4
      %v1493 = vrot.slane %v1395, 4
      %v1494 = vrot.slane %v1396, 4
      %v1495 = vrot.slane %v1397, 4
      %v1496 = vrot.slane %v1398, 4
      %v1497 = vrot.slane %v1399, 4
      %v1498 = vrot.slane %v1400, 4
      %v1499 = vrot.slane %v1401, 4
      %v1500 = vrot.slane %v1402, 4
      %v1501 = vrot.slane %v1403, 4
      %v1502 = vrot.slane %v1404, 4
      %v1503 = vrot.slane %v1405, 4
      %v1504 = vrot.slane %v1406, 4
      %v1505 = vrot.slane %v1407, 4
      %v1506 = vrot.slane %v1408, 4
      %v1507 = vrot.slane %v1409, 4
      %v1508 = vrot.slane %v1410, 4
      %v1509 = vrot.slane %v1411, 4
      %v1510 = vrot.slane %v1412, 4
      %v1511 = vrot.slane %v1413, 4
      %v1512 = vrot.slane %v1414, 4
      %v1513 = vrot.slane %v1415, 4
      %v1514 = vrot.slane %v1416, 4
      %v1515 = vrot.slane %v1417, 4
      %v1516 = vrot.slane %v1418, 4
      %v1517 = vrot.slane %v1419, 4
      %v1518 = vrot.slane %v1420, 4
      %v1519 = vrot.slane %v1421, 4
      %v1520 = vrot.slane %v1422, 4
      %v1521 = vrot.slane %v1423, 4
      %v1522 = vrot.slane %v1424, 4
      %v1523 = vrot.slane %v1425, 4
      %v1524 = vrot.slane %v1426, 4
      %v1525 = vrot.slane %v1427, 4
      %v1526 = vrot.slane %v1428, 4
      %v1527 = vrot.slane %v1429, 4
      %v1528 = vrot.slane %v1430, 4
      %v1529 = vrot.slane %v1431, 4
      %v1530 = vrot.slane %v1432, 4
      %v1531 = vrot.slane %v1433, 4
      %v1532 = vrot.slane %v1434, 4
      %v1533 = vrot.slane %v1435, 4
      %v1534 = vrot.slane %v1436, 4
      %v1535 = vrot.slane %v1437, 4
      %v1536 = vrot.slane %v1438, 4
      %v1537 = vrot.slane %v1439, 4
      %v1538 = vrot.slane %v1440, 4
      %v1539 = vrot.slane %v1441, 4
      %v1540 = vrot.slane %v1442, 4
      %v1541 = vrot.slane %v1443, 4
      %v1542 = vrot.slane %v1444, 4
      %v1543 = vrot.slane %v1445, 4
      %v1544 = vrot.slane %v1446, 4
      %v1545 = vrot.slane %v1447, 4
      %v1546 = vrot.slane %v1448, 4
      %v1547 = vrot.slane %v1449, 4
      %v1548 = vrot.slane %v1450, 4
      %v1549 = vrot.slane %v1451, 4
      %v1550 = vrot.slane %v1452, 4
      %v1551 = vrot.slane %v1453, 4
      %v1552 = vrot.slane %v1454, 4
      %vm1553 = vcmp.lt.s32.totalorder %v1257, 4
      %v1554 = vsel %vm1553, %v1551, %v1552
      %v1555 = vsel %vm1553, %v1550, %v1551
      %v1556 = vsel %vm1553, %v1549, %v1550
      %v1557 = vsel %vm1553, %v1548, %v1549
      %v1558 = vsel %vm1553, %v1547, %v1548
      %v1559 = vsel %vm1553, %v1546, %v1547
      %v1560 = vsel %vm1553, %v1545, %v1546
      %v1561 = vsel %vm1553, %v1544, %v1545
      %v1562 = vsel %vm1553, %v1543, %v1544
      %v1563 = vsel %vm1553, %v1542, %v1543
      %v1564 = vsel %vm1553, %v1541, %v1542
      %v1565 = vsel %vm1553, %v1540, %v1541
      %v1566 = vsel %vm1553, %v1539, %v1540
      %v1567 = vsel %vm1553, %v1538, %v1539
      %v1568 = vsel %vm1553, %v1537, %v1538
      %v1569 = vsel %vm1553, %v1536, %v1537
      %v1570 = vsel %vm1553, %v1535, %v1536
      %v1571 = vsel %vm1553, %v1534, %v1535
      %v1572 = vsel %vm1553, %v1533, %v1534
      %v1573 = vsel %vm1553, %v1532, %v1533
      %v1574 = vsel %vm1553, %v1531, %v1532
      %v1575 = vsel %vm1553, %v1530, %v1531
      %v1576 = vsel %vm1553, %v1529, %v1530
      %v1577 = vsel %vm1553, %v1528, %v1529
      %v1578 = vsel %vm1553, %v1527, %v1528
      %v1579 = vsel %vm1553, %v1526, %v1527
      %v1580 = vsel %vm1553, %v1525, %v1526
      %v1581 = vsel %vm1553, %v1524, %v1525
      %v1582 = vsel %vm1553, %v1523, %v1524
      %v1583 = vsel %vm1553, %v1522, %v1523
      %v1584 = vsel %vm1553, %v1521, %v1522
      %v1585 = vsel %vm1553, %v1520, %v1521
      %v1586 = vsel %vm1553, %v1519, %v1520
      %v1587 = vsel %vm1553, %v1518, %v1519
      %v1588 = vsel %vm1553, %v1517, %v1518
      %v1589 = vsel %vm1553, %v1516, %v1517
      %v1590 = vsel %vm1553, %v1515, %v1516
      %v1591 = vsel %vm1553, %v1514, %v1515
      %v1592 = vsel %vm1553, %v1513, %v1514
      %v1593 = vsel %vm1553, %v1512, %v1513
      %v1594 = vsel %vm1553, %v1511, %v1512
      %v1595 = vsel %vm1553, %v1510, %v1511
      %v1596 = vsel %vm1553, %v1509, %v1510
      %v1597 = vsel %vm1553, %v1508, %v1509
      %v1598 = vsel %vm1553, %v1507, %v1508
      %v1599 = vsel %vm1553, %v1506, %v1507
      %v1600 = vsel %vm1553, %v1505, %v1506
      %v1601 = vsel %vm1553, %v1504, %v1505
      %v1602 = vsel %vm1553, %v1503, %v1504
      %v1603 = vsel %vm1553, %v1502, %v1503
      %v1604 = vsel %vm1553, %v1501, %v1502
      %v1605 = vsel %vm1553, %v1500, %v1501
      %v1606 = vsel %vm1553, %v1499, %v1500
      %v1607 = vsel %vm1553, %v1498, %v1499
      %v1608 = vsel %vm1553, %v1497, %v1498
      %v1609 = vsel %vm1553, %v1496, %v1497
      %v1610 = vsel %vm1553, %v1495, %v1496
      %v1611 = vsel %vm1553, %v1494, %v1495
      %v1612 = vsel %vm1553, %v1493, %v1494
      %v1613 = vsel %vm1553, %v1492, %v1493
      %v1614 = vsel %vm1553, %v1491, %v1492
      %v1615 = vsel %vm1553, %v1490, %v1491
      %v1616 = vsel %vm1553, %v1489, %v1490
      %v1617 = vsel %vm1553, %v1488, %v1489
      %v1618 = vsel %vm1553, %v1487, %v1488
      %v1619 = vsel %vm1553, %v1486, %v1487
      %v1620 = vsel %vm1553, %v1485, %v1486
      %v1621 = vsel %vm1553, %v1484, %v1485
      %v1622 = vsel %vm1553, %v1483, %v1484
      %v1623 = vsel %vm1553, %v1482, %v1483
      %v1624 = vsel %vm1553, %v1481, %v1482
      %v1625 = vsel %vm1553, %v1480, %v1481
      %v1626 = vsel %vm1553, %v1479, %v1480
      %v1627 = vsel %vm1553, %v1478, %v1479
      %v1628 = vsel %vm1553, %v1477, %v1478
      %v1629 = vsel %vm1553, %v1476, %v1477
      %v1630 = vsel %vm1553, %v1475, %v1476
      %v1631 = vsel %vm1553, %v1474, %v1475
      %v1632 = vsel %vm1553, %v1473, %v1474
      %v1633 = vsel %vm1553, %v1472, %v1473
      %v1634 = vsel %vm1553, %v1471, %v1472
      %v1635 = vsel %vm1553, %v1470, %v1471
      %v1636 = vsel %vm1553, %v1469, %v1470
      %v1637 = vsel %vm1553, %v1468, %v1469
      %v1638 = vsel %vm1553, %v1467, %v1468
      %v1639 = vsel %vm1553, %v1466, %v1467
      %v1640 = vsel %vm1553, %v1465, %v1466
      %v1641 = vsel %vm1553, %v1464, %v1465
      %v1642 = vsel %vm1553, %v1463, %v1464
      %v1643 = vsel %vm1553, %v1462, %v1463
      %v1644 = vsel %vm1553, %v1461, %v1462
      %v1645 = vsel %vm1553, %v1460, %v1461
      %v1646 = vsel %vm1553, %v1459, %v1460
      %v1647 = vsel %vm1553, %v1458, %v1459
      %v1648 = vsel %vm1553, %v1457, %v1458
      %v1649 = vsel %vm1553, %v1456, %v1457
      %v1650 = vsel %vm1553, %v1455, %v1456
      %v1651 = vsel %vm1553, %v1552, %v1455
      %v1652 = vmax.f32 %v1357, %v1647
      %v1653 = vmax.f32 %v1358, %v1646
      %v1654 = vmax.f32 %v1359, %v1645
      %v1655 = vmax.f32 %v1360, %v1644
      %v1656 = vmax.f32 %v1361, %v1643
      %v1657 = vmax.f32 %v1362, %v1642
      %v1658 = vmax.f32 %v1363, %v1641
      %v1659 = vmax.f32 %v1364, %v1640
      %v1660 = vmax.f32 %v1365, %v1639
      %v1661 = vmax.f32 %v1366, %v1638
      %v1662 = vmax.f32 %v1367, %v1637
      %v1663 = vmax.f32 %v1368, %v1636
      %v1664 = vmax.f32 %v1369, %v1635
      %v1665 = vmax.f32 %v1370, %v1634
      %v1666 = vmax.f32 %v1371, %v1633
      %v1667 = vmax.f32 %v1372, %v1632
      %v1668 = vmax.f32 %v1373, %v1631
      %v1669 = vmax.f32 %v1374, %v1630
      %v1670 = vmax.f32 %v1375, %v1629
      %v1671 = vmax.f32 %v1376, %v1628
      %v1672 = vmax.f32 %v1377, %v1627
      %v1673 = vmax.f32 %v1378, %v1626
      %v1674 = vmax.f32 %v1379, %v1625
      %v1675 = vmax.f32 %v1380, %v1624
      %v1676 = vmax.f32 %v1381, %v1623
      %v1677 = vmax.f32 %v1382, %v1622
      %v1678 = vmax.f32 %v1383, %v1621
      %v1679 = vmax.f32 %v1384, %v1620
      %v1680 = vmax.f32 %v1385, %v1619
      %v1681 = vmax.f32 %v1386, %v1618
      %v1682 = vmax.f32 %v1387, %v1617
      %v1683 = vmax.f32 %v1388, %v1616
      %v1684 = vmax.f32 %v1389, %v1615
      %v1685 = vmax.f32 %v1390, %v1614
      %v1686 = vmax.f32 %v1391, %v1613
      %v1687 = vmax.f32 %v1392, %v1612
      %v1688 = vmax.f32 %v1393, %v1611
      %v1689 = vmax.f32 %v1394, %v1610
      %v1690 = vmax.f32 %v1395, %v1609
      %v1691 = vmax.f32 %v1396, %v1608
      %v1692 = vmax.f32 %v1397, %v1607
      %v1693 = vmax.f32 %v1398, %v1606
      %v1694 = vmax.f32 %v1399, %v1605
      %v1695 = vmax.f32 %v1400, %v1604
      %v1696 = vmax.f32 %v1401, %v1603
      %v1697 = vmax.f32 %v1402, %v1602
      %v1698 = vmax.f32 %v1403, %v1601
      %v1699 = vmax.f32 %v1404, %v1600
      %v1700 = vmax.f32 %v1405, %v1599
      %v1701 = vmax.f32 %v1406, %v1598
      %v1702 = vmax.f32 %v1407, %v1597
      %v1703 = vmax.f32 %v1408, %v1596
      %v1704 = vmax.f32 %v1409, %v1595
      %v1705 = vmax.f32 %v1410, %v1594
      %v1706 = vmax.f32 %v1411, %v1593
      %v1707 = vmax.f32 %v1412, %v1592
      %v1708 = vmax.f32 %v1413, %v1591
      %v1709 = vmax.f32 %v1414, %v1590
      %v1710 = vmax.f32 %v1415, %v1589
      %v1711 = vmax.f32 %v1416, %v1588
      %v1712 = vmax.f32 %v1417, %v1587
      %v1713 = vmax.f32 %v1418, %v1586
      %v1714 = vmax.f32 %v1419, %v1585
      %v1715 = vmax.f32 %v1420, %v1584
      %v1716 = vmax.f32 %v1421, %v1583
      %v1717 = vmax.f32 %v1422, %v1582
      %v1718 = vmax.f32 %v1423, %v1581
      %v1719 = vmax.f32 %v1424, %v1580
      %v1720 = vmax.f32 %v1425, %v1579
      %v1721 = vmax.f32 %v1426, %v1578
      %v1722 = vmax.f32 %v1427, %v1577
      %v1723 = vmax.f32 %v1428, %v1576
      %v1724 = vmax.f32 %v1429, %v1575
      %v1725 = vmax.f32 %v1430, %v1574
      %v1726 = vmax.f32 %v1431, %v1573
      %v1727 = vmax.f32 %v1432, %v1572
      %v1728 = vmax.f32 %v1433, %v1571
      %v1729 = vmax.f32 %v1434, %v1570
      %v1730 = vmax.f32 %v1435, %v1569
      %v1731 = vmax.f32 %v1436, %v1568
      %v1732 = vmax.f32 %v1437, %v1567
      %v1733 = vmax.f32 %v1438, %v1566
      %v1734 = vmax.f32 %v1439, %v1565
      %v1735 = vmax.f32 %v1440, %v1564
      %v1736 = vmax.f32 %v1441, %v1563
      %v1737 = vmax.f32 %v1442, %v1562
      %v1738 = vmax.f32 %v1443, %v1561
      %v1739 = vmax.f32 %v1444, %v1560
      %v1740 = vmax.f32 %v1445, %v1559
      %v1741 = vmax.f32 %v1446, %v1558
      %v1742 = vmax.f32 %v1447, %v1557
      %v1743 = vmax.f32 %v1448, %v1556
      %v1744 = vmax.f32 %v1449, %v1555
      %v1745 = vmax.f32 %v1450, %v1554
      %v1746 = vmax.f32 %v1451, %v1651
      %v1747 = vmax.f32 %v1452, %v1650
      %v1748 = vmax.f32 %v1453, %v1649
      %v1749 = vmax.f32 %v1454, %v1648
      %v1750 = vpack.c.bf16 %v1653, %v1652
      %v1751 = vpack.c.bf16 %v1655, %v1654
      %v1752 = vpack.c.bf16 %v1657, %v1656
      %v1753 = vpack.c.bf16 %v1659, %v1658
      %v1754 = vpack.c.bf16 %v1661, %v1660
      %v1755 = vpack.c.bf16 %v1663, %v1662
      %v1756 = vpack.c.bf16 %v1665, %v1664
      %v1757 = vpack.c.bf16 %v1667, %v1666
      %v1758 = vpack.c.bf16 %v1669, %v1668
      %v1759 = vpack.c.bf16 %v1671, %v1670
      %v1760 = vpack.c.bf16 %v1673, %v1672
      %v1761 = vpack.c.bf16 %v1675, %v1674
      %v1762 = vpack.c.bf16 %v1677, %v1676
      %v1763 = vpack.c.bf16 %v1679, %v1678
      %v1764 = vpack.c.bf16 %v1681, %v1680
      %v1765 = vpack.c.bf16 %v1683, %v1682
      %v1766 = vpack.c.bf16 %v1685, %v1684
      %v1767 = vpack.c.bf16 %v1687, %v1686
      %v1768 = vpack.c.bf16 %v1689, %v1688
      %v1769 = vpack.c.bf16 %v1691, %v1690
      %v1770 = vpack.c.bf16 %v1693, %v1692
      %v1771 = vpack.c.bf16 %v1695, %v1694
      %v1772 = vpack.c.bf16 %v1697, %v1696
      %v1773 = vpack.c.bf16 %v1699, %v1698
      %v1774 = vpack.c.bf16 %v1701, %v1700
      %v1775 = vpack.c.bf16 %v1703, %v1702
      %v1776 = vpack.c.bf16 %v1705, %v1704
      %v1777 = vpack.c.bf16 %v1707, %v1706
      %v1778 = vpack.c.bf16 %v1709, %v1708
      %v1779 = vpack.c.bf16 %v1711, %v1710
      %v1780 = vpack.c.bf16 %v1713, %v1712
      %v1781 = vpack.c.bf16 %v1715, %v1714
      %v1782 = vpack.c.bf16 %v1717, %v1716
      %v1783 = vpack.c.bf16 %v1719, %v1718
      %v1784 = vpack.c.bf16 %v1721, %v1720
      %v1785 = vpack.c.bf16 %v1723, %v1722
      %v1786 = vpack.c.bf16 %v1725, %v1724
      %v1787 = vpack.c.bf16 %v1727, %v1726
      %v1788 = vpack.c.bf16 %v1729, %v1728
      %v1789 = vpack.c.bf16 %v1731, %v1730
      %v1790 = vpack.c.bf16 %v1733, %v1732
      %v1791 = vpack.c.bf16 %v1735, %v1734
      %v1792 = vpack.c.bf16 %v1737, %v1736
      %v1793 = vpack.c.bf16 %v1739, %v1738
      %v1794 = vpack.c.bf16 %v1741, %v1740
      %v1795 = vpack.c.bf16 %v1743, %v1742
      %v1796 = vpack.c.bf16 %v1745, %v1744
      %v1797 = vpack.c.bf16 %v1747, %v1746
      %v1798 = vpack.c.bf16 %v1749, %v1748
      %v1848 = vunpack.c.l.b16 %v1750
      %v1849 = vunpack.c.h.b16 %v1750
      %v1850 = vunpack.c.l.b16 %v1751
      %v1851 = vunpack.c.h.b16 %v1751
      %v1852 = vunpack.c.l.b16 %v1752
      %v1853 = vunpack.c.h.b16 %v1752
      %v1854 = vunpack.c.l.b16 %v1753
      %v1855 = vunpack.c.h.b16 %v1753
      %v1856 = vunpack.c.l.b16 %v1754
      %v1857 = vunpack.c.h.b16 %v1754
      %v1858 = vunpack.c.l.b16 %v1755
      %v1859 = vunpack.c.h.b16 %v1755
      %v1860 = vunpack.c.l.b16 %v1756
      %v1861 = vunpack.c.h.b16 %v1756
      %v1862 = vunpack.c.l.b16 %v1757
      %v1863 = vunpack.c.h.b16 %v1757
      %v1864 = vunpack.c.l.b16 %v1758
      %v1865 = vunpack.c.h.b16 %v1758
      %v1866 = vunpack.c.l.b16 %v1759
      %v1867 = vunpack.c.h.b16 %v1759
      %v1868 = vunpack.c.l.b16 %v1760
      %v1869 = vunpack.c.h.b16 %v1760
      %v1870 = vunpack.c.l.b16 %v1761
      %v1871 = vunpack.c.h.b16 %v1761
      %v1872 = vunpack.c.l.b16 %v1762
      %v1873 = vunpack.c.h.b16 %v1762
      %v1874 = vunpack.c.l.b16 %v1763
      %v1875 = vunpack.c.h.b16 %v1763
      %v1876 = vunpack.c.l.b16 %v1764
      %v1877 = vunpack.c.h.b16 %v1764
      %v1878 = vunpack.c.l.b16 %v1765
      %v1879 = vunpack.c.h.b16 %v1765
      %v1880 = vunpack.c.l.b16 %v1766
      %v1881 = vunpack.c.h.b16 %v1766
      %v1882 = vunpack.c.l.b16 %v1767
      %v1883 = vunpack.c.h.b16 %v1767
      %v1884 = vunpack.c.l.b16 %v1768
      %v1885 = vunpack.c.h.b16 %v1768
      %v1886 = vunpack.c.l.b16 %v1769
      %v1887 = vunpack.c.h.b16 %v1769
      %v1888 = vunpack.c.l.b16 %v1770
      %v1889 = vunpack.c.h.b16 %v1770
      %v1890 = vunpack.c.l.b16 %v1771
      %v1891 = vunpack.c.h.b16 %v1771
      %v1892 = vunpack.c.l.b16 %v1772
      %v1893 = vunpack.c.h.b16 %v1772
      %v1894 = vunpack.c.l.b16 %v1773
      %v1895 = vunpack.c.h.b16 %v1773
      %v1896 = vunpack.c.l.b16 %v1774
      %v1897 = vunpack.c.h.b16 %v1774
      %v1898 = vunpack.c.l.b16 %v1775
      %v1899 = vunpack.c.h.b16 %v1775
      %v1900 = vunpack.c.l.b16 %v1776
      %v1901 = vunpack.c.h.b16 %v1776
      %v1902 = vunpack.c.l.b16 %v1777
      %v1903 = vunpack.c.h.b16 %v1777
      %v1904 = vunpack.c.l.b16 %v1778
      %v1905 = vunpack.c.h.b16 %v1778
      %v1906 = vunpack.c.l.b16 %v1779
      %v1907 = vunpack.c.h.b16 %v1779
      %v1908 = vunpack.c.l.b16 %v1780
      %v1909 = vunpack.c.h.b16 %v1780
      %v1910 = vunpack.c.l.b16 %v1781
      %v1911 = vunpack.c.h.b16 %v1781
      %v1912 = vunpack.c.l.b16 %v1782
      %v1913 = vunpack.c.h.b16 %v1782
      %v1914 = vunpack.c.l.b16 %v1783
      %v1915 = vunpack.c.h.b16 %v1783
      %v1916 = vunpack.c.l.b16 %v1784
      %v1917 = vunpack.c.h.b16 %v1784
      %v1918 = vunpack.c.l.b16 %v1785
      %v1919 = vunpack.c.h.b16 %v1785
      %v1920 = vunpack.c.l.b16 %v1786
      %v1921 = vunpack.c.h.b16 %v1786
      %v1922 = vunpack.c.l.b16 %v1787
      %v1923 = vunpack.c.h.b16 %v1787
      %v1924 = vunpack.c.l.b16 %v1788
      %v1925 = vunpack.c.h.b16 %v1788
      %v1926 = vunpack.c.l.b16 %v1789
      %v1927 = vunpack.c.h.b16 %v1789
      %v1928 = vunpack.c.l.b16 %v1790
      %v1929 = vunpack.c.h.b16 %v1790
      %v1930 = vunpack.c.l.b16 %v1791
      %v1931 = vunpack.c.h.b16 %v1791
      %v1932 = vunpack.c.l.b16 %v1792
      %v1933 = vunpack.c.h.b16 %v1792
      %v1934 = vunpack.c.l.b16 %v1793
      %v1935 = vunpack.c.h.b16 %v1793
      %v1936 = vunpack.c.l.b16 %v1794
      %v1937 = vunpack.c.h.b16 %v1794
      %v1938 = vunpack.c.l.b16 %v1795
      %v1939 = vunpack.c.h.b16 %v1795
      %v1940 = vunpack.c.l.b16 %v1796
      %v1941 = vunpack.c.h.b16 %v1796
      %v1942 = vunpack.c.l.b16 %v1797
      %v1943 = vunpack.c.h.b16 %v1797
      %v1944 = vunpack.c.l.b16 %v1798
      %v1945 = vunpack.c.h.b16 %v1798
      %v1946 = vpack.c.b16 %v1848, %v1848
      %v1947 = vpack.c.b16 %v1849, %v1849
      %v1948 = vpack.c.b16 %v1850, %v1850
      %v1949 = vpack.c.b16 %v1851, %v1851
      %v1950 = vpack.c.b16 %v1852, %v1852
      %v1951 = vpack.c.b16 %v1853, %v1853
      %v1952 = vpack.c.b16 %v1854, %v1854
      %v1953 = vpack.c.b16 %v1855, %v1855
      %v1954 = vpack.c.b16 %v1856, %v1856
      %v1955 = vpack.c.b16 %v1857, %v1857
      %v1956 = vpack.c.b16 %v1858, %v1858
      %v1957 = vpack.c.b16 %v1859, %v1859
      %v1958 = vpack.c.b16 %v1860, %v1860
      %v1959 = vpack.c.b16 %v1861, %v1861
      %v1960 = vpack.c.b16 %v1862, %v1862
      %v1961 = vpack.c.b16 %v1863, %v1863
      %v1962 = vpack.c.b16 %v1864, %v1864
      %v1963 = vpack.c.b16 %v1865, %v1865
      %v1964 = vpack.c.b16 %v1866, %v1866
      %v1965 = vpack.c.b16 %v1867, %v1867
      %v1966 = vpack.c.b16 %v1868, %v1868
      %v1967 = vpack.c.b16 %v1869, %v1869
      %v1968 = vpack.c.b16 %v1870, %v1870
      %v1969 = vpack.c.b16 %v1871, %v1871
      %v1970 = vpack.c.b16 %v1872, %v1872
      %v1971 = vpack.c.b16 %v1873, %v1873
      %v1972 = vpack.c.b16 %v1874, %v1874
      %v1973 = vpack.c.b16 %v1875, %v1875
      %v1974 = vpack.c.b16 %v1876, %v1876
      %v1975 = vpack.c.b16 %v1877, %v1877
      %v1976 = vpack.c.b16 %v1878, %v1878
      %v1977 = vpack.c.b16 %v1879, %v1879
      %v1978 = vpack.c.b16 %v1880, %v1880
      %v1979 = vpack.c.b16 %v1881, %v1881
      %v1980 = vpack.c.b16 %v1882, %v1882
      %v1981 = vpack.c.b16 %v1883, %v1883
      %v1982 = vpack.c.b16 %v1884, %v1884
      %v1983 = vpack.c.b16 %v1885, %v1885
      %v1984 = vpack.c.b16 %v1886, %v1886
      %v1985 = vpack.c.b16 %v1887, %v1887
      %v1986 = vpack.c.b16 %v1888, %v1888
      %v1987 = vpack.c.b16 %v1889, %v1889
      %v1988 = vpack.c.b16 %v1890, %v1890
      %v1989 = vpack.c.b16 %v1891, %v1891
      %v1990 = vpack.c.b16 %v1892, %v1892
      %v1991 = vpack.c.b16 %v1893, %v1893
      %v1992 = vpack.c.b16 %v1894, %v1894
      %v1993 = vpack.c.b16 %v1895, %v1895
      %v1994 = vpack.c.b16 %v1896, %v1896
      %v1995 = vpack.c.b16 %v1897, %v1897
      %v1996 = vpack.c.b16 %v1898, %v1898
      %v1997 = vpack.c.b16 %v1899, %v1899
      %v1998 = vpack.c.b16 %v1900, %v1900
      %v1999 = vpack.c.b16 %v1901, %v1901
      %v2000 = vpack.c.b16 %v1902, %v1902
      %v2001 = vpack.c.b16 %v1903, %v1903
      %v2002 = vpack.c.b16 %v1904, %v1904
      %v2003 = vpack.c.b16 %v1905, %v1905
      %v2004 = vpack.c.b16 %v1906, %v1906
      %v2005 = vpack.c.b16 %v1907, %v1907
      %v2006 = vpack.c.b16 %v1908, %v1908
      %v2007 = vpack.c.b16 %v1909, %v1909
      %v2008 = vpack.c.b16 %v1910, %v1910
      %v2009 = vpack.c.b16 %v1911, %v1911
      %v2010 = vpack.c.b16 %v1912, %v1912
      %v2011 = vpack.c.b16 %v1913, %v1913
      %v2012 = vpack.c.b16 %v1914, %v1914
      %v2013 = vpack.c.b16 %v1915, %v1915
      %v2014 = vpack.c.b16 %v1916, %v1916
      %v2015 = vpack.c.b16 %v1917, %v1917
      %v2016 = vpack.c.b16 %v1918, %v1918
      %v2017 = vpack.c.b16 %v1919, %v1919
      %v2018 = vpack.c.b16 %v1920, %v1920
      %v2019 = vpack.c.b16 %v1921, %v1921
      %v2020 = vpack.c.b16 %v1922, %v1922
      %v2021 = vpack.c.b16 %v1923, %v1923
      %v2022 = vpack.c.b16 %v1924, %v1924
      %v2023 = vpack.c.b16 %v1925, %v1925
      %v2024 = vpack.c.b16 %v1926, %v1926
      %v2025 = vpack.c.b16 %v1927, %v1927
      %v2026 = vpack.c.b16 %v1928, %v1928
      %v2027 = vpack.c.b16 %v1929, %v1929
      %v2028 = vpack.c.b16 %v1930, %v1930
      %v2029 = vpack.c.b16 %v1931, %v1931
      %v2030 = vpack.c.b16 %v1932, %v1932
      %v2031 = vpack.c.b16 %v1933, %v1933
      %v2032 = vpack.c.b16 %v1934, %v1934
      %v2033 = vpack.c.b16 %v1935, %v1935
      %v2034 = vpack.c.b16 %v1936, %v1936
      %v2035 = vpack.c.b16 %v1937, %v1937
      %v2036 = vpack.c.b16 %v1938, %v1938
      %v2037 = vpack.c.b16 %v1939, %v1939
      %v2038 = vpack.c.b16 %v1940, %v1940
      %v2039 = vpack.c.b16 %v1941, %v1941
      %v2040 = vpack.c.b16 %v1942, %v1942
      %v2041 = vpack.c.b16 %v1943, %v1943
      %v2042 = vpack.c.b16 %v1944, %v1944
      %v2043 = vpack.c.b16 %v1945, %v1945
      %2142 = vst [vmem:[%s170] sm:$0xf] %v1946
      %2143 = vst [vmem:[%s170 + $0x4] sm:$0xf] %v1947
      %2144 = vst [vmem:[%s170 + $0x8] sm:$0xf] %v1948
      %2145 = vst [vmem:[%s170 + $0xc] sm:$0xf] %v1949
      %2146 = vst [vmem:[%s170 + $0x10] sm:$0xf] %v1950
      %2147 = vst [vmem:[%s170 + $0x14] sm:$0xf] %v1951
      %2148 = vst [vmem:[%s170 + $0x18] sm:$0xf] %v1952
      %2149 = vst [vmem:[%s170 + $0x1c] sm:$0xf] %v1953
      %2150 = vst [vmem:[%s170 + $0x20] sm:$0xf] %v1954
      %2151 = vst [vmem:[%s170 + $0x24] sm:$0xf] %v1955
      %2152 = vst [vmem:[%s170 + $0x28] sm:$0xf] %v1956
      %2153 = vst [vmem:[%s170 + $0x2c] sm:$0xf] %v1957
      %2154 = vst [vmem:[%s170 + $0x30] sm:$0xf] %v1958
      %2155 = vst [vmem:[%s170 + $0x34] sm:$0xf] %v1959
      %2156 = vst [vmem:[%s170 + $0x38] sm:$0xf] %v1960
      %2157 = vst [vmem:[%s170 + $0x3c] sm:$0xf] %v1961
      %2158 = vst [vmem:[%s170 + $0x40] sm:$0xf] %v1962
      %2159 = vst [vmem:[%s170 + $0x44] sm:$0xf] %v1963
      %2160 = vst [vmem:[%s170 + $0x48] sm:$0xf] %v1964
      %2161 = vst [vmem:[%s170 + $0x4c] sm:$0xf] %v1965
      %2162 = vst [vmem:[%s170 + $0x50] sm:$0xf] %v1966
      %2163 = vst [vmem:[%s170 + $0x54] sm:$0xf] %v1967
      %2164 = vst [vmem:[%s170 + $0x58] sm:$0xf] %v1968
      %2165 = vst [vmem:[%s170 + $0x5c] sm:$0xf] %v1969
      %2166 = vst [vmem:[%s170 + $0x60] sm:$0xf] %v1970
      %2167 = vst [vmem:[%s170 + $0x64] sm:$0xf] %v1971
      %2168 = vst [vmem:[%s170 + $0x68] sm:$0xf] %v1972
      %2169 = vst [vmem:[%s170 + $0x6c] sm:$0xf] %v1973
      %2170 = vst [vmem:[%s170 + $0x70] sm:$0xf] %v1974
      %2171 = vst [vmem:[%s170 + $0x74] sm:$0xf] %v1975
      %2172 = vst [vmem:[%s170 + $0x78] sm:$0xf] %v1976
      %2173 = vst [vmem:[%s170 + $0x7c] sm:$0xf] %v1977
      %2174 = vst [vmem:[%s170 + $0x80] sm:$0xf] %v1978
      %2175 = vst [vmem:[%s170 + $0x84] sm:$0xf] %v1979
      %2176 = vst [vmem:[%s170 + $0x88] sm:$0xf] %v1980
      %2177 = vst [vmem:[%s170 + $0x8c] sm:$0xf] %v1981
      %2178 = vst [vmem:[%s170 + $0x90] sm:$0xf] %v1982
      %2179 = vst [vmem:[%s170 + $0x94] sm:$0xf] %v1983
      %2180 = vst [vmem:[%s170 + $0x98] sm:$0xf] %v1984
      %2181 = vst [vmem:[%s170 + $0x9c] sm:$0xf] %v1985
      %2182 = vst [vmem:[%s170 + $0xa0] sm:$0xf] %v1986
      %2183 = vst [vmem:[%s170 + $0xa4] sm:$0xf] %v1987
      %2184 = vst [vmem:[%s170 + $0xa8] sm:$0xf] %v1988
      %2185 = vst [vmem:[%s170 + $0xac] sm:$0xf] %v1989
      %2186 = vst [vmem:[%s170 + $0xb0] sm:$0xf] %v1990
      %2187 = vst [vmem:[%s170 + $0xb4] sm:$0xf] %v1991
      %2188 = vst [vmem:[%s170 + $0xb8] sm:$0xf] %v1992
      %2189 = vst [vmem:[%s170 + $0xbc] sm:$0xf] %v1993
      %2190 = vst [vmem:[%s170 + $0xc0] sm:$0xf] %v1994
      %2191 = vst [vmem:[%s170 + $0xc4] sm:$0xf] %v1995
      %2192 = vst [vmem:[%s170 + $0xc8] sm:$0xf] %v1996
      %2193 = vst [vmem:[%s170 + $0xcc] sm:$0xf] %v1997
      %2194 = vst [vmem:[%s170 + $0xd0] sm:$0xf] %v1998
      %2195 = vst [vmem:[%s170 + $0xd4] sm:$0xf] %v1999
      %2196 = vst [vmem:[%s170 + $0xd8] sm:$0xf] %v2000
      %2197 = vst [vmem:[%s170 + $0xdc] sm:$0xf] %v2001
      %2198 = vst [vmem:[%s170 + $0xe0] sm:$0xf] %v2002
      %2199 = vst [vmem:[%s170 + $0xe4] sm:$0xf] %v2003
      %2200 = vst [vmem:[%s170 + $0xe8] sm:$0xf] %v2004
      %2201 = vst [vmem:[%s170 + $0xec] sm:$0xf] %v2005
      %2202 = vst [vmem:[%s170 + $0xf0] sm:$0xf] %v2006
      %2203 = vst [vmem:[%s170 + $0xf4] sm:$0xf] %v2007
      %2204 = vst [vmem:[%s170 + $0xf8] sm:$0xf] %v2008
      %2205 = vst [vmem:[%s170 + $0xfc] sm:$0xf] %v2009
      %2206 = vst [vmem:[%s170 + $0x100] sm:$0xf] %v2010
      %2207 = vst [vmem:[%s170 + $0x104] sm:$0xf] %v2011
      %2208 = vst [vmem:[%s170 + $0x108] sm:$0xf] %v2012
      %2209 = vst [vmem:[%s170 + $0x10c] sm:$0xf] %v2013
      %2210 = vst [vmem:[%s170 + $0x110] sm:$0xf] %v2014
      %2211 = vst [vmem:[%s170 + $0x114] sm:$0xf] %v2015
      %2212 = vst [vmem:[%s170 + $0x118] sm:$0xf] %v2016
      %2213 = vst [vmem:[%s170 + $0x11c] sm:$0xf] %v2017
      %2214 = vst [vmem:[%s170 + $0x120] sm:$0xf] %v2018
      %2215 = vst [vmem:[%s170 + $0x124] sm:$0xf] %v2019
      %2216 = vst [vmem:[%s170 + $0x128] sm:$0xf] %v2020
      %2217 = vst [vmem:[%s170 + $0x12c] sm:$0xf] %v2021
      %2218 = vst [vmem:[%s170 + $0x130] sm:$0xf] %v2022
      %2219 = vst [vmem:[%s170 + $0x134] sm:$0xf] %v2023
      %2220 = vst [vmem:[%s170 + $0x138] sm:$0xf] %v2024
      %2221 = vst [vmem:[%s170 + $0x13c] sm:$0xf] %v2025
      %2222 = vst [vmem:[%s170 + $0x140] sm:$0xf] %v2026
      %2223 = vst [vmem:[%s170 + $0x144] sm:$0xf] %v2027
      %2224 = vst [vmem:[%s170 + $0x148] sm:$0xf] %v2028
      %2225 = vst [vmem:[%s170 + $0x14c] sm:$0xf] %v2029
      %2226 = vst [vmem:[%s170 + $0x150] sm:$0xf] %v2030
      %2227 = vst [vmem:[%s170 + $0x154] sm:$0xf] %v2031
      %2228 = vst [vmem:[%s170 + $0x158] sm:$0xf] %v2032
      %2229 = vst [vmem:[%s170 + $0x15c] sm:$0xf] %v2033
      %2230 = vst [vmem:[%s170 + $0x160] sm:$0xf] %v2034
      %2231 = vst [vmem:[%s170 + $0x164] sm:$0xf] %v2035
      %2232 = vst [vmem:[%s170 + $0x168] sm:$0xf] %v2036
      %2233 = vst [vmem:[%s170 + $0x16c] sm:$0xf] %v2037
      %2234 = vst [vmem:[%s170 + $0x170] sm:$0xf] %v2038
      %2235 = vst [vmem:[%s170 + $0x174] sm:$0xf] %v2039
      %2236 = vst [vmem:[%s170 + $0x178] sm:$0xf] %v2040
      %2237 = vst [vmem:[%s170 + $0x17c] sm:$0xf] %v2041
      %2238 = vst [vmem:[%s170 + $0x180] sm:$0xf] %v2042
      %2239 = vst [vmem:[%s170 + $0x184] sm:$0xf] %v2043
      %p2240 = scmp.lt.s32.totalorder %s14, 1
      %s2241 = scalar_select %p2240, %s14, 1
      %s2242 = smul.addr %s2241, 98
      %s2243 = smul.addr %s2242, 4
      %s2244 = scalar_lea.vmem %s3, %s2243
      // Predicated region
      $region33: #{cnn_forward.3} parent=31 // pred_check
        %p2245 = pneg %p100
      $region34: #{cnn_forward.3} parent=31 // pred_check_branch
        %2247 = sbr.rel (%p2245) target = $region36
      $region35: #{cnn_forward.3} parent=31 // pred_region
        _
      $region36: #{cnn_forward.3} parent=31 // pred_fallthru
        _
    $region32: #{cnn_forward.3} parent=5 // pred_fallthru
      _
    %p2248 = scmp.le.s32.totalorder 2, %s9
    // Predicated region
    $region37: #{cnn_forward.3} parent=5 // pred_check
      %p2249 = pneg %p2248
    $region38: #{cnn_forward.3} parent=5 // pred_check_branch
      %2251 = sbr.rel (%p2249) target = $region40
    $region39: #{cnn_forward.3} parent=5 // pred_region
      %s2252 = ssub.s32 %s9, 2
      // Predicated region
      $region41: #{cnn_forward.3} parent=39 // pred_check
        %p2253 = pneg %p106
      $region42: #{cnn_forward.3} parent=39 // pred_check_branch
        %2255 = sbr.rel (%p2253) target = $region44
      $region43: #{cnn_forward.3} parent=39 // pred_region
        %p2256 = scmp.lt.s32.totalorder %s15, 1
        %s2257 = scalar_select %p2256, %s15, 1
        %s2258 = smul.addr %s2257, 98
        %s2259 = smul.addr %s2258, 4
        %s2260 = scalar_lea.vmem %s3, %s2259
      $region44: #{cnn_forward.3} parent=39 // pred_fallthru
        _
    $region40: #{cnn_forward.3} parent=5 // pred_fallthru
      _
  $region6: #{cnn_forward.3} parent=0 // loop_footer
    %s13 = sadd.s32 1, %s9
  $region7: #{cnn_forward.3} parent=0 // loop_footer_branch
    %8 = sbr.rel target = $region3
  $region8: #{cnn_forward.3} parent=0 // loop_exit
    _

// kernel: cnn_forward.4
$region0: #{cnn_forward.4}
  #allocation0 [shape = 'u32[]', space=smem, size = 0x4, offset = 0x4, fixed_abs, tag = 'smem constant byte address 0x4 - core index']
  #allocation1 [shape = 'u32[144,128]{1,0:T(1,128)}', space=vmem, size = 0x12000, scoped, tag = 'internal scratch']
  %s0 = inlined_call_operand.vmem [shape: bf16[2,144,896], index: 0, kind: input, shape index: {}]
  %s1 = inlined_call_operand.vmem [shape: bf16[896,128], index: 1, kind: input, shape index: {}]
  %s2 = inlined_call_operand.vmem [shape: f32[1,128], index: 2, kind: input, shape index: {}]
  %s3 = inlined_call_operand.vmem [shape: bf16[2,144,128], index: 3, kind: output, shape index: {}]
  %s4 = sld [smem:[#allocation0]]
  $region45: #{cnn_forward.4} parent=0
    _
  %s6 = ssub.s32 1, %s4
  %s7 = scalar_select 0, %s6, %s4
  loop: start=0, step=1, limit=4
  $region2: #{cnn_forward.4} parent=0 // loop_pre_header
    _
  $region3: #{cnn_forward.4} parent=0 // loop_header
    %s9 = sphi 0, %s13
    %p10 = scmp.ge.s32.totalorder %s9, 4
    %s19 = sphi 0, %s21
    %s22 = sphi 0, %s19
    %s23 = sphi 0, %s22
    %s39 = sphi 0, %s23
    %s43 = sphi 0, %s43
    %s45 = sphi 0, %s43
    %s46 = sphi 0, %s45
    %s60 = sphi 0, %s46
    %s64 = sphi 0, %s64
    %s66 = sphi 0, %s64
    %s67 = sphi 0, %s66
    %s81 = sphi 0, %s67
    %s87 = sphi 0, %s89
    %s90 = sphi 0, %s87
    %s91 = sphi 0, %s90
    %s107 = sphi 0, %s91
  $region4: #{cnn_forward.4} parent=0 // loop_header_branch
    %12 = sbr.rel (%p10) target = $region8
  $region5: #{cnn_forward.4} parent=0 // loop_body
    %s14 = ssub.s32 %s9, 1
    %s15 = ssub.s32 %s9, 2
    %s16 = sadd.s32 %s9, 1
    %s17 = ssub.s32 %s9, %s16
    %p18 = scmp.eq.s32.totalorder %s17, 0
    %s20 = sadd.s32 %s19, 1
    %s21 = scalar_select %p18, %s19, %s20
    %p24 = pneg %p18
    %p25 = scmp.eq.s32.totalorder %s9, 1
    %p26 = por %p24, %p25
    %p27 = scmp.ne.s32.totalorder %s19, %s22
    %p28 = scmp.eq.s32.totalorder %s9, 0
    %p29 = por %p27, %p28
    %p30 = scmp.ne.s32.totalorder %s19, %s22
    %p31 = scmp.eq.s32.totalorder %s14, 1
    %p32 = por %p30, %p31
    %p33 = scmp.ne.s32.totalorder %s22, %s23
    %p34 = scmp.eq.s32.totalorder %s14, 0
    %p35 = por %p33, %p34
    %p36 = scmp.ne.s32.totalorder %s22, %s23
    %p37 = scmp.eq.s32.totalorder %s15, 1
    %p38 = por %p36, %p37
    %p40 = scmp.ne.s32.totalorder %s23, %s39
    %p41 = scmp.eq.s32.totalorder %s15, 0
    %p42 = por %p40, %p41
    %s44 = sadd.s32 %s43, 1
    %p47 = scmp.eq.s32.totalorder %s9, 1
    %p48 = scmp.ne.s32.totalorder %s43, %s45
    %p49 = scmp.eq.s32.totalorder %s9, 0
    %p50 = por %p48, %p49
    %p51 = scmp.ne.s32.totalorder %s43, %s45
    %p52 = scmp.eq.s32.totalorder %s14, 1
    %p53 = por %p51, %p52
    %p54 = scmp.ne.s32.totalorder %s45, %s46
    %p55 = scmp.eq.s32.totalorder %s14, 0
    %p56 = por %p54, %p55
    %p57 = scmp.ne.s32.totalorder %s45, %s46
    %p58 = scmp.eq.s32.totalorder %s15, 1
    %p59 = por %p57, %p58
    %p61 = scmp.ne.s32.totalorder %s46, %s60
    %p62 = scmp.eq.s32.totalorder %s15, 0
    %p63 = por %p61, %p62
    %s65 = sadd.s32 %s64, 1
    %p68 = scmp.eq.s32.totalorder %s9, 1
    %p69 = scmp.ne.s32.totalorder %s64, %s66
    %p70 = scmp.eq.s32.totalorder %s9, 0
    %p71 = por %p69, %p70
    %p72 = scmp.ne.s32.totalorder %s64, %s66
    %p73 = scmp.eq.s32.totalorder %s14, 1
    %p74 = por %p72, %p73
    %p75 = scmp.ne.s32.totalorder %s66, %s67
    %p76 = scmp.eq.s32.totalorder %s14, 0
    %p77 = por %p75, %p76
    %p78 = scmp.ne.s32.totalorder %s66, %s67
    %p79 = scmp.eq.s32.totalorder %s15, 1
    %p80 = por %p78, %p79
    %p82 = scmp.ne.s32.totalorder %s67, %s81
    %p83 = scmp.eq.s32.totalorder %s15, 0
    %p84 = por %p82, %p83
    %s85 = ssub.s32 %s9, %s16
    %p86 = scmp.eq.s32.totalorder %s85, 0
    %s88 = sadd.s32 %s87, 1
    %s89 = scalar_select %p86, %s87, %s88
    %p92 = pneg %p86
    %p93 = scmp.eq.s32.totalorder %s9, 1
    %p94 = por %p92, %p93
    %p95 = scmp.ne.s32.totalorder %s87, %s90
    %p96 = scmp.eq.s32.totalorder %s9, 0
    %p97 = por %p95, %p96
    %p98 = scmp.ne.s32.totalorder %s87, %s90
    %p99 = scmp.eq.s32.totalorder %s14, 1
    %p100 = por %p98, %p99
    %p101 = scmp.ne.s32.totalorder %s90, %s91
    %p102 = scmp.eq.s32.totalorder %s14, 0
    %p103 = por %p101, %p102
    %p104 = scmp.ne.s32.totalorder %s90, %s91
    %p105 = scmp.eq.s32.totalorder %s15, 1
    %p106 = por %p104, %p105
    %p108 = scmp.ne.s32.totalorder %s91, %s107
    %p109 = scmp.eq.s32.totalorder %s15, 0
    %p110 = por %p108, %p109
    %p111 = scmp.le.s32.totalorder 1, %s9
    %p112 = scmp.lt.s32.totalorder %s9, 3
    %p113 = pnand %p111, %p112
    %p114 = pneg %p113
    // Predicated region
    $region9: #{cnn_forward.4} parent=5 // pred_check
      _
    $region10: #{cnn_forward.4} parent=5 // pred_check_branch
      %116 = sbr.rel (%p113) target = $region12
    $region11: #{cnn_forward.4} parent=5 // pred_region
      %s117 = ssub.s32 %s9, 1
      // Predicated region
      $region13: #{cnn_forward.4} parent=11 // pred_check
        %p118 = pneg %p56
      $region14: #{cnn_forward.4} parent=11 // pred_check_branch
        %120 = sbr.rel (%p118) target = $region16
      $region15: #{cnn_forward.4} parent=11 // pred_region
        _
      $region16: #{cnn_forward.4} parent=11 // pred_fallthru
        _
      // Predicated region
      $region17: #{cnn_forward.4} parent=11 // pred_check
        %p121 = pneg %p77
      $region18: #{cnn_forward.4} parent=11 // pred_check_branch
        %123 = sbr.rel (%p121) target = $region20
      $region19: #{cnn_forward.4} parent=11 // pred_region
        _
      $region20: #{cnn_forward.4} parent=11 // pred_fallthru
        _
    $region12: #{cnn_forward.4} parent=5 // pred_fallthru
      _
    %p124 = scmp.lt.s32.totalorder %s9, 2
    // Predicated region
    $region21: #{cnn_forward.4} parent=5 // pred_check
      %p125 = pneg %p124
    $region22: #{cnn_forward.4} parent=5 // pred_check_branch
      %127 = sbr.rel (%p125) target = $region24
    $region23: #{cnn_forward.4} parent=5 // pred_region
      // Predicated region
      $region25: #{cnn_forward.4} parent=23 // pred_check
        %p128 = pneg %p29
      $region26: #{cnn_forward.4} parent=23 // pred_check_branch
        %130 = sbr.rel (%p128) target = $region28
      $region27: #{cnn_forward.4} parent=23 // pred_region
        %p131 = scmp.lt.s32.totalorder %s9, 1
        %s132 = scalar_select %p131, %s9, 1
        %s133 = smul.addr %s132, 126
        %s134 = smul.addr %s133, 4
        %s135 = scalar_lea.vmem %s0, %s134
      $region28: #{cnn_forward.4} parent=23 // pred_fallthru
        _
    $region24: #{cnn_forward.4} parent=5 // pred_fallthru
      _
    %p136 = scmp.le.s32.totalorder 1, %s9
    %p137 = scmp.lt.s32.totalorder %s9, 3
    %p138 = pnand %p136, %p137
    %p139 = pneg %p138
    // Predicated region
    $region29: #{cnn_forward.4} parent=5 // pred_check
      _
    $region30: #{cnn_forward.4} parent=5 // pred_check_branch
      %141 = sbr.rel (%p138) target = $region32
    $region31: #{cnn_forward.4} parent=5 // pred_region
      %s142 = ssub.s32 %s9, 1
      %p143 = scmp.lt.s32.totalorder %s14, 1
      %s144 = scalar_select %p143, %s14, 1
      %s145 = smul.addr %s144, 126
      %s146 = smul.addr %s145, 4
      %s147 = scalar_lea.vmem %s0, %s146
      %p148 = pneg %p35
      %p149 = pneg %p32
      %p150 = pneg %p56
      %p151 = pneg %p53
      %p152 = pneg %p77
      %p153 = pneg %p74
      %p154 = pneg %p103
      %p155 = pneg %p100
      %p156 = scmp.lt.s32.totalorder %s14, 1
      %s157 = scalar_select %p156, %s14, 1
      %s158 = smul.addr %s157, 18
      %s159 = smul.addr %s158, 4
      %s160 = scalar_lea.vmem %s3, %s159
      %p161 = scmp.lt.s32.totalorder %s14, 1
      %s162 = scalar_select %p161, %s14, 1
      %s163 = smul.addr %s162, 126
      %s164 = smul.addr %s163, 4
      %s165 = scalar_lea.vmem %s0, %s164
      %p166 = scmp.lt.s32.totalorder %s14, 1
      %s167 = scalar_select %p166, %s14, 1
      %s168 = smul.addr %s167, 18
      %s169 = smul.addr %s168, 4
      %s170 = scalar_lea.vmem %s3, %s169
      %v172 = vld [vmem:[%s165] sm:$0xff]
      %v173 = vld [vmem:[%s165 + $0x8] sm:$0xff]
      %v174 = vld [vmem:[%s165 + $0x10] sm:$0xff]
      %v175 = vld [vmem:[%s165 + $0x18] sm:$0xf]
      %v176 = vld [vmem:[%s165 + $0x1c] sm:$0xff]
      %v177 = vld [vmem:[%s165 + $0x24] sm:$0xff]
      %v178 = vld [vmem:[%s165 + $0x2c] sm:$0xff]
      %v179 = vld [vmem:[%s165 + $0x34] sm:$0xf]
      %v180 = vld [vmem:[%s165 + $0x38] sm:$0xff]
      %v181 = vld [vmem:[%s165 + $0x40] sm:$0xff]
      %v182 = vld [vmem:[%s165 + $0x48] sm:$0xff]
      %v183 = vld [vmem:[%s165 + $0x50] sm:$0xf]
      %v184 = vld [vmem:[%s165 + $0x54] sm:$0xff]
      %v185 = vld [vmem:[%s165 + $0x5c] sm:$0xff]
      %v186 = vld [vmem:[%s165 + $0x64] sm:$0xff]
      %v187 = vld [vmem:[%s165 + $0x6c] sm:$0xf]
      %v188 = vld [vmem:[%s165 + $0x70] sm:$0xff]
      %v189 = vld [vmem:[%s165 + $0x78] sm:$0xff]
      %v190 = vld [vmem:[%s165 + $0x80] sm:$0xff]
      %v191 = vld [vmem:[%s165 + $0x88] sm:$0xf]
      %v192 = vld [vmem:[%s165 + $0x8c] sm:$0xff]
      %v193 = vld [vmem:[%s165 + $0x94] sm:$0xff]
      %v194 = vld [vmem:[%s165 + $0x9c] sm:$0xff]
      %v195 = vld [vmem:[%s165 + $0xa4] sm:$0xf]
      %v196 = vld [vmem:[%s165 + $0xa8] sm:$0xff]
      %v197 = vld [vmem:[%s165 + $0xb0] sm:$0xff]
      %v198 = vld [vmem:[%s165 + $0xb8] sm:$0xff]
      %v199 = vld [vmem:[%s165 + $0xc0] sm:$0xf]
      %v200 = vld [vmem:[%s165 + $0xc4] sm:$0xff]
      %v201 = vld [vmem:[%s165 + $0xcc] sm:$0xff]
      %v202 = vld [vmem:[%s165 + $0xd4] sm:$0xff]
      %v203 = vld [vmem:[%s165 + $0xdc] sm:$0xf]
      %v204 = vld [vmem:[%s165 + $0xe0] sm:$0xff]
      %v205 = vld [vmem:[%s165 + $0xe8] sm:$0xff]
      %v206 = vld [vmem:[%s165 + $0xf0] sm:$0xff]
      %v207 = vld [vmem:[%s165 + $0xf8] sm:$0xf]
      %v208 = vld [vmem:[%s165 + $0xfc] sm:$0xff]
      %v209 = vld [vmem:[%s165 + $0x104] sm:$0xff]
      %v210 = vld [vmem:[%s165 + $0x10c] sm:$0xff]
      %v211 = vld [vmem:[%s165 + $0x114] sm:$0xf]
      %v212 = vld [vmem:[%s165 + $0x118] sm:$0xff]
      %v213 = vld [vmem:[%s165 + $0x120] sm:$0xff]
      %v214 = vld [vmem:[%s165 + $0x128] sm:$0xff]
      %v215 = vld [vmem:[%s165 + $0x130] sm:$0xf]
      %v216 = vld [vmem:[%s165 + $0x134] sm:$0xff]
      %v217 = vld [vmem:[%s165 + $0x13c] sm:$0xff]
      %v218 = vld [vmem:[%s165 + $0x144] sm:$0xff]
      %v219 = vld [vmem:[%s165 + $0x14c] sm:$0xf]
      %v220 = vld [vmem:[%s165 + $0x150] sm:$0xff]
      %v221 = vld [vmem:[%s165 + $0x158] sm:$0xff]
      %v222 = vld [vmem:[%s165 + $0x160] sm:$0xff]
      %v223 = vld [vmem:[%s165 + $0x168] sm:$0xf]
      %v224 = vld [vmem:[%s165 + $0x16c] sm:$0xff]
      %v225 = vld [vmem:[%s165 + $0x174] sm:$0xff]
      %v226 = vld [vmem:[%s165 + $0x17c] sm:$0xff]
      %v227 = vld [vmem:[%s165 + $0x184] sm:$0xf]
      %v228 = vld [vmem:[%s165 + $0x188] sm:$0xff]
      %v229 = vld [vmem:[%s165 + $0x190] sm:$0xff]
      %v230 = vld [vmem:[%s165 + $0x198] sm:$0xff]
      %v231 = vld [vmem:[%s165 + $0x1a0] sm:$0xf]
      %v232 = vld [vmem:[%s165 + $0x1a4] sm:$0xff]
      %v233 = vld [vmem:[%s165 + $0x1ac] sm:$0xff]
      %v234 = vld [vmem:[%s165 + $0x1b4] sm:$0xff]
      %v235 = vld [vmem:[%s165 + $0x1bc] sm:$0xf]
      %v236 = vld [vmem:[%s165 + $0x1c0] sm:$0xff]
      %v237 = vld [vmem:[%s165 + $0x1c8] sm:$0xff]
      %v238 = vld [vmem:[%s165 + $0x1d0] sm:$0xff]
      %v239 = vld [vmem:[%s165 + $0x1d8] sm:$0xf]
      %v240 = vld [vmem:[%s165 + $0x1dc] sm:$0xff]
      %v241 = vld [vmem:[%s165 + $0x1e4] sm:$0xff]
      %v242 = vld [vmem:[%s165 + $0x1ec] sm:$0xff]
      %v243 = vld [vmem:[%s165 + $0x1f4] sm:$0xf]
      %v244 = vld [vmem:[%s1] sm:$0xf]
      %v245 = vld [vmem:[%s1 + $0x4] sm:$0xf]
      %v246 = vld [vmem:[%s1 + $0x8] sm:$0xf]
      %v247 = vld [vmem:[%s1 + $0xc] sm:$0xf]
      %v248 = vld [vmem:[%s1 + $0x10] sm:$0xf]
      %v249 = vld [vmem:[%s1 + $0x14] sm:$0xf]
      %v250 = vld [vmem:[%s1 + $0x18] sm:$0xf]
      %v251 = vld [vmem:[%s1 + $0x1c] sm:$0xf]
      %v252 = vld [vmem:[%s1 + $0x20] sm:$0xf]
      %v253 = vld [vmem:[%s1 + $0x24] sm:$0xf]
      %v254 = vld [vmem:[%s1 + $0x28] sm:$0xf]
      %v255 = vld [vmem:[%s1 + $0x2c] sm:$0xf]
      %v256 = vld [vmem:[%s1 + $0x30] sm:$0xf]
      %v257 = vld [vmem:[%s1 + $0x34] sm:$0xf]
      %v258 = vld [vmem:[%s1 + $0x38] sm:$0xf]
      %v259 = vld [vmem:[%s1 + $0x3c] sm:$0xf]
      %v260 = vld [vmem:[%s1 + $0x40] sm:$0xf]
      %v261 = vld [vmem:[%s1 + $0x44] sm:$0xf]
      %v262 = vld [vmem:[%s1 + $0x48] sm:$0xf]
      %v263 = vld [vmem:[%s1 + $0x4c] sm:$0xf]
      %v264 = vld [vmem:[%s1 + $0x50] sm:$0xf]
      %v265 = vld [vmem:[%s1 + $0x54] sm:$0xf]
      %v266 = vld [vmem:[%s1 + $0x58] sm:$0xf]
      %v267 = vld [vmem:[%s1 + $0x5c] sm:$0xf]
      %v268 = vld [vmem:[%s1 + $0x60] sm:$0xf]
      %v269 = vld [vmem:[%s1 + $0x64] sm:$0xf]
      %v270 = vld [vmem:[%s1 + $0x68] sm:$0xf]
      %v271 = vld [vmem:[%s1 + $0x6c] sm:$0xf]
      %v272 = vld [vmem:[%s1 + $0x70] sm:$0xf]
      %v273 = vld [vmem:[%s1 + $0x74] sm:$0xf]
      %v274 = vld [vmem:[%s1 + $0x78] sm:$0xf]
      %v275 = vld [vmem:[%s1 + $0x7c] sm:$0xf]
      %v276 = vld [vmem:[%s1 + $0x80] sm:$0xf]
      %v277 = vld [vmem:[%s1 + $0x84] sm:$0xf]
      %v278 = vld [vmem:[%s1 + $0x88] sm:$0xf]
      %v279 = vld [vmem:[%s1 + $0x8c] sm:$0xf]
      %v280 = vld [vmem:[%s1 + $0x90] sm:$0xf]
      %v281 = vld [vmem:[%s1 + $0x94] sm:$0xf]
      %v282 = vld [vmem:[%s1 + $0x98] sm:$0xf]
      %v283 = vld [vmem:[%s1 + $0x9c] sm:$0xf]
      %v284 = vld [vmem:[%s1 + $0xa0] sm:$0xf]
      %v285 = vld [vmem:[%s1 + $0xa4] sm:$0xf]
      %v286 = vld [vmem:[%s1 + $0xa8] sm:$0xf]
      %v287 = vld [vmem:[%s1 + $0xac] sm:$0xf]
      %v288 = vld [vmem:[%s1 + $0xb0] sm:$0xf]
      %v289 = vld [vmem:[%s1 + $0xb4] sm:$0xf]
      %v290 = vld [vmem:[%s1 + $0xb8] sm:$0xf]
      %v291 = vld [vmem:[%s1 + $0xbc] sm:$0xf]
      %v292 = vld [vmem:[%s1 + $0xc0] sm:$0xf]
      %v293 = vld [vmem:[%s1 + $0xc4] sm:$0xf]
      %v294 = vld [vmem:[%s1 + $0xc8] sm:$0xf]
      %v295 = vld [vmem:[%s1 + $0xcc] sm:$0xf]
      %v296 = vld [vmem:[%s1 + $0xd0] sm:$0xf]
      %v297 = vld [vmem:[%s1 + $0xd4] sm:$0xf]
      %v298 = vld [vmem:[%s1 + $0xd8] sm:$0xf]
      %v299 = vld [vmem:[%s1 + $0xdc] sm:$0xf]
      %v300 = vld [vmem:[%s1 + $0xe0] sm:$0xf]
      %v301 = vld [vmem:[%s1 + $0xe4] sm:$0xf]
      %v302 = vld [vmem:[%s1 + $0xe8] sm:$0xf]
      %v303 = vld [vmem:[%s1 + $0xec] sm:$0xf]
      %v304 = vld [vmem:[%s1 + $0xf0] sm:$0xf]
      %v305 = vld [vmem:[%s1 + $0xf4] sm:$0xf]
      %v306 = vld [vmem:[%s1 + $0xf8] sm:$0xf]
      %v307 = vld [vmem:[%s1 + $0xfc] sm:$0xf]
      %v308 = vld [vmem:[%s1 + $0x100] sm:$0xf]
      %v309 = vld [vmem:[%s1 + $0x104] sm:$0xf]
      %v310 = vld [vmem:[%s1 + $0x108] sm:$0xf]
      %v311 = vld [vmem:[%s1 + $0x10c] sm:$0xf]
      %v312 = vld [vmem:[%s1 + $0x110] sm:$0xf]
      %v313 = vld [vmem:[%s1 + $0x114] sm:$0xf]
      %v314 = vld [vmem:[%s1 + $0x118] sm:$0xf]
      %v315 = vld [vmem:[%s1 + $0x11c] sm:$0xf]
      %v316 = vld [vmem:[%s1 + $0x120] sm:$0xf]
      %v317 = vld [vmem:[%s1 + $0x124] sm:$0xf]
      %v318 = vld [vmem:[%s1 + $0x128] sm:$0xf]
      %v319 = vld [vmem:[%s1 + $0x12c] sm:$0xf]
      %v320 = vld [vmem:[%s1 + $0x130] sm:$0xf]
      %v321 = vld [vmem:[%s1 + $0x134] sm:$0xf]
      %v322 = vld [vmem:[%s1 + $0x138] sm:$0xf]
      %v323 = vld [vmem:[%s1 + $0x13c] sm:$0xf]
      %v324 = vld [vmem:[%s1 + $0x140] sm:$0xf]
      %v325 = vld [vmem:[%s1 + $0x144] sm:$0xf]
      %v326 = vld [vmem:[%s1 + $0x148] sm:$0xf]
      %v327 = vld [vmem:[%s1 + $0x14c] sm:$0xf]
      %v328 = vld [vmem:[%s1 + $0x150] sm:$0xf]
      %v329 = vld [vmem:[%s1 + $0x154] sm:$0xf]
      %v330 = vld [vmem:[%s1 + $0x158] sm:$0xf]
      %v331 = vld [vmem:[%s1 + $0x15c] sm:$0xf]
      %v332 = vld [vmem:[%s1 + $0x160] sm:$0xf]
      %v333 = vld [vmem:[%s1 + $0x164] sm:$0xf]
      %v334 = vld [vmem:[%s1 + $0x168] sm:$0xf]
      %v335 = vld [vmem:[%s1 + $0x16c] sm:$0xf]
      %v336 = vld [vmem:[%s1 + $0x170] sm:$0xf]
      %v337 = vld [vmem:[%s1 + $0x174] sm:$0xf]
      %v338 = vld [vmem:[%s1 + $0x178] sm:$0xf]
      %v339 = vld [vmem:[%s1 + $0x17c] sm:$0xf]
      %v340 = vld [vmem:[%s1 + $0x180] sm:$0xf]
      %v341 = vld [vmem:[%s1 + $0x184] sm:$0xf]
      %v342 = vld [vmem:[%s1 + $0x188] sm:$0xf]
      %v343 = vld [vmem:[%s1 + $0x18c] sm:$0xf]
      %v344 = vld [vmem:[%s1 + $0x190] sm:$0xf]
      %v345 = vld [vmem:[%s1 + $0x194] sm:$0xf]
      %v346 = vld [vmem:[%s1 + $0x198] sm:$0xf]
      %v347 = vld [vmem:[%s1 + $0x19c] sm:$0xf]
      %v348 = vld [vmem:[%s1 + $0x1a0] sm:$0xf]
      %v349 = vld [vmem:[%s1 + $0x1a4] sm:$0xf]
      %v350 = vld [vmem:[%s1 + $0x1a8] sm:$0xf]
      %v351 = vld [vmem:[%s1 + $0x1ac] sm:$0xf]
      %v352 = vld [vmem:[%s1 + $0x1b0] sm:$0xf]
      %v353 = vld [vmem:[%s1 + $0x1b4] sm:$0xf]
      %v354 = vld [vmem:[%s1 + $0x1b8] sm:$0xf]
      %v355 = vld [vmem:[%s1 + $0x1bc] sm:$0xf]
      %v356 = vld [vmem:[%s2] sm:$0x1]
      %v358 = vlaneseq
      %v359 = vshrl.u32 %v358, 7
      %v360 = vsub.s32 0, %v359
      %v361 = vrot.slane %v356, %v360
      %v435 = vunpack.c.l.b16 %v172
      %v436 = vunpack.c.h.b16 %v172
      %v437 = vunpack.c.l.b16 %v173
      %v438 = vunpack.c.h.b16 %v173
      %v439 = vunpack.c.l.b16 %v174
      %v440 = vunpack.c.h.b16 %v174
      %v441 = vunpack.c.l.b16 %v175
      %v442 = vunpack.c.l.b16 %v176
      %v443 = vunpack.c.h.b16 %v176
      %v444 = vunpack.c.l.b16 %v177
      %v445 = vunpack.c.h.b16 %v177
      %v446 = vunpack.c.l.b16 %v178
      %v447 = vunpack.c.h.b16 %v178
      %v448 = vunpack.c.l.b16 %v179
      %v449 = vunpack.c.l.b16 %v180
      %v450 = vunpack.c.h.b16 %v180
      %v451 = vunpack.c.l.b16 %v181
      %v452 = vunpack.c.h.b16 %v181
      %v453 = vunpack.c.l.b16 %v182
      %v454 = vunpack.c.h.b16 %v182
      %v455 = vunpack.c.l.b16 %v183
      %v456 = vunpack.c.l.b16 %v184
      %v457 = vunpack.c.h.b16 %v184
      %v458 = vunpack.c.l.b16 %v185
      %v459 = vunpack.c.h.b16 %v185
      %v460 = vunpack.c.l.b16 %v186
      %v461 = vunpack.c.h.b16 %v186
      %v462 = vunpack.c.l.b16 %v187
      %v463 = vunpack.c.l.b16 %v188
      %v464 = vunpack.c.h.b16 %v188
      %v465 = vunpack.c.l.b16 %v189
      %v466 = vunpack.c.h.b16 %v189
      %v467 = vunpack.c.l.b16 %v190
      %v468 = vunpack.c.h.b16 %v190
      %v469 = vunpack.c.l.b16 %v191
      %v470 = vunpack.c.l.b16 %v192
      %v471 = vunpack.c.h.b16 %v192
      %v472 = vunpack.c.l.b16 %v193
      %v473 = vunpack.c.h.b16 %v193
      %v474 = vunpack.c.l.b16 %v194
      %v475 = vunpack.c.h.b16 %v194
      %v476 = vunpack.c.l.b16 %v195
      %v477 = vunpack.c.l.b16 %v196
      %v478 = vunpack.c.h.b16 %v196
      %v479 = vunpack.c.l.b16 %v197
      %v480 = vunpack.c.h.b16 %v197
      %v481 = vunpack.c.l.b16 %v198
      %v482 = vunpack.c.h.b16 %v198
      %v483 = vunpack.c.l.b16 %v199
      %v484 = vunpack.c.l.b16 %v200
      %v485 = vunpack.c.h.b16 %v200
      %v486 = vunpack.c.l.b16 %v201
      %v487 = vunpack.c.h.b16 %v201
      %v488 = vunpack.c.l.b16 %v202
      %v489 = vunpack.c.h.b16 %v202
      %v490 = vunpack.c.l.b16 %v203
      %v491 = vunpack.c.l.b16 %v204
      %v492 = vunpack.c.h.b16 %v204
      %v493 = vunpack.c.l.b16 %v205
      %v494 = vunpack.c.h.b16 %v205
      %v495 = vunpack.c.l.b16 %v206
      %v496 = vunpack.c.h.b16 %v206
      %v497 = vunpack.c.l.b16 %v207
      %v498 = vunpack.c.l.b16 %v208
      %v499 = vunpack.c.h.b16 %v208
      %v500 = vunpack.c.l.b16 %v209
      %v501 = vunpack.c.h.b16 %v209
      %v502 = vunpack.c.l.b16 %v210
      %v503 = vunpack.c.h.b16 %v210
      %v504 = vunpack.c.l.b16 %v211
      %v505 = vunpack.c.l.b16 %v212
      %v506 = vunpack.c.h.b16 %v212
      %v507 = vunpack.c.l.b16 %v213
      %v508 = vunpack.c.h.b16 %v213
      %v509 = vunpack.c.l.b16 %v214
      %v510 = vunpack.c.h.b16 %v214
      %v511 = vunpack.c.l.b16 %v215
      %v512 = vunpack.c.l.b16 %v216
      %v513 = vunpack.c.h.b16 %v216
      %v514 = vunpack.c.l.b16 %v217
      %v515 = vunpack.c.h.b16 %v217
      %v516 = vunpack.c.l.b16 %v218
      %v517 = vunpack.c.h.b16 %v218
      %v518 = vunpack.c.l.b16 %v219
      %v519 = vunpack.c.l.b16 %v220
      %v520 = vunpack.c.h.b16 %v220
      %v521 = vunpack.c.l.b16 %v221
      %v522 = vunpack.c.h.b16 %v221
      %v523 = vunpack.c.l.b16 %v222
      %v524 = vunpack.c.h.b16 %v222
      %v525 = vunpack.c.l.b16 %v223
      %v526 = vunpack.c.l.b16 %v224
      %v527 = vunpack.c.h.b16 %v224
      %v528 = vunpack.c.l.b16 %v225
      %v529 = vunpack.c.h.b16 %v225
      %v530 = vunpack.c.l.b16 %v226
      %v531 = vunpack.c.h.b16 %v226
      %v532 = vunpack.c.l.b16 %v227
      %v533 = vunpack.c.l.b16 %v228
      %v534 = vunpack.c.h.b16 %v228
      %v535 = vunpack.c.l.b16 %v229
      %v536 = vunpack.c.h.b16 %v229
      %v537 = vunpack.c.l.b16 %v230
      %v538 = vunpack.c.h.b16 %v230
      %v539 = vunpack.c.l.b16 %v231
      %v540 = vunpack.c.l.b16 %v232
      %v541 = vunpack.c.h.b16 %v232
      %v542 = vunpack.c.l.b16 %v233
      %v543 = vunpack.c.h.b16 %v233
      %v544 = vunpack.c.l.b16 %v234
      %v545 = vunpack.c.h.b16 %v234
      %v546 = vunpack.c.l.b16 %v235
      %v547 = vunpack.c.l.b16 %v236
      %v548 = vunpack.c.h.b16 %v236
      %v549 = vunpack.c.l.b16 %v237
      %v550 = vunpack.c.h.b16 %v237
      %v551 = vunpack.c.l.b16 %v238
      %v552 = vunpack.c.h.b16 %v238
      %v553 = vunpack.c.l.b16 %v239
      %v554 = vunpack.c.l.b16 %v240
      %v555 = vunpack.c.h.b16 %v240
      %v556 = vunpack.c.l.b16 %v241
      %v557 = vunpack.c.h.b16 %v241
      %v558 = vunpack.c.l.b16 %v242
      %v559 = vunpack.c.h.b16 %v242
      %v560 = vunpack.c.l.b16 %v243
      %v561 = vpack.c.b16 %v442, %v435
      %v562 = vpack.c.b16 %v443, %v436
      %v563 = vpack.c.b16 %v444, %v437
      %v564 = vpack.c.b16 %v445, %v438
      %v565 = vpack.c.b16 %v446, %v439
      %v566 = vpack.c.b16 %v447, %v440
      %v567 = vpack.c.b16 %v448, %v441
      %v568 = vpack.c.b16 %v456, %v449
      %v569 = vpack.c.b16 %v457, %v450
      %v570 = vpack.c.b16 %v458, %v451
      %v571 = vpack.c.b16 %v459, %v452
      %v572 = vpack.c.b16 %v460, %v453
      %v573 = vpack.c.b16 %v461, %v454
      %v574 = vpack.c.b16 %v462, %v455
      %v575 = vpack.c.b16 %v470, %v463
      %v576 = vpack.c.b16 %v471, %v464
      %v577 = vpack.c.b16 %v472, %v465
      %v578 = vpack.c.b16 %v473, %v466
      %v579 = vpack.c.b16 %v474, %v467
      %v580 = vpack.c.b16 %v475, %v468
      %v581 = vpack.c.b16 %v476, %v469
      %v582 = vpack.c.b16 %v484, %v477
      %v583 = vpack.c.b16 %v485, %v478
      %v584 = vpack.c.b16 %v486, %v479
      %v585 = vpack.c.b16 %v487, %v480
      %v586 = vpack.c.b16 %v488, %v481
      %v587 = vpack.c.b16 %v489, %v482
      %v588 = vpack.c.b16 %v490, %v483
      %v589 = vpack.c.b16 %v498, %v491
      %v590 = vpack.c.b16 %v499, %v492
      %v591 = vpack.c.b16 %v500, %v493
      %v592 = vpack.c.b16 %v501, %v494
      %v593 = vpack.c.b16 %v502, %v495
      %v594 = vpack.c.b16 %v503, %v496
      %v595 = vpack.c.b16 %v504, %v497
      %v596 = vpack.c.b16 %v512, %v505
      %v597 = vpack.c.b16 %v513, %v506
      %v598 = vpack.c.b16 %v514, %v507
      %v599 = vpack.c.b16 %v515, %v508
      %v600 = vpack.c.b16 %v516, %v509
      %v601 = vpack.c.b16 %v517, %v510
      %v602 = vpack.c.b16 %v518, %v511
      %v603 = vpack.c.b16 %v526, %v519
      %v604 = vpack.c.b16 %v527, %v520
      %v605 = vpack.c.b16 %v528, %v521
      %v606 = vpack.c.b16 %v529, %v522
      %v607 = vpack.c.b16 %v530, %v523
      %v608 = vpack.c.b16 %v531, %v524
      %v609 = vpack.c.b16 %v532, %v525
      %v610 = vpack.c.b16 %v540, %v533
      %v611 = vpack.c.b16 %v541, %v534
      %v612 = vpack.c.b16 %v542, %v535
      %v613 = vpack.c.b16 %v543, %v536
      %v614 = vpack.c.b16 %v544, %v537
      %v615 = vpack.c.b16 %v545, %v538
      %v616 = vpack.c.b16 %v546, %v539
      %v617 = vpack.c.b16 %v554, %v547
      %v618 = vpack.c.b16 %v555, %v548
      %v619 = vpack.c.b16 %v556, %v549
      %v620 = vpack.c.b16 %v557, %v550
      %v621 = vpack.c.b16 %v558, %v551
      %v622 = vpack.c.b16 %v559, %v552
      %v623 = vpack.c.b16 %v560, %v553
      %v799 = vunpack.c.l.b16 %v244
      %v800 = vunpack.c.l.b16 %v245
      %v801 = vunpack.c.l.b16 %v246
      %v802 = vunpack.c.l.b16 %v247
      %v803 = vunpack.c.l.b16 %v248
      %v804 = vunpack.c.l.b16 %v249
      %v805 = vunpack.c.l.b16 %v250
      %v806 = vunpack.c.l.b16 %v251
      %v807 = vunpack.c.l.b16 %v252
      %v808 = vunpack.c.l.b16 %v253
      %v809 = vunpack.c.l.b16 %v254
      %v810 = vunpack.c.l.b16 %v255
      %v811 = vunpack.c.l.b16 %v256
      %v812 = vunpack.c.l.b16 %v257
      %v813 = vunpack.c.l.b16 %v258
      %v814 = vunpack.c.l.b16 %v259
      %v815 = vunpack.c.l.b16 %v260
      %v816 = vunpack.c.l.b16 %v261
      %v817 = vunpack.c.l.b16 %v262
      %v818 = vunpack.c.l.b16 %v263
      %v819 = vunpack.c.l.b16 %v264
      %v820 = vunpack.c.l.b16 %v265
      %v821 = vunpack.c.l.b16 %v266
      %v822 = vunpack.c.l.b16 %v267
      %v823 = vunpack.c.l.b16 %v268
      %v824 = vunpack.c.l.b16 %v269
      %v825 = vunpack.c.l.b16 %v270
      %v826 = vunpack.c.l.b16 %v271
      %v827 = vunpack.c.l.b16 %v272
      %v828 = vunpack.c.l.b16 %v273
      %v829 = vunpack.c.l.b16 %v274
      %v830 = vunpack.c.l.b16 %v275
      %v831 = vunpack.c.l.b16 %v276
      %v832 = vunpack.c.l.b16 %v277
      %v833 = vunpack.c.l.b16 %v278
      %v834 = vunpack.c.l.b16 %v279
      %v835 = vunpack.c.l.b16 %v280
      %v836 = vunpack.c.l.b16 %v281
      %v837 = vunpack.c.l.b16 %v282
      %v838 = vunpack.c.l.b16 %v283
      %v839 = vunpack.c.l.b16 %v284
      %v840 = vunpack.c.l.b16 %v285
      %v841 = vunpack.c.l.b16 %v286
      %v842 = vunpack.c.l.b16 %v287
      %v843 = vunpack.c.l.b16 %v288
      %v844 = vunpack.c.l.b16 %v289
      %v845 = vunpack.c.l.b16 %v290
      %v846 = vunpack.c.l.b16 %v291
      %v847 = vunpack.c.l.b16 %v292
      %v848 = vunpack.c.l.b16 %v293
      %v849 = vunpack.c.l.b16 %v294
      %v850 = vunpack.c.l.b16 %v295
      %v851 = vunpack.c.l.b16 %v296
      %v852 = vunpack.c.l.b16 %v297
      %v853 = vunpack.c.l.b16 %v298
      %v854 = vunpack.c.l.b16 %v299
      %v855 = vunpack.c.l.b16 %v300
      %v856 = vunpack.c.l.b16 %v301
      %v857 = vunpack.c.l.b16 %v302
      %v858 = vunpack.c.l.b16 %v303
      %v859 = vunpack.c.l.b16 %v304
      %v860 = vunpack.c.l.b16 %v305
      %v861 = vunpack.c.l.b16 %v306
      %v862 = vunpack.c.l.b16 %v307
      %v863 = vunpack.c.l.b16 %v308
      %v864 = vunpack.c.l.b16 %v309
      %v865 = vunpack.c.l.b16 %v310
      %v866 = vunpack.c.l.b16 %v311
      %v867 = vunpack.c.l.b16 %v312
      %v868 = vunpack.c.l.b16 %v313
      %v869 = vunpack.c.l.b16 %v314
      %v870 = vunpack.c.l.b16 %v315
      %v871 = vunpack.c.l.b16 %v316
      %v872 = vunpack.c.l.b16 %v317
      %v873 = vunpack.c.l.b16 %v318
      %v874 = vunpack.c.l.b16 %v319
      %v875 = vunpack.c.l.b16 %v320
      %v876 = vunpack.c.l.b16 %v321
      %v877 = vunpack.c.l.b16 %v322
      %v878 = vunpack.c.l.b16 %v323
      %v879 = vunpack.c.l.b16 %v324
      %v880 = vunpack.c.l.b16 %v325
      %v881 = vunpack.c.l.b16 %v326
      %v882 = vunpack.c.l.b16 %v327
      %v883 = vunpack.c.l.b16 %v328
      %v884 = vunpack.c.l.b16 %v329
      %v885 = vunpack.c.l.b16 %v330
      %v886 = vunpack.c.l.b16 %v331
      %v887 = vunpack.c.l.b16 %v332
      %v888 = vunpack.c.l.b16 %v333
      %v889 = vunpack.c.l.b16 %v334
      %v890 = vunpack.c.l.b16 %v335
      %v891 = vunpack.c.l.b16 %v336
      %v892 = vunpack.c.l.b16 %v337
      %v893 = vunpack.c.l.b16 %v338
      %v894 = vunpack.c.l.b16 %v339
      %v895 = vunpack.c.l.b16 %v340
      %v896 = vunpack.c.l.b16 %v341
      %v897 = vunpack.c.l.b16 %v342
      %v898 = vunpack.c.l.b16 %v343
      %v899 = vunpack.c.l.b16 %v344
      %v900 = vunpack.c.l.b16 %v345
      %v901 = vunpack.c.l.b16 %v346
      %v902 = vunpack.c.l.b16 %v347
      %v903 = vunpack.c.l.b16 %v348
      %v904 = vunpack.c.l.b16 %v349
      %v905 = vunpack.c.l.b16 %v350
      %v906 = vunpack.c.l.b16 %v351
      %v907 = vunpack.c.l.b16 %v352
      %v908 = vunpack.c.l.b16 %v353
      %v909 = vunpack.c.l.b16 %v354
      %v910 = vunpack.c.l.b16 %v355
      %v911 = vpack.c.b16 %v800, %v799
      %v912 = vpack.c.b16 %v802, %v801
      %v913 = vpack.c.b16 %v804, %v803
      %v914 = vpack.c.b16 %v806, %v805
      %v915 = vpack.c.b16 %v808, %v807
      %v916 = vpack.c.b16 %v810, %v809
      %v917 = vpack.c.b16 %v812, %v811
      %v918 = vpack.c.b16 %v814, %v813
      %v919 = vpack.c.b16 %v816, %v815
      %v920 = vpack.c.b16 %v818, %v817
      %v921 = vpack.c.b16 %v820, %v819
      %v922 = vpack.c.b16 %v822, %v821
      %v923 = vpack.c.b16 %v824, %v823
      %v924 = vpack.c.b16 %v826, %v825
      %v925 = vpack.c.b16 %v828, %v827
      %v926 = vpack.c.b16 %v830, %v829
      %v927 = vpack.c.b16 %v832, %v831
      %v928 = vpack.c.b16 %v834, %v833
      %v929 = vpack.c.b16 %v836, %v835
      %v930 = vpack.c.b16 %v838, %v837
      %v931 = vpack.c.b16 %v840, %v839
      %v932 = vpack.c.b16 %v842, %v841
      %v933 = vpack.c.b16 %v844, %v843
      %v934 = vpack.c.b16 %v846, %v845
      %v935 = vpack.c.b16 %v848, %v847
      %v936 = vpack.c.b16 %v850, %v849
      %v937 = vpack.c.b16 %v852, %v851
      %v938 = vpack.c.b16 %v854, %v853
      %v939 = vpack.c.b16 %v856, %v855
      %v940 = vpack.c.b16 %v858, %v857
      %v941 = vpack.c.b16 %v860, %v859
      %v942 = vpack.c.b16 %v862, %v861
      %v943 = vpack.c.b16 %v864, %v863
      %v944 = vpack.c.b16 %v866, %v865
      %v945 = vpack.c.b16 %v868, %v867
      %v946 = vpack.c.b16 %v870, %v869
      %v947 = vpack.c.b16 %v872, %v871
      %v948 = vpack.c.b16 %v874, %v873
      %v949 = vpack.c.b16 %v876, %v875
      %v950 = vpack.c.b16 %v878, %v877
      %v951 = vpack.c.b16 %v880, %v879
      %v952 = vpack.c.b16 %v882, %v881
      %v953 = vpack.c.b16 %v884, %v883
      %v954 = vpack.c.b16 %v886, %v885
      %v955 = vpack.c.b16 %v888, %v887
      %v956 = vpack.c.b16 %v890, %v889
      %v957 = vpack.c.b16 %v892, %v891
      %v958 = vpack.c.b16 %v894, %v893
      %v959 = vpack.c.b16 %v896, %v895
      %v960 = vpack.c.b16 %v898, %v897
      %v961 = vpack.c.b16 %v900, %v899
      %v962 = vpack.c.b16 %v902, %v901
      %v963 = vpack.c.b16 %v904, %v903
      %v964 = vpack.c.b16 %v906, %v905
      %v965 = vpack.c.b16 %v908, %v907
      %v966 = vpack.c.b16 %v910, %v909
      %1023 = vmatprep.subr.bf16.mxu0 0
      %1024 = vmatpush1.bf16.msra.mxu0 %v911
      %1025 = vmatprep.subr.bf16.mxu0 0
      %1026 = vmatpush1.bf16.msra.mxu0 %v912
      %1027 = vmatprep.subr.bf16.mxu0 0
      %1028 = vmatpush1.bf16.msra.mxu0 %v913
      %1029 = vmatprep.subr.bf16.mxu0 0
      %1030 = vmatpush1.bf16.msra.mxu0 %v914
      %1031 = vmatprep.subr.bf16.mxu0 0
      %1032 = vmatpush1.bf16.msra.mxu0 %v915
      %1033 = vmatprep.subr.bf16.mxu0 0
      %1034 = vmatpush1.bf16.msra.mxu0 %v916
      %1035 = vmatprep.subr.bf16.mxu0 0
      %1036 = vmatpush1.bf16.msra.mxu0 %v917
      %1037 = vmatprep.subr.bf16.mxu0 0
      %1038 = vmatpush1.bf16.msra.mxu0 %v918
      %1039 = vmatprep.subr.bf16.mxu0 0
      %1040 = vmatpush1.bf16.msra.mxu0 %v919
      %1041 = vmatprep.subr.bf16.mxu0 0
      %1042 = vmatpush1.bf16.msra.mxu0 %v920
      %1043 = vmatprep.subr.bf16.mxu0 0
      %1044 = vmatpush1.bf16.msra.mxu0 %v921
      %1045 = vmatprep.subr.bf16.mxu0 0
      %1046 = vmatpush1.bf16.msra.mxu0 %v922
      %1047 = vmatprep.subr.bf16.mxu0 0
      %1048 = vmatpush1.bf16.msra.mxu0 %v923
      %1049 = vmatprep.subr.bf16.mxu0 0
      %1050 = vmatpush1.bf16.msra.mxu0 %v924
      %1051 = vmatprep.subr.bf16.mxu0 0
      %1052 = vmatpush1.bf16.msra.mxu0 %v925
      %1053 = vmatprep.subr.bf16.mxu0 0
      %1054 = vmatpush1.bf16.msra.mxu0 %v926
      %1055 = vmatprep.mubr.bf16.mxu0 %v562
      %1056 = vmatmul.mubr.bf16.gmra.mrb[0].mxu0 %v561
      %v1057 = vpop.f32.mrb[0].mxu0
      %v1058 = vadd.f32 %v361, %v1057
      %v1059 = vpop.f32.mrb[0].mxu0
      %v1060 = vpop.f32.mrb[0].mxu0
      %v1061 = vadd.f32 %v361, %v1060
      %v1062 = vpop.f32.mrb[0].mxu0
      %1063 = vmatprep.mubr.bf16.mxu0 %v569
      %1064 = vmatmul.mubr.bf16.gmra.mrb[0].mxu0 %v568
      %v1065 = vpop.f32.mrb[0].mxu0
      %v1066 = vadd.f32 %v361, %v1065
      %v1067 = vpop.f32.mrb[0].mxu0
      %v1068 = vpop.f32.mrb[0].mxu0
      %v1069 = vadd.f32 %v361, %v1068
      %v1070 = vpop.f32.mrb[0].mxu0
      %1071 = vmatprep.mubr.bf16.mxu0 %v576
      %1072 = vmatmul.mubr.bf16.gmra.mrb[0].mxu0 %v575
      %v1073 = vpop.f32.mrb[0].mxu0
      %v1074 = vadd.f32 %v361, %v1073
      %v1075 = vpop.f32.mrb[0].mxu0
      %v1076 = vpop.f32.mrb[0].mxu0
      %v1077 = vadd.f32 %v361, %v1076
      %v1078 = vpop.f32.mrb[0].mxu0
      %1079 = vmatprep.mubr.bf16.mxu0 %v583
      %1080 = vmatmul.mubr.bf16.gmra.mrb[0].mxu0 %v582
      %v1081 = vpop.f32.mrb[0].mxu0
      %v1082 = vadd.f32 %v361, %v1081
      %v1083 = vpop.f32.mrb[0].mxu0
      %v1084 = vpop.f32.mrb[0].mxu0
      %v1085 = vadd.f32 %v361, %v1084
      %v1086 = vpop.f32.mrb[0].mxu0
      %1087 = vmatprep.mubr.bf16.mxu0 %v590
      %1088 = vmatmul.mubr.bf16.gmra.mrb[0].mxu0 %v589
      %v1089 = vpop.f32.mrb[0].mxu0
      %v1090 = vadd.f32 %v361, %v1089
      %v1091 = vpop.f32.mrb[0].mxu0
      %v1092 = vpop.f32.mrb[0].mxu0
      %v1093 = vadd.f32 %v361, %v1092
      %v1094 = vpop.f32.mrb[0].mxu0
      %1095 = vmatprep.mubr.bf16.mxu0 %v597
      %1096 = vmatmul.mubr.bf16.gmra.mrb[0].mxu0 %v596
      %v1097 = vpop.f32.mrb[0].mxu0
      %v1098 = vadd.f32 %v361, %v1097
      %v1099 = vpop.f32.mrb[0].mxu0
      %v1100 = vpop.f32.mrb[0].mxu0
      %v1101 = vadd.f32 %v361, %v1100
      %v1102 = vpop.f32.mrb[0].mxu0
      %1103 = vmatprep.mubr.bf16.mxu0 %v604
      %1104 = vmatmul.mubr.bf16.gmra.mrb[0].mxu0 %v603
      %v1105 = vpop.f32.mrb[0].mxu0
      %v1106 = vadd.f32 %v361, %v1105
      %v1107 = vpop.f32.mrb[0].mxu0
      %v1108 = vpop.f32.mrb[0].mxu0
      %v1109 = vadd.f32 %v361, %v1108
      %v1110 = vpop.f32.mrb[0].mxu0
      %1111 = vmatprep.mubr.bf16.mxu0 %v611
      %1112 = vmatmul.mubr.bf16.gmra.mrb[0].mxu0 %v610
      %v1113 = vpop.f32.mrb[0].mxu0
      %v1114 = vadd.f32 %v361, %v1113
      %v1115 = vpop.f32.mrb[0].mxu0
      %v1116 = vpop.f32.mrb[0].mxu0
      %v1117 = vadd.f32 %v361, %v1116
      %v1118 = vpop.f32.mrb[0].mxu0
      %1119 = vmatprep.mubr.bf16.mxu0 %v618
      %1120 = vmatmul.mubr.bf16.gmra.mrb[0].mxu0 %v617
      %v1121 = vpop.f32.mrb[0].mxu0
      %v1122 = vadd.f32 %v361, %v1121
      %v1123 = vpop.f32.mrb[0].mxu0
      %v1124 = vpop.f32.mrb[0].mxu0
      %v1125 = vadd.f32 %v361, %v1124
      %v1126 = vpop.f32.mrb[0].mxu0
      %1127 = vdwg.mxu0
      %1128 = vmatprep.subr.bf16.mxu0 0
      %1129 = vmatpush1.bf16.msra.mxu0 %v927
      %1130 = vmatprep.subr.bf16.mxu0 0
      %1131 = vmatpush1.bf16.msra.mxu0 %v928
      %1132 = vmatprep.subr.bf16.mxu0 0
      %1133 = vmatpush1.bf16.msra.mxu0 %v929
      %1134 = vmatprep.subr.bf16.mxu0 0
      %1135 = vmatpush1.bf16.msra.mxu0 %v930
      %1136 = vmatprep.subr.bf16.mxu0 0
      %1137 = vmatpush1.bf16.msra.mxu0 %v931
      %1138 = vmatprep.subr.bf16.mxu0 0
      %1139 = vmatpush1.bf16.msra.mxu0 %v932
      %1140 = vmatprep.subr.bf16.mxu0 0
      %1141 = vmatpush1.bf16.msra.mxu0 %v933
      %1142 = vmatprep.subr.bf16.mxu0 0
      %1143 = vmatpush1.bf16.msra.mxu0 %v934
      %1144 = vmatprep.subr.bf16.mxu0 0
      %1145 = vmatpush1.bf16.msra.mxu0 %v935
      %1146 = vmatprep.subr.bf16.mxu0 0
      %1147 = vmatpush1.bf16.msra.mxu0 %v936
      %1148 = vmatprep.subr.bf16.mxu0 0
      %1149 = vmatpush1.bf16.msra.mxu0 %v937
      %1150 = vmatprep.subr.bf16.mxu0 0
      %1151 = vmatpush1.bf16.msra.mxu0 %v938
      %1152 = vmatprep.subr.bf16.mxu0 0
      %1153 = vmatpush1.bf16.msra.mxu0 %v939
      %1154 = vmatprep.subr.bf16.mxu0 0
      %1155 = vmatpush1.bf16.msra.mxu0 %v940
      %1156 = vmatprep.subr.bf16.mxu0 0
      %1157 = vmatpush1.bf16.msra.mxu0 %v941
      %1158 = vmatprep.subr.bf16.mxu0 0
      %1159 = vmatpush1.bf16.msra.mxu0 %v942
      %1160 = vmatprep.mubr.bf16.mxu0 %v564
      %1161 = vmatmul.mubr.bf16.gmra.mrb[0].mxu0 %v563
      %v1162 = vpop.f32.mrb[0].mxu0
      %v1163 = vadd.f32 %v1058, %v1162
      %v1164 = vpop.f32.mrb[0].mxu0
      %v1165 = vpop.f32.mrb[0].mxu0
      %v1166 = vadd.f32 %v1061, %v1165
      %v1167 = vpop.f32.mrb[0].mxu0
      %1168 = vmatprep.mubr.bf16.mxu0 %v571
      %1169 = vmatmul.mubr.bf16.gmra.mrb[0].mxu0 %v570
      %v1170 = vpop.f32.mrb[0].mxu0
      %v1171 = vadd.f32 %v1066, %v1170
      %v1172 = vpop.f32.mrb[0].mxu0
      %v1173 = vpop.f32.mrb[0].mxu0
      %v1174 = vadd.f32 %v1069, %v1173
      %v1175 = vpop.f32.mrb[0].mxu0
      %1176 = vmatprep.mubr.bf16.mxu0 %v578
      %1177 = vmatmul.mubr.bf16.gmra.mrb[0].mxu0 %v577
      %v1178 = vpop.f32.mrb[0].mxu0
      %v1179 = vadd.f32 %v1074, %v1178
      %v1180 = vpop.f32.mrb[0].mxu0
      %v1181 = vpop.f32.mrb[0].mxu0
      %v1182 = vadd.f32 %v1077, %v1181
      %v1183 = vpop.f32.mrb[0].mxu0
      %1184 = vmatprep.mubr.bf16.mxu0 %v585
      %1185 = vmatmul.mubr.bf16.gmra.mrb[0].mxu0 %v584
      %v1186 = vpop.f32.mrb[0].mxu0
      %v1187 = vadd.f32 %v1082, %v1186
      %v1188 = vpop.f32.mrb[0].mxu0
      %v1189 = vpop.f32.mrb[0].mxu0
      %v1190 = vadd.f32 %v1085, %v1189
      %v1191 = vpop.f32.mrb[0].mxu0
      %1192 = vmatprep.mubr.bf16.mxu0 %v592
      %1193 = vmatmul.mubr.bf16.gmra.mrb[0].mxu0 %v591
      %v1194 = vpop.f32.mrb[0].mxu0
      %v1195 = vadd.f32 %v1090, %v1194
      %v1196 = vpop.f32.mrb[0].mxu0
      %v1197 = vpop.f32.mrb[0].mxu0
      %v1198 = vadd.f32 %v1093, %v1197
      %v1199 = vpop.f32.mrb[0].mxu0
      %1200 = vmatprep.mubr.bf16.mxu0 %v599
      %1201 = vmatmul.mubr.bf16.gmra.mrb[0].mxu0 %v598
      %v1202 = vpop.f32.mrb[0].mxu0
      %v1203 = vadd.f32 %v1098, %v1202
      %v1204 = vpop.f32.mrb[0].mxu0
      %v1205 = vpop.f32.mrb[0].mxu0
      %v1206 = vadd.f32 %v1101, %v1205
      %v1207 = vpop.f32.mrb[0].mxu0
      %1208 = vmatprep.mubr.bf16.mxu0 %v606
      %1209 = vmatmul.mubr.bf16.gmra.mrb[0].mxu0 %v605
      %v1210 = vpop.f32.mrb[0].mxu0
      %v1211 = vadd.f32 %v1106, %v1210
      %v1212 = vpop.f32.mrb[0].mxu0
      %v1213 = vpop.f32.mrb[0].mxu0
      %v1214 = vadd.f32 %v1109, %v1213
      %v1215 = vpop.f32.mrb[0].mxu0
      %1216 = vmatprep.mubr.bf16.mxu0 %v613
      %1217 = vmatmul.mubr.bf16.gmra.mrb[0].mxu0 %v612
      %v1218 = vpop.f32.mrb[0].mxu0
      %v1219 = vadd.f32 %v1114, %v1218
      %v1220 = vpop.f32.mrb[0].mxu0
      %v1221 = vpop.f32.mrb[0].mxu0
      %v1222 = vadd.f32 %v1117, %v1221
      %v1223 = vpop.f32.mrb[0].mxu0
      %1224 = vmatprep.mubr.bf16.mxu0 %v620
      %1225 = vmatmul.mubr.bf16.gmra.mrb[0].mxu0 %v619
      %v1226 = vpop.f32.mrb[0].mxu0
      %v1227 = vadd.f32 %v1122, %v1226
      %v1228 = vpop.f32.mrb[0].mxu0
      %v1229 = vpop.f32.mrb[0].mxu0
      %v1230 = vadd.f32 %v1125, %v1229
      %v1231 = vpop.f32.mrb[0].mxu0
      %1232 = vdwg.mxu0
      %1233 = vmatprep.subr.bf16.mxu0 0
      %1234 = vmatpush1.bf16.msra.mxu0 %v943
      %1235 = vmatprep.subr.bf16.mxu0 0
      %1236 = vmatpush1.bf16.msra.mxu0 %v944
      %1237 = vmatprep.subr.bf16.mxu0 0
      %1238 = vmatpush1.bf16.msra.mxu0 %v945
      %1239 = vmatprep.subr.bf16.mxu0 0
      %1240 = vmatpush1.bf16.msra.mxu0 %v946
      %1241 = vmatprep.subr.bf16.mxu0 0
      %1242 = vmatpush1.bf16.msra.mxu0 %v947
      %1243 = vmatprep.subr.bf16.mxu0 0
      %1244 = vmatpush1.bf16.msra.mxu0 %v948
      %1245 = vmatprep.subr.bf16.mxu0 0
      %1246 = vmatpush1.bf16.msra.mxu0 %v949
      %1247 = vmatprep.subr.bf16.mxu0 0
      %1248 = vmatpush1.bf16.msra.mxu0 %v950
      %1249 = vmatprep.subr.bf16.mxu0 0
      %1250 = vmatpush1.bf16.msra.mxu0 %v951
      %1251 = vmatprep.subr.bf16.mxu0 0
      %1252 = vmatpush1.bf16.msra.mxu0 %v952
      %1253 = vmatprep.subr.bf16.mxu0 0
      %1254 = vmatpush1.bf16.msra.mxu0 %v953
      %1255 = vmatprep.subr.bf16.mxu0 0
      %1256 = vmatpush1.bf16.msra.mxu0 %v954
      %1257 = vmatprep.subr.bf16.mxu0 0
      %1258 = vmatpush1.bf16.msra.mxu0 %v955
      %1259 = vmatprep.subr.bf16.mxu0 0
      %1260 = vmatpush1.bf16.msra.mxu0 %v956
      %1261 = vmatprep.subr.bf16.mxu0 0
      %1262 = vmatpush1.bf16.msra.mxu0 %v957
      %1263 = vmatprep.subr.bf16.mxu0 0
      %1264 = vmatpush1.bf16.msra.mxu0 %v958
      %1265 = vmatprep.mubr.bf16.mxu0 %v566
      %1266 = vmatmul.mubr.bf16.gmra.mrb[0].mxu0 %v565
      %v1267 = vpop.f32.mrb[0].mxu0
      %v1268 = vadd.f32 %v1163, %v1267
      %v1269 = vpop.f32.mrb[0].mxu0
      %v1270 = vpop.f32.mrb[0].mxu0
      %v1271 = vadd.f32 %v1166, %v1270
      %v1272 = vpop.f32.mrb[0].mxu0
      %1273 = vmatprep.mubr.bf16.mxu0 %v573
      %1274 = vmatmul.mubr.bf16.gmra.mrb[0].mxu0 %v572
      %v1275 = vpop.f32.mrb[0].mxu0
      %v1276 = vadd.f32 %v1171, %v1275
      %v1277 = vpop.f32.mrb[0].mxu0
      %v1278 = vpop.f32.mrb[0].mxu0
      %v1279 = vadd.f32 %v1174, %v1278
      %v1280 = vpop.f32.mrb[0].mxu0
      %1281 = vmatprep.mubr.bf16.mxu0 %v580
      %1282 = vmatmul.mubr.bf16.gmra.mrb[0].mxu0 %v579
      %v1283 = vpop.f32.mrb[0].mxu0
      %v1284 = vadd.f32 %v1179, %v1283
      %v1285 = vpop.f32.mrb[0].mxu0
      %v1286 = vpop.f32.mrb[0].mxu0
      %v1287 = vadd.f32 %v1182, %v1286
      %v1288 = vpop.f32.mrb[0].mxu0
      %1289 = vmatprep.mubr.bf16.mxu0 %v587
      %1290 = vmatmul.mubr.bf16.gmra.mrb[0].mxu0 %v586
      %v1291 = vpop.f32.mrb[0].mxu0
      %v1292 = vadd.f32 %v1187, %v1291
      %v1293 = vpop.f32.mrb[0].mxu0
      %v1294 = vpop.f32.mrb[0].mxu0
      %v1295 = vadd.f32 %v1190, %v1294
      %v1296 = vpop.f32.mrb[0].mxu0
      %1297 = vmatprep.mubr.bf16.mxu0 %v594
      %1298 = vmatmul.mubr.bf16.gmra.mrb[0].mxu0 %v593
      %v1299 = vpop.f32.mrb[0].mxu0
      %v1300 = vadd.f32 %v1195, %v1299
      %v1301 = vpop.f32.mrb[0].mxu0
      %v1302 = vpop.f32.mrb[0].mxu0
      %v1303 = vadd.f32 %v1198, %v1302
      %v1304 = vpop.f32.mrb[0].mxu0
      %1305 = vmatprep.mubr.bf16.mxu0 %v601
      %1306 = vmatmul.mubr.bf16.gmra.mrb[0].mxu0 %v600
      %v1307 = vpop.f32.mrb[0].mxu0
      %v1308 = vadd.f32 %v1203, %v1307
      %v1309 = vpop.f32.mrb[0].mxu0
      %v1310 = vpop.f32.mrb[0].mxu0
      %v1311 = vadd.f32 %v1206, %v1310
      %v1312 = vpop.f32.mrb[0].mxu0
      %1313 = vmatprep.mubr.bf16.mxu0 %v608
      %1314 = vmatmul.mubr.bf16.gmra.mrb[0].mxu0 %v607
      %v1315 = vpop.f32.mrb[0].mxu0
      %v1316 = vadd.f32 %v1211, %v1315
      %v1317 = vpop.f32.mrb[0].mxu0
      %v1318 = vpop.f32.mrb[0].mxu0
      %v1319 = vadd.f32 %v1214, %v1318
      %v1320 = vpop.f32.mrb[0].mxu0
      %1321 = vmatprep.mubr.bf16.mxu0 %v615
      %1322 = vmatmul.mubr.bf16.gmra.mrb[0].mxu0 %v614
      %v1323 = vpop.f32.mrb[0].mxu0
      %v1324 = vadd.f32 %v1219, %v1323
      %v1325 = vpop.f32.mrb[0].mxu0
      %v1326 = vpop.f32.mrb[0].mxu0
      %v1327 = vadd.f32 %v1222, %v1326
      %v1328 = vpop.f32.mrb[0].mxu0
      %1329 = vmatprep.mubr.bf16.mxu0 %v622
      %1330 = vmatmul.mubr.bf16.gmra.mrb[0].mxu0 %v621
      %v1331 = vpop.f32.mrb[0].mxu0
      %v1332 = vadd.f32 %v1227, %v1331
      %v1333 = vpop.f32.mrb[0].mxu0
      %v1334 = vpop.f32.mrb[0].mxu0
      %v1335 = vadd.f32 %v1230, %v1334
      %v1336 = vpop.f32.mrb[0].mxu0
      %1337 = vdwg.mxu0
      %1338 = vmatprep.subr.bf16.mxu0 0
      %1339 = vmatpush1.bf16.msra.mxu0 %v959
      %1340 = vmatprep.subr.bf16.mxu0 0
      %1341 = vmatpush1.bf16.msra.mxu0 %v960
      %1342 = vmatprep.subr.bf16.mxu0 0
      %1343 = vmatpush1.bf16.msra.mxu0 %v961
      %1344 = vmatprep.subr.bf16.mxu0 0
      %1345 = vmatpush1.bf16.msra.mxu0 %v962
      %1346 = vmatprep.subr.bf16.mxu0 0
      %1347 = vmatpush1.bf16.msra.mxu0 %v963
      %1348 = vmatprep.subr.bf16.mxu0 0
      %1349 = vmatpush1.bf16.msra.mxu0 %v964
      %1350 = vmatprep.subr.bf16.mxu0 0
      %1351 = vmatpush1.bf16.msra.mxu0 %v965
      %1352 = vmatprep.subr.bf16.mxu0 0
      %1353 = vmatpush1.bf16.msra.mxu0 %v966
      %1354 = vmatprep.subr.bf16.mxu0 0
      %1355 = vmatpush1.bf16.msra.mxu0 0
      %1356 = vmatprep.subr.bf16.mxu0 0
      %1357 = vmatpush1.bf16.msra.mxu0 0
      %1358 = vmatprep.subr.bf16.mxu0 0
      %1359 = vmatpush1.bf16.msra.mxu0 0
      %1360 = vmatprep.subr.bf16.mxu0 0
      %1361 = vmatpush1.bf16.msra.mxu0 0
      %1362 = vmatprep.subr.bf16.mxu0 0
      %1363 = vmatpush1.bf16.msra.mxu0 0
      %1364 = vmatprep.subr.bf16.mxu0 0
      %1365 = vmatpush1.bf16.msra.mxu0 0
      %1366 = vmatprep.subr.bf16.mxu0 0
      %1367 = vmatpush1.bf16.msra.mxu0 0
      %1368 = vmatprep.subr.bf16.mxu0 0
      %1369 = vmatpush1.bf16.msra.mxu0 0
      %1370 = vmatprep.mubr.bf16.mxu0 0
      %1371 = vmatmul.mubr.bf16.gmra.mrb[0].mxu0 %v567
      %v1372 = vpop.f32.mrb[0].mxu0
      %v1373 = vadd.f32 %v1268, %v1372
      %v1374 = vpop.f32.mrb[0].mxu0
      %v1375 = vpop.f32.mrb[0].mxu0
      %v1376 = vadd.f32 %v1271, %v1375
      %v1377 = vpop.f32.mrb[0].mxu0
      %1378 = vmatprep.mubr.bf16.mxu0 0
      %1379 = vmatmul.mubr.bf16.gmra.mrb[0].mxu0 %v574
      %v1380 = vpop.f32.mrb[0].mxu0
      %v1381 = vadd.f32 %v1276, %v1380
      %v1382 = vpop.f32.mrb[0].mxu0
      %v1383 = vpop.f32.mrb[0].mxu0
      %v1384 = vadd.f32 %v1279, %v1383
      %v1385 = vpop.f32.mrb[0].mxu0
      %1386 = vmatprep.mubr.bf16.mxu0 0
      %1387 = vmatmul.mubr.bf16.gmra.mrb[0].mxu0 %v581
      %v1388 = vpop.f32.mrb[0].mxu0
      %v1389 = vadd.f32 %v1284, %v1388
      %v1390 = vpop.f32.mrb[0].mxu0
      %v1391 = vpop.f32.mrb[0].mxu0
      %v1392 = vadd.f32 %v1287, %v1391
      %v1393 = vpop.f32.mrb[0].mxu0
      %1394 = vmatprep.mubr.bf16.mxu0 0
      %1395 = vmatmul.mubr.bf16.gmra.mrb[0].mxu0 %v588
      %v1396 = vpop.f32.mrb[0].mxu0
      %v1397 = vadd.f32 %v1292, %v1396
      %v1398 = vpop.f32.mrb[0].mxu0
      %v1399 = vpop.f32.mrb[0].mxu0
      %v1400 = vadd.f32 %v1295, %v1399
      %v1401 = vpop.f32.mrb[0].mxu0
      %1402 = vmatprep.mubr.bf16.mxu0 0
      %1403 = vmatmul.mubr.bf16.gmra.mrb[0].mxu0 %v595
      %v1404 = vpop.f32.mrb[0].mxu0
      %v1405 = vadd.f32 %v1300, %v1404
      %v1406 = vpop.f32.mrb[0].mxu0
      %v1407 = vpop.f32.mrb[0].mxu0
      %v1408 = vadd.f32 %v1303, %v1407
      %v1409 = vpop.f32.mrb[0].mxu0
      %1410 = vmatprep.mubr.bf16.mxu0 0
      %1411 = vmatmul.mubr.bf16.gmra.mrb[0].mxu0 %v602
      %v1412 = vpop.f32.mrb[0].mxu0
      %v1413 = vadd.f32 %v1308, %v1412
      %v1414 = vpop.f32.mrb[0].mxu0
      %v1415 = vpop.f32.mrb[0].mxu0
      %v1416 = vadd.f32 %v1311, %v1415
      %v1417 = vpop.f32.mrb[0].mxu0
      %1418 = vmatprep.mubr.bf16.mxu0 0
      %1419 = vmatmul.mubr.bf16.gmra.mrb[0].mxu0 %v609
      %v1420 = vpop.f32.mrb[0].mxu0
      %v1421 = vadd.f32 %v1316, %v1420
      %v1422 = vpop.f32.mrb[0].mxu0
      %v1423 = vpop.f32.mrb[0].mxu0
      %v1424 = vadd.f32 %v1319, %v1423
      %v1425 = vpop.f32.mrb[0].mxu0
      %1426 = vmatprep.mubr.bf16.mxu0 0
      %1427 = vmatmul.mubr.bf16.gmra.mrb[0].mxu0 %v616
      %v1428 = vpop.f32.mrb[0].mxu0
      %v1429 = vadd.f32 %v1324, %v1428
      %v1430 = vpop.f32.mrb[0].mxu0
      %v1431 = vpop.f32.mrb[0].mxu0
      %v1432 = vadd.f32 %v1327, %v1431
      %v1433 = vpop.f32.mrb[0].mxu0
      %1434 = vmatprep.mubr.bf16.mxu0 0
      %1435 = vmatmul.mubr.bf16.gmra.mrb[0].mxu0 %v623
      %v1436 = vpop.f32.mrb[0].mxu0
      %v1437 = vadd.f32 %v1332, %v1436
      %v1438 = vpop.f32.mrb[0].mxu0
      %v1439 = vpop.f32.mrb[0].mxu0
      %v1440 = vadd.f32 %v1335, %v1439
      %v1441 = vpop.f32.mrb[0].mxu0
      %1442 = vdwg.mxu0
      %v1443 = vmax.f32 %v1373, 0.0
      %v1444 = vmax.f32 %v1376, 0.0
      %v1445 = vmax.f32 %v1381, 0.0
      %v1446 = vmax.f32 %v1384, 0.0
      %v1447 = vmax.f32 %v1389, 0.0
      %v1448 = vmax.f32 %v1392, 0.0
      %v1449 = vmax.f32 %v1397, 0.0
      %v1450 = vmax.f32 %v1400, 0.0
      %v1451 = vmax.f32 %v1405, 0.0
      %v1452 = vmax.f32 %v1408, 0.0
      %v1453 = vmax.f32 %v1413, 0.0
      %v1454 = vmax.f32 %v1416, 0.0
      %v1455 = vmax.f32 %v1421, 0.0
      %v1456 = vmax.f32 %v1424, 0.0
      %v1457 = vmax.f32 %v1429, 0.0
      %v1458 = vmax.f32 %v1432, 0.0
      %v1459 = vmax.f32 %v1437, 0.0
      %v1460 = vmax.f32 %v1440, 0.0
      %v1461 = vrot.slane %v1443, 1
      %v1462 = vrot.slane %v1444, 1
      %v1463 = vrot.slane %v1445, 1
      %v1464 = vrot.slane %v1446, 1
      %v1465 = vrot.slane %v1447, 1
      %v1466 = vrot.slane %v1448, 1
      %v1467 = vrot.slane %v1449, 1
      %v1468 = vrot.slane %v1450, 1
      %v1469 = vrot.slane %v1451, 1
      %v1470 = vrot.slane %v1452, 1
      %v1471 = vrot.slane %v1453, 1
      %v1472 = vrot.slane %v1454, 1
      %v1473 = vrot.slane %v1455, 1
      %v1474 = vrot.slane %v1456, 1
      %v1475 = vrot.slane %v1457, 1
      %v1476 = vrot.slane %v1458, 1
      %v1477 = vrot.slane %v1459, 1
      %v1478 = vrot.slane %v1460, 1
      %v1479 = vlaneseq
      %v1480 = vshrl.u32 %v1479, 7
      %vm1481 = vcmp.lt.s32.totalorder %v1480, 7
      %v1482 = vsel %vm1481, %v1477, %v1478
      %v1483 = vsel %vm1481, %v1476, %v1477
      %v1484 = vsel %vm1481, %v1475, %v1476
      %v1485 = vsel %vm1481, %v1474, %v1475
      %v1486 = vsel %vm1481, %v1473, %v1474
      %v1487 = vsel %vm1481, %v1472, %v1473
      %v1488 = vsel %vm1481, %v1471, %v1472
      %v1489 = vsel %vm1481, %v1470, %v1471
      %v1490 = vsel %vm1481, %v1469, %v1470
      %v1491 = vsel %vm1481, %v1468, %v1469
      %v1492 = vsel %vm1481, %v1467, %v1468
      %v1493 = vsel %vm1481, %v1466, %v1467
      %v1494 = vsel %vm1481, %v1465, %v1466
      %v1495 = vsel %vm1481, %v1464, %v1465
      %v1496 = vsel %vm1481, %v1463, %v1464
      %v1497 = vsel %vm1481, %v1462, %v1463
      %v1498 = vsel %vm1481, %v1461, %v1462
      %v1499 = vsel %vm1481, %v1478, %v1461
      %v1500 = vmax.f32 %v1443, %v1498
      %v1501 = vmax.f32 %v1444, %v1497
      %v1502 = vmax.f32 %v1445, %v1496
      %v1503 = vmax.f32 %v1446, %v1495
      %v1504 = vmax.f32 %v1447, %v1494
      %v1505 = vmax.f32 %v1448, %v1493
      %v1506 = vmax.f32 %v1449, %v1492
      %v1507 = vmax.f32 %v1450, %v1491
      %v1508 = vmax.f32 %v1451, %v1490
      %v1509 = vmax.f32 %v1452, %v1489
      %v1510 = vmax.f32 %v1453, %v1488
      %v1511 = vmax.f32 %v1454, %v1487
      %v1512 = vmax.f32 %v1455, %v1486
      %v1513 = vmax.f32 %v1456, %v1485
      %v1514 = vmax.f32 %v1457, %v1484
      %v1515 = vmax.f32 %v1458, %v1483
      %v1516 = vmax.f32 %v1459, %v1482
      %v1517 = vmax.f32 %v1460, %v1499
      %v1518 = vrot.slane %v1500, 4
      %v1519 = vrot.slane %v1501, 4
      %v1520 = vrot.slane %v1502, 4
      %v1521 = vrot.slane %v1503, 4
      %v1522 = vrot.slane %v1504, 4
      %v1523 = vrot.slane %v1505, 4
      %v1524 = vrot.slane %v1506, 4
      %v1525 = vrot.slane %v1507, 4
      %v1526 = vrot.slane %v1508, 4
      %v1527 = vrot.slane %v1509, 4
      %v1528 = vrot.slane %v1510, 4
      %v1529 = vrot.slane %v1511, 4
      %v1530 = vrot.slane %v1512, 4
      %v1531 = vrot.slane %v1513, 4
      %v1532 = vrot.slane %v1514, 4
      %v1533 = vrot.slane %v1515, 4
      %v1534 = vrot.slane %v1516, 4
      %v1535 = vrot.slane %v1517, 4
      %vm1536 = vcmp.lt.s32.totalorder %v1480, 4
      %v1537 = vsel %vm1536, %v1534, %v1535
      %v1538 = vsel %vm1536, %v1533, %v1534
      %v1539 = vsel %vm1536, %v1532, %v1533
      %v1540 = vsel %vm1536, %v1531, %v1532
      %v1541 = vsel %vm1536, %v1530, %v1531
      %v1542 = vsel %vm1536, %v1529, %v1530
      %v1543 = vsel %vm1536, %v1528, %v1529
      %v1544 = vsel %vm1536, %v1527, %v1528
      %v1545 = vsel %vm1536, %v1526, %v1527
      %v1546 = vsel %vm1536, %v1525, %v1526
      %v1547 = vsel %vm1536, %v1524, %v1525
      %v1548 = vsel %vm1536, %v1523, %v1524
      %v1549 = vsel %vm1536, %v1522, %v1523
      %v1550 = vsel %vm1536, %v1521, %v1522
      %v1551 = vsel %vm1536, %v1520, %v1521
      %v1552 = vsel %vm1536, %v1519, %v1520
      %v1553 = vsel %vm1536, %v1518, %v1519
      %v1554 = vsel %vm1536, %v1535, %v1518
      %v1555 = vmax.f32 %v1500, %v1552
      %v1556 = vmax.f32 %v1501, %v1551
      %v1557 = vmax.f32 %v1502, %v1550
      %v1558 = vmax.f32 %v1503, %v1549
      %v1559 = vmax.f32 %v1504, %v1548
      %v1560 = vmax.f32 %v1505, %v1547
      %v1561 = vmax.f32 %v1506, %v1546
      %v1562 = vmax.f32 %v1507, %v1545
      %v1563 = vmax.f32 %v1508, %v1544
      %v1564 = vmax.f32 %v1509, %v1543
      %v1565 = vmax.f32 %v1510, %v1542
      %v1566 = vmax.f32 %v1511, %v1541
      %v1567 = vmax.f32 %v1512, %v1540
      %v1568 = vmax.f32 %v1513, %v1539
      %v1569 = vmax.f32 %v1514, %v1538
      %v1570 = vmax.f32 %v1515, %v1537
      %v1571 = vmax.f32 %v1516, %v1554
      %v1572 = vmax.f32 %v1517, %v1553
      %v1573 = vpack.c.bf16 %v1556, %v1555
      %v1574 = vpack.c.bf16 %v1558, %v1557
      %v1575 = vpack.c.bf16 %v1560, %v1559
      %v1576 = vpack.c.bf16 %v1562, %v1561
      %v1577 = vpack.c.bf16 %v1564, %v1563
      %v1578 = vpack.c.bf16 %v1566, %v1565
      %v1579 = vpack.c.bf16 %v1568, %v1567
      %v1580 = vpack.c.bf16 %v1570, %v1569
      %v1581 = vpack.c.bf16 %v1572, %v1571
      %v1591 = vunpack.c.l.b16 %v1573
      %v1592 = vunpack.c.h.b16 %v1573
      %v1593 = vunpack.c.l.b16 %v1574
      %v1594 = vunpack.c.h.b16 %v1574
      %v1595 = vunpack.c.l.b16 %v1575
      %v1596 = vunpack.c.h.b16 %v1575
      %v1597 = vunpack.c.l.b16 %v1576
      %v1598 = vunpack.c.h.b16 %v1576
      %v1599 = vunpack.c.l.b16 %v1577
      %v1600 = vunpack.c.h.b16 %v1577
      %v1601 = vunpack.c.l.b16 %v1578
      %v1602 = vunpack.c.h.b16 %v1578
      %v1603 = vunpack.c.l.b16 %v1579
      %v1604 = vunpack.c.h.b16 %v1579
      %v1605 = vunpack.c.l.b16 %v1580
      %v1606 = vunpack.c.h.b16 %v1580
      %v1607 = vunpack.c.l.b16 %v1581
      %v1608 = vunpack.c.h.b16 %v1581
      %v1609 = vpack.c.b16 %v1591, %v1591
      %v1610 = vpack.c.b16 %v1592, %v1592
      %v1611 = vpack.c.b16 %v1593, %v1593
      %v1612 = vpack.c.b16 %v1594, %v1594
      %v1613 = vpack.c.b16 %v1595, %v1595
      %v1614 = vpack.c.b16 %v1596, %v1596
      %v1615 = vpack.c.b16 %v1597, %v1597
      %v1616 = vpack.c.b16 %v1598, %v1598
      %v1617 = vpack.c.b16 %v1599, %v1599
      %v1618 = vpack.c.b16 %v1600, %v1600
      %v1619 = vpack.c.b16 %v1601, %v1601
      %v1620 = vpack.c.b16 %v1602, %v1602
      %v1621 = vpack.c.b16 %v1603, %v1603
      %v1622 = vpack.c.b16 %v1604, %v1604
      %v1623 = vpack.c.b16 %v1605, %v1605
      %v1624 = vpack.c.b16 %v1606, %v1606
      %v1625 = vpack.c.b16 %v1607, %v1607
      %v1626 = vpack.c.b16 %v1608, %v1608
      %1645 = vst [vmem:[%s170] sm:$0xf] %v1609
      %1646 = vst [vmem:[%s170 + $0x4] sm:$0xf] %v1610
      %1647 = vst [vmem:[%s170 + $0x8] sm:$0xf] %v1611
      %1648 = vst [vmem:[%s170 + $0xc] sm:$0xf] %v1612
      %1649 = vst [vmem:[%s170 + $0x10] sm:$0xf] %v1613
      %1650 = vst [vmem:[%s170 + $0x14] sm:$0xf] %v1614
      %1651 = vst [vmem:[%s170 + $0x18] sm:$0xf] %v1615
      %1652 = vst [vmem:[%s170 + $0x1c] sm:$0xf] %v1616
      %1653 = vst [vmem:[%s170 + $0x20] sm:$0xf] %v1617
      %1654 = vst [vmem:[%s170 + $0x24] sm:$0xf] %v1618
      %1655 = vst [vmem:[%s170 + $0x28] sm:$0xf] %v1619
      %1656 = vst [vmem:[%s170 + $0x2c] sm:$0xf] %v1620
      %1657 = vst [vmem:[%s170 + $0x30] sm:$0xf] %v1621
      %1658 = vst [vmem:[%s170 + $0x34] sm:$0xf] %v1622
      %1659 = vst [vmem:[%s170 + $0x38] sm:$0xf] %v1623
      %1660 = vst [vmem:[%s170 + $0x3c] sm:$0xf] %v1624
      %1661 = vst [vmem:[%s170 + $0x40] sm:$0xf] %v1625
      %1662 = vst [vmem:[%s170 + $0x44] sm:$0xf] %v1626
      %p1663 = scmp.lt.s32.totalorder %s14, 1
      %s1664 = scalar_select %p1663, %s14, 1
      %s1665 = smul.addr %s1664, 18
      %s1666 = smul.addr %s1665, 4
      %s1667 = scalar_lea.vmem %s3, %s1666
      // Predicated region
      $region33: #{cnn_forward.4} parent=31 // pred_check
        %p1668 = pneg %p100
      $region34: #{cnn_forward.4} parent=31 // pred_check_branch
        %1670 = sbr.rel (%p1668) target = $region36
      $region35: #{cnn_forward.4} parent=31 // pred_region
        _
      $region36: #{cnn_forward.4} parent=31 // pred_fallthru
        _
    $region32: #{cnn_forward.4} parent=5 // pred_fallthru
      _
    %p1671 = scmp.le.s32.totalorder 2, %s9
    // Predicated region
    $region37: #{cnn_forward.4} parent=5 // pred_check
      %p1672 = pneg %p1671
    $region38: #{cnn_forward.4} parent=5 // pred_check_branch
      %1674 = sbr.rel (%p1672) target = $region40
    $region39: #{cnn_forward.4} parent=5 // pred_region
      %s1675 = ssub.s32 %s9, 2
      // Predicated region
      $region41: #{cnn_forward.4} parent=39 // pred_check
        %p1676 = pneg %p106
      $region42: #{cnn_forward.4} parent=39 // pred_check_branch
        %1678 = sbr.rel (%p1676) target = $region44
      $region43: #{cnn_forward.4} parent=39 // pred_region
        %p1679 = scmp.lt.s32.totalorder %s15, 1
        %s1680 = scalar_select %p1679, %s15, 1
        %s1681 = smul.addr %s1680, 18
        %s1682 = smul.addr %s1681, 4
        %s1683 = scalar_lea.vmem %s3, %s1682
      $region44: #{cnn_forward.4} parent=39 // pred_fallthru
        _
    $region40: #{cnn_forward.4} parent=5 // pred_fallthru
      _
  $region6: #{cnn_forward.4} parent=0 // loop_footer
    %s13 = sadd.s32 1, %s9
  $region7: #{cnn_forward.4} parent=0 // loop_footer_branch
    %8 = sbr.rel target = $region3
  $region8: #{cnn_forward.4} parent=0 // loop_exit
    _

// kernel: cnn_forward.5
$region0: #{cnn_forward.5}
  #allocation0 [shape = 'u32[]', space=smem, size = 0x4, offset = 0x4, fixed_abs, tag = 'smem constant byte address 0x4 - core index']
  #allocation1 [shape = 'u32[144,128]{1,0:T(1,128)}', space=vmem, size = 0x12000, scoped, tag = 'internal scratch']
  %s0 = inlined_call_operand.vmem [shape: bf16[2,16,1664], index: 0, kind: input, shape index: {}]
  %s1 = inlined_call_operand.vmem [shape: bf16[1664,64], index: 1, kind: input, shape index: {}]
  %s2 = inlined_call_operand.vmem [shape: f32[1,64], index: 2, kind: input, shape index: {}]
  %s3 = inlined_call_operand.vmem [shape: bf16[16,64,64], index: 3, kind: input, shape index: {}]
  %s4 = inlined_call_operand.vmem [shape: f32[1,64], index: 4, kind: input, shape index: {}]
  %s5 = inlined_call_operand.vmem [shape: bf16[64,128], index: 5, kind: input, shape index: {}]
  %s6 = inlined_call_operand.vmem [shape: f32[1,128], index: 6, kind: input, shape index: {}]
  %s7 = inlined_call_operand.hbm [shape: f32[2,1,128], index: 7, kind: output, shape index: {}]
  %s8 = sld [smem:[#allocation0]]
  $region61: #{cnn_forward.5} parent=0
    _
  %s10 = ssub.s32 1, %s8
  %s11 = scalar_select 0, %s10, %s8
  $region1: #{cnn_forward.5} parent=0
    #allocation2 [shape = 'u8[1024]{0}', space=vmem, size = 0x400, scoped, tag = 'output window, operand 0']
    #allocation3 [shape = 's32[2]{0}', space=sflag, size = 0x8, scoped, tag = 'scoped memory for cnn_forward.5']
    %12 = vsyncpa [#allocation3], 0
    %s13 = scalar_lea.sflag [#allocation3], 1
    %14 = vsyncpa %s13, 0
    loop: start=0, step=1, limit=4
    $region2: #{cnn_forward.5} parent=1 // loop_pre_header
      _
    $region3: #{cnn_forward.5} parent=1 // loop_header
      %s16 = sphi 0, %s20
      %p17 = scmp.ge.s32.totalorder %s16, 4
      %s26 = sphi 0, %s28
      %s29 = sphi 0, %s26
      %s30 = sphi 0, %s29
      %s46 = sphi 0, %s30
      %s50 = sphi 0, %s50
      %s52 = sphi 0, %s50
      %s53 = sphi 0, %s52
      %s67 = sphi 0, %s53
      %s71 = sphi 0, %s71
      %s73 = sphi 0, %s71
      %s74 = sphi 0, %s73
      %s88 = sphi 0, %s74
      %s92 = sphi 0, %s92
      %s94 = sphi 0, %s92
      %s95 = sphi 0, %s94
      %s109 = sphi 0, %s95
      %s113 = sphi 0, %s113
      %s115 = sphi 0, %s113
      %s116 = sphi 0, %s115
      %s130 = sphi 0, %s116
      %s134 = sphi 0, %s134
      %s136 = sphi 0, %s134
      %s137 = sphi 0, %s136
      %s151 = sphi 0, %s137
      %s155 = sphi 0, %s155
      %s157 = sphi 0, %s155
      %s158 = sphi 0, %s157
      %s172 = sphi 0, %s158
      %s178 = sphi 0, %s180
      %s181 = sphi 0, %s178
      %s182 = sphi 0, %s181
      %s198 = sphi 0, %s182
    $region4: #{cnn_forward.5} parent=1 // loop_header_branch
      %19 = sbr.rel (%p17) target = $region8
    $region5: #{cnn_forward.5} parent=1 // loop_body
      %s21 = ssub.s32 %s16, 1
      %s22 = ssub.s32 %s16, 2
      %s23 = sadd.s32 %s16, 1
      %s24 = ssub.s32 %s16, %s23
      %p25 = scmp.eq.s32.totalorder %s24, 0
      %s27 = sadd.s32 %s26, 1
      %s28 = scalar_select %p25, %s26, %s27
      %p31 = pneg %p25
      %p32 = scmp.eq.s32.totalorder %s16, 1
      %p33 = por %p31, %p32
      %p34 = scmp.ne.s32.totalorder %s26, %s29
      %p35 = scmp.eq.s32.totalorder %s16, 0
      %p36 = por %p34, %p35
      %p37 = scmp.ne.s32.totalorder %s26, %s29
      %p38 = scmp.eq.s32.totalorder %s21, 1
      %p39 = por %p37, %p38
      %p40 = scmp.ne.s32.totalorder %s29, %s30
      %p41 = scmp.eq.s32.totalorder %s21, 0
      %p42 = por %p40, %p41
      %p43 = scmp.ne.s32.totalorder %s29, %s30
      %p44 = scmp.eq.s32.totalorder %s22, 1
      %p45 = por %p43, %p44
      %p47 = scmp.ne.s32.totalorder %s30, %s46
      %p48 = scmp.eq.s32.totalorder %s22, 0
      %p49 = por %p47, %p48
      %s51 = sadd.s32 %s50, 1
      %p54 = scmp.eq.s32.totalorder %s16, 1
      %p55 = scmp.ne.s32.totalorder %s50, %s52
      %p56 = scmp.eq.s32.totalorder %s16, 0
      %p57 = por %p55, %p56
      %p58 = scmp.ne.s32.totalorder %s50, %s52
      %p59 = scmp.eq.s32.totalorder %s21, 1
      %p60 = por %p58, %p59
      %p61 = scmp.ne.s32.totalorder %s52, %s53
      %p62 = scmp.eq.s32.totalorder %s21, 0
      %p63 = por %p61, %p62
      %p64 = scmp.ne.s32.totalorder %s52, %s53
      %p65 = scmp.eq.s32.totalorder %s22, 1
      %p66 = por %p64, %p65
      %p68 = scmp.ne.s32.totalorder %s53, %s67
      %p69 = scmp.eq.s32.totalorder %s22, 0
      %p70 = por %p68, %p69
      %s72 = sadd.s32 %s71, 1
      %p75 = scmp.eq.s32.totalorder %s16, 1
      %p76 = scmp.ne.s32.totalorder %s71, %s73
      %p77 = scmp.eq.s32.totalorder %s16, 0
      %p78 = por %p76, %p77
      %p79 = scmp.ne.s32.totalorder %s71, %s73
      %p80 = scmp.eq.s32.totalorder %s21, 1
      %p81 = por %p79, %p80
      %p82 = scmp.ne.s32.totalorder %s73, %s74
      %p83 = scmp.eq.s32.totalorder %s21, 0
      %p84 = por %p82, %p83
      %p85 = scmp.ne.s32.totalorder %s73, %s74
      %p86 = scmp.eq.s32.totalorder %s22, 1
      %p87 = por %p85, %p86
      %p89 = scmp.ne.s32.totalorder %s74, %s88
      %p90 = scmp.eq.s32.totalorder %s22, 0
      %p91 = por %p89, %p90
      %s93 = sadd.s32 %s92, 1
      %p96 = scmp.eq.s32.totalorder %s16, 1
      %p97 = scmp.ne.s32.totalorder %s92, %s94
      %p98 = scmp.eq.s32.totalorder %s16, 0
      %p99 = por %p97, %p98
      %p100 = scmp.ne.s32.totalorder %s92, %s94
      %p101 = scmp.eq.s32.totalorder %s21, 1
      %p102 = por %p100, %p101
      %p103 = scmp.ne.s32.totalorder %s94, %s95
      %p104 = scmp.eq.s32.totalorder %s21, 0
      %p105 = por %p103, %p104
      %p106 = scmp.ne.s32.totalorder %s94, %s95
      %p107 = scmp.eq.s32.totalorder %s22, 1
      %p108 = por %p106, %p107
      %p110 = scmp.ne.s32.totalorder %s95, %s109
      %p111 = scmp.eq.s32.totalorder %s22, 0
      %p112 = por %p110, %p111
      %s114 = sadd.s32 %s113, 1
      %p117 = scmp.eq.s32.totalorder %s16, 1
      %p118 = scmp.ne.s32.totalorder %s113, %s115
      %p119 = scmp.eq.s32.totalorder %s16, 0
      %p120 = por %p118, %p119
      %p121 = scmp.ne.s32.totalorder %s113, %s115
      %p122 = scmp.eq.s32.totalorder %s21, 1
      %p123 = por %p121, %p122
      %p124 = scmp.ne.s32.totalorder %s115, %s116
      %p125 = scmp.eq.s32.totalorder %s21, 0
      %p126 = por %p124, %p125
      %p127 = scmp.ne.s32.totalorder %s115, %s116
      %p128 = scmp.eq.s32.totalorder %s22, 1
      %p129 = por %p127, %p128
      %p131 = scmp.ne.s32.totalorder %s116, %s130
      %p132 = scmp.eq.s32.totalorder %s22, 0
      %p133 = por %p131, %p132
      %s135 = sadd.s32 %s134, 1
      %p138 = scmp.eq.s32.totalorder %s16, 1
      %p139 = scmp.ne.s32.totalorder %s134, %s136
      %p140 = scmp.eq.s32.totalorder %s16, 0
      %p141 = por %p139, %p140
      %p142 = scmp.ne.s32.totalorder %s134, %s136
      %p143 = scmp.eq.s32.totalorder %s21, 1
      %p144 = por %p142, %p143
      %p145 = scmp.ne.s32.totalorder %s136, %s137
      %p146 = scmp.eq.s32.totalorder %s21, 0
      %p147 = por %p145, %p146
      %p148 = scmp.ne.s32.totalorder %s136, %s137
      %p149 = scmp.eq.s32.totalorder %s22, 1
      %p150 = por %p148, %p149
      %p152 = scmp.ne.s32.totalorder %s137, %s151
      %p153 = scmp.eq.s32.totalorder %s22, 0
      %p154 = por %p152, %p153
      %s156 = sadd.s32 %s155, 1
      %p159 = scmp.eq.s32.totalorder %s16, 1
      %p160 = scmp.ne.s32.totalorder %s155, %s157
      %p161 = scmp.eq.s32.totalorder %s16, 0
      %p162 = por %p160, %p161
      %p163 = scmp.ne.s32.totalorder %s155, %s157
      %p164 = scmp.eq.s32.totalorder %s21, 1
      %p165 = por %p163, %p164
      %p166 = scmp.ne.s32.totalorder %s157, %s158
      %p167 = scmp.eq.s32.totalorder %s21, 0
      %p168 = por %p166, %p167
      %p169 = scmp.ne.s32.totalorder %s157, %s158
      %p170 = scmp.eq.s32.totalorder %s22, 1
      %p171 = por %p169, %p170
      %p173 = scmp.ne.s32.totalorder %s158, %s172
      %p174 = scmp.eq.s32.totalorder %s22, 0
      %p175 = por %p173, %p174
      %s176 = ssub.s32 %s16, %s23
      %p177 = scmp.eq.s32.totalorder %s176, 0
      %s179 = sadd.s32 %s178, 1
      %s180 = scalar_select %p177, %s178, %s179
      %p183 = pneg %p177
      %p184 = scmp.eq.s32.totalorder %s16, 1
      %p185 = por %p183, %p184
      %p186 = scmp.ne.s32.totalorder %s178, %s181
      %p187 = scmp.eq.s32.totalorder %s16, 0
      %p188 = por %p186, %p187
      %p189 = scmp.ne.s32.totalorder %s178, %s181
      %p190 = scmp.eq.s32.totalorder %s21, 1
      %p191 = por %p189, %p190
      %p192 = scmp.ne.s32.totalorder %s181, %s182
      %p193 = scmp.eq.s32.totalorder %s21, 0
      %p194 = por %p192, %p193
      %p195 = scmp.ne.s32.totalorder %s181, %s182
      %p196 = scmp.eq.s32.totalorder %s22, 1
      %p197 = por %p195, %p196
      %p199 = scmp.ne.s32.totalorder %s182, %s198
      %p200 = scmp.eq.s32.totalorder %s22, 0
      %p201 = por %p199, %p200
      %p202 = scmp.le.s32.totalorder 1, %s16
      %p203 = scmp.lt.s32.totalorder %s16, 3
      %p204 = pnand %p202, %p203
      %p205 = pneg %p204
      // Predicated region
      $region9: #{cnn_forward.5} parent=5 // pred_check
        _
      $region10: #{cnn_forward.5} parent=5 // pred_check_branch
        %207 = sbr.rel (%p204) target = $region12
      $region11: #{cnn_forward.5} parent=5 // pred_region
        %s208 = ssub.s32 %s16, 1
        // Predicated region
        $region13: #{cnn_forward.5} parent=11 // pred_check
          %p209 = pneg %p63
        $region14: #{cnn_forward.5} parent=11 // pred_check_branch
          %211 = sbr.rel (%p209) target = $region16
        $region15: #{cnn_forward.5} parent=11 // pred_region
          _
        $region16: #{cnn_forward.5} parent=11 // pred_fallthru
          _
        // Predicated region
        $region17: #{cnn_forward.5} parent=11 // pred_check
          %p212 = pneg %p84
        $region18: #{cnn_forward.5} parent=11 // pred_check_branch
          %214 = sbr.rel (%p212) target = $region20
        $region19: #{cnn_forward.5} parent=11 // pred_region
          _
        $region20: #{cnn_forward.5} parent=11 // pred_fallthru
          _
        // Predicated region
        $region21: #{cnn_forward.5} parent=11 // pred_check
          %p215 = pneg %p105
        $region22: #{cnn_forward.5} parent=11 // pred_check_branch
          %217 = sbr.rel (%p215) target = $region24
        $region23: #{cnn_forward.5} parent=11 // pred_region
          _
        $region24: #{cnn_forward.5} parent=11 // pred_fallthru
          _
        // Predicated region
        $region25: #{cnn_forward.5} parent=11 // pred_check
          %p218 = pneg %p126
        $region26: #{cnn_forward.5} parent=11 // pred_check_branch
          %220 = sbr.rel (%p218) target = $region28
        $region27: #{cnn_forward.5} parent=11 // pred_region
          _
        $region28: #{cnn_forward.5} parent=11 // pred_fallthru
          _
        // Predicated region
        $region29: #{cnn_forward.5} parent=11 // pred_check
          %p221 = pneg %p147
        $region30: #{cnn_forward.5} parent=11 // pred_check_branch
          %223 = sbr.rel (%p221) target = $region32
        $region31: #{cnn_forward.5} parent=11 // pred_region
          _
        $region32: #{cnn_forward.5} parent=11 // pred_fallthru
          _
        // Predicated region
        $region33: #{cnn_forward.5} parent=11 // pred_check
          %p224 = pneg %p168
        $region34: #{cnn_forward.5} parent=11 // pred_check_branch
          %226 = sbr.rel (%p224) target = $region36
        $region35: #{cnn_forward.5} parent=11 // pred_region
          _
        $region36: #{cnn_forward.5} parent=11 // pred_fallthru
          _
      $region12: #{cnn_forward.5} parent=5 // pred_fallthru
        _
      %p227 = scmp.lt.s32.totalorder %s16, 2
      // Predicated region
      $region37: #{cnn_forward.5} parent=5 // pred_check
        %p228 = pneg %p227
      $region38: #{cnn_forward.5} parent=5 // pred_check_branch
        %230 = sbr.rel (%p228) target = $region40
      $region39: #{cnn_forward.5} parent=5 // pred_region
        // Predicated region
        $region41: #{cnn_forward.5} parent=39 // pred_check
          %p231 = pneg %p36
        $region42: #{cnn_forward.5} parent=39 // pred_check_branch
          %233 = sbr.rel (%p231) target = $region44
        $region43: #{cnn_forward.5} parent=39 // pred_region
          %p234 = scmp.lt.s32.totalorder %s16, 1
          %s235 = scalar_select %p234, %s16, 1
          %s236 = smul.addr %s235, 26
          %s237 = smul.addr %s236, 4
          %s238 = scalar_lea.vmem %s0, %s237
        $region44: #{cnn_forward.5} parent=39 // pred_fallthru
          _
      $region40: #{cnn_forward.5} parent=5 // pred_fallthru
        _
      %p239 = scmp.le.s32.totalorder 1, %s16
      %p240 = scmp.lt.s32.totalorder %s16, 3
      %p241 = pnand %p239, %p240
      %p242 = pneg %p241
      // Predicated region
      $region45: #{cnn_forward.5} parent=5 // pred_check
        _
      $region46: #{cnn_forward.5} parent=5 // pred_check_branch
        %244 = sbr.rel (%p241) target = $region48
      $region47: #{cnn_forward.5} parent=5 // pred_region
        %s245 = ssub.s32 %s16, 1
        %p246 = scmp.lt.s32.totalorder %s21, 1
        %s247 = scalar_select %p246, %s21, 1
        %s248 = smul.addr %s247, 26
        %s249 = smul.addr %s248, 4
        %s250 = scalar_lea.vmem %s0, %s249
        %p251 = pneg %p42
        %p252 = pneg %p39
        %p253 = pneg %p63
        %p254 = pneg %p60
        %p255 = pneg %p84
        %p256 = pneg %p81
        %p257 = pneg %p105
        %p258 = pneg %p102
        %p259 = pneg %p126
        %p260 = pneg %p123
        %p261 = pneg %p147
        %p262 = pneg %p144
        %p263 = pneg %p168
        %p264 = pneg %p165
        %p265 = pneg %p194
        %p266 = pneg %p191
        %s267 = sand.u32 %s181, 1
        %s268 = scalar_lea.sflag [#allocation3], %s267
        %s269 = sand.u32 %s181, 1
        %s270 = scalar_lea.vmem [#allocation2], %s269
        %p271 = scmp.lt.s32.totalorder %s21, 1
        %s272 = scalar_select %p271, %s21, 1
        %s273 = smul.addr %s272, 26
        %s274 = smul.addr %s273, 4
        %s275 = scalar_lea.vmem %s0, %s274
        %v277 = vld [vmem:[%s275] sm:$0xff]
        %v278 = vld [vmem:[%s275 + $0x8] sm:$0xff]
        %v279 = vld [vmem:[%s275 + $0x10] sm:$0xff]
        %v280 = vld [vmem:[%s275 + $0x18] sm:$0xff]
        %v281 = vld [vmem:[%s275 + $0x20] sm:$0xff]
        %v282 = vld [vmem:[%s275 + $0x28] sm:$0xff]
        %v283 = vld [vmem:[%s275 + $0x30] sm:$0xf]
        %v284 = vld [vmem:[%s275 + $0x34] sm:$0xff]
        %v285 = vld [vmem:[%s275 + $0x3c] sm:$0xff]
        %v286 = vld [vmem:[%s275 + $0x44] sm:$0xff]
        %v287 = vld [vmem:[%s275 + $0x4c] sm:$0xff]
        %v288 = vld [vmem:[%s275 + $0x54] sm:$0xff]
        %v289 = vld [vmem:[%s275 + $0x5c] sm:$0xff]
        %v290 = vld [vmem:[%s275 + $0x64] sm:$0xf]
        %v291 = vld [vmem:[%s1] sm:$0xf]
        %v292 = vld [vmem:[%s1 + $0x4] sm:$0xf]
        %v293 = vld [vmem:[%s1 + $0x8] sm:$0xf]
        %v294 = vld [vmem:[%s1 + $0xc] sm:$0xf]
        %v295 = vld [vmem:[%s1 + $0x10] sm:$0xf]
        %v296 = vld [vmem:[%s1 + $0x14] sm:$0xf]
        %v297 = vld [vmem:[%s1 + $0x18] sm:$0xf]
        %v298 = vld [vmem:[%s1 + $0x1c] sm:$0xf]
        %v299 = vld [vmem:[%s1 + $0x20] sm:$0xf]
        %v300 = vld [vmem:[%s1 + $0x24] sm:$0xf]
        %v301 = vld [vmem:[%s1 + $0x28] sm:$0xf]
        %v302 = vld [vmem:[%s1 + $0x2c] sm:$0xf]
        %v303 = vld [vmem:[%s1 + $0x30] sm:$0xf]
        %v304 = vld [vmem:[%s1 + $0x34] sm:$0xf]
        %v305 = vld [vmem:[%s1 + $0x38] sm:$0xf]
        %v306 = vld [vmem:[%s1 + $0x3c] sm:$0xf]
        %v307 = vld [vmem:[%s1 + $0x40] sm:$0xf]
        %v308 = vld [vmem:[%s1 + $0x44] sm:$0xf]
        %v309 = vld [vmem:[%s1 + $0x48] sm:$0xf]
        %v310 = vld [vmem:[%s1 + $0x4c] sm:$0xf]
        %v311 = vld [vmem:[%s1 + $0x50] sm:$0xf]
        %v312 = vld [vmem:[%s1 + $0x54] sm:$0xf]
        %v313 = vld [vmem:[%s1 + $0x58] sm:$0xf]
        %v314 = vld [vmem:[%s1 + $0x5c] sm:$0xf]
        %v315 = vld [vmem:[%s1 + $0x60] sm:$0xf]
        %v316 = vld [vmem:[%s1 + $0x64] sm:$0xf]
        %v317 = vld [vmem:[%s1 + $0x68] sm:$0xf]
        %v318 = vld [vmem:[%s1 + $0x6c] sm:$0xf]
        %v319 = vld [vmem:[%s1 + $0x70] sm:$0xf]
        %v320 = vld [vmem:[%s1 + $0x74] sm:$0xf]
        %v321 = vld [vmem:[%s1 + $0x78] sm:$0xf]
        %v322 = vld [vmem:[%s1 + $0x7c] sm:$0xf]
        %v323 = vld [vmem:[%s1 + $0x80] sm:$0xf]
        %v324 = vld [vmem:[%s1 + $0x84] sm:$0xf]
        %v325 = vld [vmem:[%s1 + $0x88] sm:$0xf]
        %v326 = vld [vmem:[%s1 + $0x8c] sm:$0xf]
        %v327 = vld [vmem:[%s1 + $0x90] sm:$0xf]
        %v328 = vld [vmem:[%s1 + $0x94] sm:$0xf]
        %v329 = vld [vmem:[%s1 + $0x98] sm:$0xf]
        %v330 = vld [vmem:[%s1 + $0x9c] sm:$0xf]
        %v331 = vld [vmem:[%s1 + $0xa0] sm:$0xf]
        %v332 = vld [vmem:[%s1 + $0xa4] sm:$0xf]
        %v333 = vld [vmem:[%s1 + $0xa8] sm:$0xf]
        %v334 = vld [vmem:[%s1 + $0xac] sm:$0xf]
        %v335 = vld [vmem:[%s1 + $0xb0] sm:$0xf]
        %v336 = vld [vmem:[%s1 + $0xb4] sm:$0xf]
        %v337 = vld [vmem:[%s1 + $0xb8] sm:$0xf]
        %v338 = vld [vmem:[%s1 + $0xbc] sm:$0xf]
        %v339 = vld [vmem:[%s1 + $0xc0] sm:$0xf]
        %v340 = vld [vmem:[%s1 + $0xc4] sm:$0xf]
        %v341 = vld [vmem:[%s1 + $0xc8] sm:$0xf]
        %v342 = vld [vmem:[%s1 + $0xcc] sm:$0xf]
        %v343 = vld [vmem:[%s1 + $0xd0] sm:$0xf]
        %v344 = vld [vmem:[%s1 + $0xd4] sm:$0xf]
        %v345 = vld [vmem:[%s1 + $0xd8] sm:$0xf]
        %v346 = vld [vmem:[%s1 + $0xdc] sm:$0xf]
        %v347 = vld [vmem:[%s1 + $0xe0] sm:$0xf]
        %v348 = vld [vmem:[%s1 + $0xe4] sm:$0xf]
        %v349 = vld [vmem:[%s1 + $0xe8] sm:$0xf]
        %v350 = vld [vmem:[%s1 + $0xec] sm:$0xf]
        %v351 = vld [vmem:[%s1 + $0xf0] sm:$0xf]
        %v352 = vld [vmem:[%s1 + $0xf4] sm:$0xf]
        %v353 = vld [vmem:[%s1 + $0xf8] sm:$0xf]
        %v354 = vld [vmem:[%s1 + $0xfc] sm:$0xf]
        %v355 = vld [vmem:[%s1 + $0x100] sm:$0xf]
        %v356 = vld [vmem:[%s1 + $0x104] sm:$0xf]
        %v357 = vld [vmem:[%s1 + $0x108] sm:$0xf]
        %v358 = vld [vmem:[%s1 + $0x10c] sm:$0xf]
        %v359 = vld [vmem:[%s1 + $0x110] sm:$0xf]
        %v360 = vld [vmem:[%s1 + $0x114] sm:$0xf]
        %v361 = vld [vmem:[%s1 + $0x118] sm:$0xf]
        %v362 = vld [vmem:[%s1 + $0x11c] sm:$0xf]
        %v363 = vld [vmem:[%s1 + $0x120] sm:$0xf]
        %v364 = vld [vmem:[%s1 + $0x124] sm:$0xf]
        %v365 = vld [vmem:[%s1 + $0x128] sm:$0xf]
        %v366 = vld [vmem:[%s1 + $0x12c] sm:$0xf]
        %v367 = vld [vmem:[%s1 + $0x130] sm:$0xf]
        %v368 = vld [vmem:[%s1 + $0x134] sm:$0xf]
        %v369 = vld [vmem:[%s1 + $0x138] sm:$0xf]
        %v370 = vld [vmem:[%s1 + $0x13c] sm:$0xf]
        %v371 = vld [vmem:[%s1 + $0x140] sm:$0xf]
        %v372 = vld [vmem:[%s1 + $0x144] sm:$0xf]
        %v373 = vld [vmem:[%s1 + $0x148] sm:$0xf]
        %v374 = vld [vmem:[%s1 + $0x14c] sm:$0xf]
        %v375 = vld [vmem:[%s1 + $0x150] sm:$0xf]
        %v376 = vld [vmem:[%s1 + $0x154] sm:$0xf]
        %v377 = vld [vmem:[%s1 + $0x158] sm:$0xf]
        %v378 = vld [vmem:[%s1 + $0x15c] sm:$0xf]
        %v379 = vld [vmem:[%s1 + $0x160] sm:$0xf]
        %v380 = vld [vmem:[%s1 + $0x164] sm:$0xf]
        %v381 = vld [vmem:[%s1 + $0x168] sm:$0xf]
        %v382 = vld [vmem:[%s1 + $0x16c] sm:$0xf]
        %v383 = vld [vmem:[%s1 + $0x170] sm:$0xf]
        %v384 = vld [vmem:[%s1 + $0x174] sm:$0xf]
        %v385 = vld [vmem:[%s1 + $0x178] sm:$0xf]
        %v386 = vld [vmem:[%s1 + $0x17c] sm:$0xf]
        %v387 = vld [vmem:[%s1 + $0x180] sm:$0xf]
        %v388 = vld [vmem:[%s1 + $0x184] sm:$0xf]
        %v389 = vld [vmem:[%s1 + $0x188] sm:$0xf]
        %v390 = vld [vmem:[%s1 + $0x18c] sm:$0xf]
        %v391 = vld [vmem:[%s1 + $0x190] sm:$0xf]
        %v392 = vld [vmem:[%s1 + $0x194] sm:$0xf]
        %v393 = vld [vmem:[%s1 + $0x198] sm:$0xf]
        %v394 = vld [vmem:[%s1 + $0x19c] sm:$0xf]
        %v395 = vld [vmem:[%s1 + $0x1a0] sm:$0xf]
        %v396 = vld [vmem:[%s1 + $0x1a4] sm:$0xf]
        %v397 = vld [vmem:[%s1 + $0x1a8] sm:$0xf]
        %v398 = vld [vmem:[%s1 + $0x1ac] sm:$0xf]
        %v399 = vld [vmem:[%s1 + $0x1b0] sm:$0xf]
        %v400 = vld [vmem:[%s1 + $0x1b4] sm:$0xf]
        %v401 = vld [vmem:[%s1 + $0x1b8] sm:$0xf]
        %v402 = vld [vmem:[%s1 + $0x1bc] sm:$0xf]
        %v403 = vld [vmem:[%s1 + $0x1c0] sm:$0xf]
        %v404 = vld [vmem:[%s1 + $0x1c4] sm:$0xf]
        %v405 = vld [vmem:[%s1 + $0x1c8] sm:$0xf]
        %v406 = vld [vmem:[%s1 + $0x1cc] sm:$0xf]
        %v407 = vld [vmem:[%s1 + $0x1d0] sm:$0xf]
        %v408 = vld [vmem:[%s1 + $0x1d4] sm:$0xf]
        %v409 = vld [vmem:[%s1 + $0x1d8] sm:$0xf]
        %v410 = vld [vmem:[%s1 + $0x1dc] sm:$0xf]
        %v411 = vld [vmem:[%s1 + $0x1e0] sm:$0xf]
        %v412 = vld [vmem:[%s1 + $0x1e4] sm:$0xf]
        %v413 = vld [vmem:[%s1 + $0x1e8] sm:$0xf]
        %v414 = vld [vmem:[%s1 + $0x1ec] sm:$0xf]
        %v415 = vld [vmem:[%s1 + $0x1f0] sm:$0xf]
        %v416 = vld [vmem:[%s1 + $0x1f4] sm:$0xf]
        %v417 = vld [vmem:[%s1 + $0x1f8] sm:$0xf]
        %v418 = vld [vmem:[%s1 + $0x1fc] sm:$0xf]
        %v419 = vld [vmem:[%s1 + $0x200] sm:$0xf]
        %v420 = vld [vmem:[%s1 + $0x204] sm:$0xf]
        %v421 = vld [vmem:[%s1 + $0x208] sm:$0xf]
        %v422 = vld [vmem:[%s1 + $0x20c] sm:$0xf]
        %v423 = vld [vmem:[%s1 + $0x210] sm:$0xf]
        %v424 = vld [vmem:[%s1 + $0x214] sm:$0xf]
        %v425 = vld [vmem:[%s1 + $0x218] sm:$0xf]
        %v426 = vld [vmem:[%s1 + $0x21c] sm:$0xf]
        %v427 = vld [vmem:[%s1 + $0x220] sm:$0xf]
        %v428 = vld [vmem:[%s1 + $0x224] sm:$0xf]
        %v429 = vld [vmem:[%s1 + $0x228] sm:$0xf]
        %v430 = vld [vmem:[%s1 + $0x22c] sm:$0xf]
        %v431 = vld [vmem:[%s1 + $0x230] sm:$0xf]
        %v432 = vld [vmem:[%s1 + $0x234] sm:$0xf]
        %v433 = vld [vmem:[%s1 + $0x238] sm:$0xf]
        %v434 = vld [vmem:[%s1 + $0x23c] sm:$0xf]
        %v435 = vld [vmem:[%s1 + $0x240] sm:$0xf]
        %v436 = vld [vmem:[%s1 + $0x244] sm:$0xf]
        %v437 = vld [vmem:[%s1 + $0x248] sm:$0xf]
        %v438 = vld [vmem:[%s1 + $0x24c] sm:$0xf]
        %v439 = vld [vmem:[%s1 + $0x250] sm:$0xf]
        %v440 = vld [vmem:[%s1 + $0x254] sm:$0xf]
        %v441 = vld [vmem:[%s1 + $0x258] sm:$0xf]
        %v442 = vld [vmem:[%s1 + $0x25c] sm:$0xf]
        %v443 = vld [vmem:[%s1 + $0x260] sm:$0xf]
        %v444 = vld [vmem:[%s1 + $0x264] sm:$0xf]
        %v445 = vld [vmem:[%s1 + $0x268] sm:$0xf]
        %v446 = vld [vmem:[%s1 + $0x26c] sm:$0xf]
        %v447 = vld [vmem:[%s1 + $0x270] sm:$0xf]
        %v448 = vld [vmem:[%s1 + $0x274] sm:$0xf]
        %v449 = vld [vmem:[%s1 + $0x278] sm:$0xf]
        %v450 = vld [vmem:[%s1 + $0x27c] sm:$0xf]
        %v451 = vld [vmem:[%s1 + $0x280] sm:$0xf]
        %v452 = vld [vmem:[%s1 + $0x284] sm:$0xf]
        %v453 = vld [vmem:[%s1 + $0x288] sm:$0xf]
        %v454 = vld [vmem:[%s1 + $0x28c] sm:$0xf]
        %v455 = vld [vmem:[%s1 + $0x290] sm:$0xf]
        %v456 = vld [vmem:[%s1 + $0x294] sm:$0xf]
        %v457 = vld [vmem:[%s1 + $0x298] sm:$0xf]
        %v458 = vld [vmem:[%s1 + $0x29c] sm:$0xf]
        %v459 = vld [vmem:[%s1 + $0x2a0] sm:$0xf]
        %v460 = vld [vmem:[%s1 + $0x2a4] sm:$0xf]
        %v461 = vld [vmem:[%s1 + $0x2a8] sm:$0xf]
        %v462 = vld [vmem:[%s1 + $0x2ac] sm:$0xf]
        %v463 = vld [vmem:[%s1 + $0x2b0] sm:$0xf]
        %v464 = vld [vmem:[%s1 + $0x2b4] sm:$0xf]
        %v465 = vld [vmem:[%s1 + $0x2b8] sm:$0xf]
        %v466 = vld [vmem:[%s1 + $0x2bc] sm:$0xf]
        %v467 = vld [vmem:[%s1 + $0x2c0] sm:$0xf]
        %v468 = vld [vmem:[%s1 + $0x2c4] sm:$0xf]
        %v469 = vld [vmem:[%s1 + $0x2c8] sm:$0xf]
        %v470 = vld [vmem:[%s1 + $0x2cc] sm:$0xf]
        %v471 = vld [vmem:[%s1 + $0x2d0] sm:$0xf]
        %v472 = vld [vmem:[%s1 + $0x2d4] sm:$0xf]
        %v473 = vld [vmem:[%s1 + $0x2d8] sm:$0xf]
        %v474 = vld [vmem:[%s1 + $0x2dc] sm:$0xf]
        %v475 = vld [vmem:[%s1 + $0x2e0] sm:$0xf]
        %v476 = vld [vmem:[%s1 + $0x2e4] sm:$0xf]
        %v477 = vld [vmem:[%s1 + $0x2e8] sm:$0xf]
        %v478 = vld [vmem:[%s1 + $0x2ec] sm:$0xf]
        %v479 = vld [vmem:[%s1 + $0x2f0] sm:$0xf]
        %v480 = vld [vmem:[%s1 + $0x2f4] sm:$0xf]
        %v481 = vld [vmem:[%s1 + $0x2f8] sm:$0xf]
        %v482 = vld [vmem:[%s1 + $0x2fc] sm:$0xf]
        %v483 = vld [vmem:[%s1 + $0x300] sm:$0xf]
        %v484 = vld [vmem:[%s1 + $0x304] sm:$0xf]
        %v485 = vld [vmem:[%s1 + $0x308] sm:$0xf]
        %v486 = vld [vmem:[%s1 + $0x30c] sm:$0xf]
        %v487 = vld [vmem:[%s1 + $0x310] sm:$0xf]
        %v488 = vld [vmem:[%s1 + $0x314] sm:$0xf]
        %v489 = vld [vmem:[%s1 + $0x318] sm:$0xf]
        %v490 = vld [vmem:[%s1 + $0x31c] sm:$0xf]
        %v491 = vld [vmem:[%s1 + $0x320] sm:$0xf]
        %v492 = vld [vmem:[%s1 + $0x324] sm:$0xf]
        %v493 = vld [vmem:[%s1 + $0x328] sm:$0xf]
        %v494 = vld [vmem:[%s1 + $0x32c] sm:$0xf]
        %v495 = vld [vmem:[%s1 + $0x330] sm:$0xf]
        %v496 = vld [vmem:[%s1 + $0x334] sm:$0xf]
        %v497 = vld [vmem:[%s1 + $0x338] sm:$0xf]
        %v498 = vld [vmem:[%s1 + $0x33c] sm:$0xf]
        %v499 = vld [vmem:[%s2] sm:$0x1]
        %v501 = vlaneseq
        %v502 = vshrl.u32 %v501, 7
        %v503 = vsub.s32 0, %v502
        %v504 = vrot.slane %v499, %v503
        %v520 = vunpack.c.l.b16 %v277
        %v521 = vunpack.c.h.b16 %v277
        %v522 = vunpack.c.l.b16 %v278
        %v523 = vunpack.c.h.b16 %v278
        %v524 = vunpack.c.l.b16 %v279
        %v525 = vunpack.c.h.b16 %v279
        %v526 = vunpack.c.l.b16 %v280
        %v527 = vunpack.c.h.b16 %v280
        %v528 = vunpack.c.l.b16 %v281
        %v529 = vunpack.c.h.b16 %v281
        %v530 = vunpack.c.l.b16 %v282
        %v531 = vunpack.c.h.b16 %v282
        %v532 = vunpack.c.l.b16 %v283
        %v533 = vunpack.c.l.b16 %v284
        %v534 = vunpack.c.h.b16 %v284
        %v535 = vunpack.c.l.b16 %v285
        %v536 = vunpack.c.h.b16 %v285
        %v537 = vunpack.c.l.b16 %v286
        %v538 = vunpack.c.h.b16 %v286
        %v539 = vunpack.c.l.b16 %v287
        %v540 = vunpack.c.h.b16 %v287
        %v541 = vunpack.c.l.b16 %v288
        %v542 = vunpack.c.h.b16 %v288
        %v543 = vunpack.c.l.b16 %v289
        %v544 = vunpack.c.h.b16 %v289
        %v545 = vunpack.c.l.b16 %v290
        %v546 = vpack.c.b16 %v533, %v520
        %v547 = vpack.c.b16 %v534, %v521
        %v548 = vpack.c.b16 %v535, %v522
        %v549 = vpack.c.b16 %v536, %v523
        %v550 = vpack.c.b16 %v537, %v524
        %v551 = vpack.c.b16 %v538, %v525
        %v552 = vpack.c.b16 %v539, %v526
        %v553 = vpack.c.b16 %v540, %v527
        %v554 = vpack.c.b16 %v541, %v528
        %v555 = vpack.c.b16 %v542, %v529
        %v556 = vpack.c.b16 %v543, %v530
        %v557 = vpack.c.b16 %v544, %v531
        %v558 = vpack.c.b16 %v545, %v532
        %v780 = vunpack.c.l.b16 %v291
        %v781 = vunpack.c.l.b16 %v292
        %v782 = vunpack.c.l.b16 %v293
        %v783 = vunpack.c.l.b16 %v294
        %v784 = vunpack.c.l.b16 %v295
        %v785 = vunpack.c.l.b16 %v296
        %v786 = vunpack.c.l.b16 %v297
        %v787 = vunpack.c.l.b16 %v298
        %v788 = vunpack.c.l.b16 %v299
        %v789 = vunpack.c.l.b16 %v300
        %v790 = vunpack.c.l.b16 %v301
        %v791 = vunpack.c.l.b16 %v302
        %v792 = vunpack.c.l.b16 %v303
        %v793 = vunpack.c.l.b16 %v304
        %v794 = vunpack.c.l.b16 %v305
        %v795 = vunpack.c.l.b16 %v306
        %v796 = vunpack.c.l.b16 %v307
        %v797 = vunpack.c.l.b16 %v308
        %v798 = vunpack.c.l.b16 %v309
        %v799 = vunpack.c.l.b16 %v310
        %v800 = vunpack.c.l.b16 %v311
        %v801 = vunpack.c.l.b16 %v312
        %v802 = vunpack.c.l.b16 %v313
        %v803 = vunpack.c.l.b16 %v314
        %v804 = vunpack.c.l.b16 %v315
        %v805 = vunpack.c.l.b16 %v316
        %v806 = vunpack.c.l.b16 %v317
        %v807 = vunpack.c.l.b16 %v318
        %v808 = vunpack.c.l.b16 %v319
        %v809 = vunpack.c.l.b16 %v320
        %v810 = vunpack.c.l.b16 %v321
        %v811 = vunpack.c.l.b16 %v322
        %v812 = vunpack.c.l.b16 %v323
        %v813 = vunpack.c.l.b16 %v324
        %v814 = vunpack.c.l.b16 %v325
        %v815 = vunpack.c.l.b16 %v326
        %v816 = vunpack.c.l.b16 %v327
        %v817 = vunpack.c.l.b16 %v328
        %v818 = vunpack.c.l.b16 %v329
        %v819 = vunpack.c.l.b16 %v330
        %v820 = vunpack.c.l.b16 %v331
        %v821 = vunpack.c.l.b16 %v332
        %v822 = vunpack.c.l.b16 %v333
        %v823 = vunpack.c.l.b16 %v334
        %v824 = vunpack.c.l.b16 %v335
        %v825 = vunpack.c.l.b16 %v336
        %v826 = vunpack.c.l.b16 %v337
        %v827 = vunpack.c.l.b16 %v338
        %v828 = vunpack.c.l.b16 %v339
        %v829 = vunpack.c.l.b16 %v340
        %v830 = vunpack.c.l.b16 %v341
        %v831 = vunpack.c.l.b16 %v342
        %v832 = vunpack.c.l.b16 %v343
        %v833 = vunpack.c.l.b16 %v344
        %v834 = vunpack.c.l.b16 %v345
        %v835 = vunpack.c.l.b16 %v346
        %v836 = vunpack.c.l.b16 %v347
        %v837 = vunpack.c.l.b16 %v348
        %v838 = vunpack.c.l.b16 %v349
        %v839 = vunpack.c.l.b16 %v350
        %v840 = vunpack.c.l.b16 %v351
        %v841 = vunpack.c.l.b16 %v352
        %v842 = vunpack.c.l.b16 %v353
        %v843 = vunpack.c.l.b16 %v354
        %v844 = vunpack.c.l.b16 %v355
        %v845 = vunpack.c.l.b16 %v356
        %v846 = vunpack.c.l.b16 %v357
        %v847 = vunpack.c.l.b16 %v358
        %v848 = vunpack.c.l.b16 %v359
        %v849 = vunpack.c.l.b16 %v360
        %v850 = vunpack.c.l.b16 %v361
        %v851 = vunpack.c.l.b16 %v362
        %v852 = vunpack.c.l.b16 %v363
        %v853 = vunpack.c.l.b16 %v364
        %v854 = vunpack.c.l.b16 %v365
        %v855 = vunpack.c.l.b16 %v366
        %v856 = vunpack.c.l.b16 %v367
        %v857 = vunpack.c.l.b16 %v368
        %v858 = vunpack.c.l.b16 %v369
        %v859 = vunpack.c.l.b16 %v370
        %v860 = vunpack.c.l.b16 %v371
        %v861 = vunpack.c.l.b16 %v372
        %v862 = vunpack.c.l.b16 %v373
        %v863 = vunpack.c.l.b16 %v374
        %v864 = vunpack.c.l.b16 %v375
        %v865 = vunpack.c.l.b16 %v376
        %v866 = vunpack.c.l.b16 %v377
        %v867 = vunpack.c.l.b16 %v378
        %v868 = vunpack.c.l.b16 %v379
        %v869 = vunpack.c.l.b16 %v380
        %v870 = vunpack.c.l.b16 %v381
        %v871 = vunpack.c.l.b16 %v382
        %v872 = vunpack.c.l.b16 %v383
        %v873 = vunpack.c.l.b16 %v384
        %v874 = vunpack.c.l.b16 %v385
        %v875 = vunpack.c.l.b16 %v386
        %v876 = vunpack.c.l.b16 %v387
        %v877 = vunpack.c.l.b16 %v388
        %v878 = vunpack.c.l.b16 %v389
        %v879 = vunpack.c.l.b16 %v390
        %v880 = vunpack.c.l.b16 %v391
        %v881 = vunpack.c.l.b16 %v392
        %v882 = vunpack.c.l.b16 %v393
        %v883 = vunpack.c.l.b16 %v394
        %v884 = vunpack.c.l.b16 %v395
        %v885 = vunpack.c.l.b16 %v396
        %v886 = vunpack.c.l.b16 %v397
        %v887 = vunpack.c.l.b16 %v398
        %v888 = vunpack.c.l.b16 %v399
        %v889 = vunpack.c.l.b16 %v400
        %v890 = vunpack.c.l.b16 %v401
        %v891 = vunpack.c.l.b16 %v402
        %v892 = vunpack.c.l.b16 %v403
        %v893 = vunpack.c.l.b16 %v404
        %v894 = vunpack.c.l.b16 %v405
        %v895 = vunpack.c.l.b16 %v406
        %v896 = vunpack.c.l.b16 %v407
        %v897 = vunpack.c.l.b16 %v408
        %v898 = vunpack.c.l.b16 %v409
        %v899 = vunpack.c.l.b16 %v410
        %v900 = vunpack.c.l.b16 %v411
        %v901 = vunpack.c.l.b16 %v412
        %v902 = vunpack.c.l.b16 %v413
        %v903 = vunpack.c.l.b16 %v414
        %v904 = vunpack.c.l.b16 %v415
        %v905 = vunpack.c.l.b16 %v416
        %v906 = vunpack.c.l.b16 %v417
        %v907 = vunpack.c.l.b16 %v418
        %v908 = vunpack.c.l.b16 %v419
        %v909 = vunpack.c.l.b16 %v420
        %v910 = vunpack.c.l.b16 %v421
        %v911 = vunpack.c.l.b16 %v422
        %v912 = vunpack.c.l.b16 %v423
        %v913 = vunpack.c.l.b16 %v424
        %v914 = vunpack.c.l.b16 %v425
        %v915 = vunpack.c.l.b16 %v426
        %v916 = vunpack.c.l.b16 %v427
        %v917 = vunpack.c.l.b16 %v428
        %v918 = vunpack.c.l.b16 %v429
        %v919 = vunpack.c.l.b16 %v430
        %v920 = vunpack.c.l.b16 %v431
        %v921 = vunpack.c.l.b16 %v432
        %v922 = vunpack.c.l.b16 %v433
        %v923 = vunpack.c.l.b16 %v434
        %v924 = vunpack.c.l.b16 %v435
        %v925 = vunpack.c.l.b16 %v436
        %v926 = vunpack.c.l.b16 %v437
        %v927 = vunpack.c.l.b16 %v438
        %v928 = vunpack.c.l.b16 %v439
        %v929 = vunpack.c.l.b16 %v440
        %v930 = vunpack.c.l.b16 %v441
        %v931 = vunpack.c.l.b16 %v442
        %v932 = vunpack.c.l.b16 %v443
        %v933 = vunpack.c.l.b16 %v444
        %v934 = vunpack.c.l.b16 %v445
        %v935 = vunpack.c.l.b16 %v446
        %v936 = vunpack.c.l.b16 %v447
        %v937 = vunpack.c.l.b16 %v448
        %v938 = vunpack.c.l.b16 %v449
        %v939 = vunpack.c.l.b16 %v450
        %v940 = vunpack.c.l.b16 %v451
        %v941 = vunpack.c.l.b16 %v452
        %v942 = vunpack.c.l.b16 %v453
        %v943 = vunpack.c.l.b16 %v454
        %v944 = vunpack.c.l.b16 %v455
        %v945 = vunpack.c.l.b16 %v456
        %v946 = vunpack.c.l.b16 %v457
        %v947 = vunpack.c.l.b16 %v458
        %v948 = vunpack.c.l.b16 %v459
        %v949 = vunpack.c.l.b16 %v460
        %v950 = vunpack.c.l.b16 %v461
        %v951 = vunpack.c.l.b16 %v462
        %v952 = vunpack.c.l.b16 %v463
        %v953 = vunpack.c.l.b16 %v464
        %v954 = vunpack.c.l.b16 %v465
        %v955 = vunpack.c.l.b16 %v466
        %v956 = vunpack.c.l.b16 %v467
        %v957 = vunpack.c.l.b16 %v468
        %v958 = vunpack.c.l.b16 %v469
        %v959 = vunpack.c.l.b16 %v470
        %v960 = vunpack.c.l.b16 %v471
        %v961 = vunpack.c.l.b16 %v472
        %v962 = vunpack.c.l.b16 %v473
        %v963 = vunpack.c.l.b16 %v474
        %v964 = vunpack.c.l.b16 %v475
        %v965 = vunpack.c.l.b16 %v476
        %v966 = vunpack.c.l.b16 %v477
        %v967 = vunpack.c.l.b16 %v478
        %v968 = vunpack.c.l.b16 %v479
        %v969 = vunpack.c.l.b16 %v480
        %v970 = vunpack.c.l.b16 %v481
        %v971 = vunpack.c.l.b16 %v482
        %v972 = vunpack.c.l.b16 %v483
        %v973 = vunpack.c.l.b16 %v484
        %v974 = vunpack.c.l.b16 %v485
        %v975 = vunpack.c.l.b16 %v486
        %v976 = vunpack.c.l.b16 %v487
        %v977 = vunpack.c.l.b16 %v488
        %v978 = vunpack.c.l.b16 %v489
        %v979 = vunpack.c.l.b16 %v490
        %v980 = vunpack.c.l.b16 %v491
        %v981 = vunpack.c.l.b16 %v492
        %v982 = vunpack.c.l.b16 %v493
        %v983 = vunpack.c.l.b16 %v494
        %v984 = vunpack.c.l.b16 %v495
        %v985 = vunpack.c.l.b16 %v496
        %v986 = vunpack.c.l.b16 %v497
        %v987 = vunpack.c.l.b16 %v498
        %v988 = vpack.c.b16 %v781, %v780
        %v989 = vpack.c.b16 %v783, %v782
        %v990 = vpack.c.b16 %v785, %v784
        %v991 = vpack.c.b16 %v787, %v786
        %v992 = vpack.c.b16 %v789, %v788
        %v993 = vpack.c.b16 %v791, %v790
        %v994 = vpack.c.b16 %v793, %v792
        %v995 = vpack.c.b16 %v795, %v794
        %v996 = vpack.c.b16 %v797, %v796
        %v997 = vpack.c.b16 %v799, %v798
        %v998 = vpack.c.b16 %v801, %v800
        %v999 = vpack.c.b16 %v803, %v802
        %v1000 = vpack.c.b16 %v805, %v804
        %v1001 = vpack.c.b16 %v807, %v806
        %v1002 = vpack.c.b16 %v809, %v808
        %v1003 = vpack.c.b16 %v811, %v810
        %v1004 = vpack.c.b16 %v813, %v812
        %v1005 = vpack.c.b16 %v815, %v814
        %v1006 = vpack.c.b16 %v817, %v816
        %v1007 = vpack.c.b16 %v819, %v818
        %v1008 = vpack.c.b16 %v821, %v820
        %v1009 = vpack.c.b16 %v823, %v822
        %v1010 = vpack.c.b16 %v825, %v824
        %v1011 = vpack.c.b16 %v827, %v826
        %v1012 = vpack.c.b16 %v829, %v828
        %v1013 = vpack.c.b16 %v831, %v830
        %v1014 = vpack.c.b16 %v833, %v832
        %v1015 = vpack.c.b16 %v835, %v834
        %v1016 = vpack.c.b16 %v837, %v836
        %v1017 = vpack.c.b16 %v839, %v838
        %v1018 = vpack.c.b16 %v841, %v840
        %v1019 = vpack.c.b16 %v843, %v842
        %v1020 = vpack.c.b16 %v845, %v844
        %v1021 = vpack.c.b16 %v847, %v846
        %v1022 = vpack.c.b16 %v849, %v848
        %v1023 = vpack.c.b16 %v851, %v850
        %v1024 = vpack.c.b16 %v853, %v852
        %v1025 = vpack.c.b16 %v855, %v854
        %v1026 = vpack.c.b16 %v857, %v856
        %v1027 = vpack.c.b16 %v859, %v858
        %v1028 = vpack.c.b16 %v861, %v860
        %v1029 = vpack.c.b16 %v863, %v862
        %v1030 = vpack.c.b16 %v865, %v864
        %v1031 = vpack.c.b16 %v867, %v866
        %v1032 = vpack.c.b16 %v869, %v868
        %v1033 = vpack.c.b16 %v871, %v870
        %v1034 = vpack.c.b16 %v873, %v872
        %v1035 = vpack.c.b16 %v875, %v874
        %v1036 = vpack.c.b16 %v877, %v876
        %v1037 = vpack.c.b16 %v879, %v878
        %v1038 = vpack.c.b16 %v881, %v880
        %v1039 = vpack.c.b16 %v883, %v882
        %v1040 = vpack.c.b16 %v885, %v884
        %v1041 = vpack.c.b16 %v887, %v886
        %v1042 = vpack.c.b16 %v889, %v888
        %v1043 = vpack.c.b16 %v891, %v890
        %v1044 = vpack.c.b16 %v893, %v892
        %v1045 = vpack.c.b16 %v895, %v894
        %v1046 = vpack.c.b16 %v897, %v896
        %v1047 = vpack.c.b16 %v899, %v898
        %v1048 = vpack.c.b16 %v901, %v900
        %v1049 = vpack.c.b16 %v903, %v902
        %v1050 = vpack.c.b16 %v905, %v904
        %v1051 = vpack.c.b16 %v907, %v906
        %v1052 = vpack.c.b16 %v909, %v908
        %v1053 = vpack.c.b16 %v911, %v910
        %v1054 = vpack.c.b16 %v913, %v912
        %v1055 = vpack.c.b16 %v915, %v914
        %v1056 = vpack.c.b16 %v917, %v916
        %v1057 = vpack.c.b16 %v919, %v918
        %v1058 = vpack.c.b16 %v921, %v920
        %v1059 = vpack.c.b16 %v923, %v922
        %v1060 = vpack.c.b16 %v925, %v924
        %v1061 = vpack.c.b16 %v927, %v926
        %v1062 = vpack.c.b16 %v929, %v928
        %v1063 = vpack.c.b16 %v931, %v930
        %v1064 = vpack.c.b16 %v933, %v932
        %v1065 = vpack.c.b16 %v935, %v934
        %v1066 = vpack.c.b16 %v937, %v936
        %v1067 = vpack.c.b16 %v939, %v938
        %v1068 = vpack.c.b16 %v941, %v940
        %v1069 = vpack.c.b16 %v943, %v942
        %v1070 = vpack.c.b16 %v945, %v944
        %v1071 = vpack.c.b16 %v947, %v946
        %v1072 = vpack.c.b16 %v949, %v948
        %v1073 = vpack.c.b16 %v951, %v950
        %v1074 = vpack.c.b16 %v953, %v952
        %v1075 = vpack.c.b16 %v955, %v954
        %v1076 = vpack.c.b16 %v957, %v956
        %v1077 = vpack.c.b16 %v959, %v958
        %v1078 = vpack.c.b16 %v961, %v960
        %v1079 = vpack.c.b16 %v963, %v962
        %v1080 = vpack.c.b16 %v965, %v964
        %v1081 = vpack.c.b16 %v967, %v966
        %v1082 = vpack.c.b16 %v969, %v968
        %v1083 = vpack.c.b16 %v971, %v970
        %v1084 = vpack.c.b16 %v973, %v972
        %v1085 = vpack.c.b16 %v975, %v974
        %v1086 = vpack.c.b16 %v977, %v976
        %v1087 = vpack.c.b16 %v979, %v978
        %v1088 = vpack.c.b16 %v981, %v980
        %v1089 = vpack.c.b16 %v983, %v982
        %v1090 = vpack.c.b16 %v985, %v984
        %v1091 = vpack.c.b16 %v987, %v986
        %1196 = vmatprep.subr.bf16.mxu0 0
        %1197 = vmatpush1.bf16.msra.mxu0 %v988
        %1198 = vmatprep.subr.bf16.mxu0 0
        %1199 = vmatpush1.bf16.msra.mxu0 %v989
        %1200 = vmatprep.subr.bf16.mxu0 0
        %1201 = vmatpush1.bf16.msra.mxu0 %v990
        %1202 = vmatprep.subr.bf16.mxu0 0
        %1203 = vmatpush1.bf16.msra.mxu0 %v991
        %1204 = vmatprep.subr.bf16.mxu0 0
        %1205 = vmatpush1.bf16.msra.mxu0 %v992
        %1206 = vmatprep.subr.bf16.mxu0 0
        %1207 = vmatpush1.bf16.msra.mxu0 %v993
        %1208 = vmatprep.subr.bf16.mxu0 0
        %1209 = vmatpush1.bf16.msra.mxu0 %v994
        %1210 = vmatprep.subr.bf16.mxu0 0
        %1211 = vmatpush1.bf16.msra.mxu0 %v995
        %1212 = vmatprep.subr.bf16.mxu0 0
        %1213 = vmatpush1.bf16.msra.mxu0 %v996
        %1214 = vmatprep.subr.bf16.mxu0 0
        %1215 = vmatpush1.bf16.msra.mxu0 %v997
        %1216 = vmatprep.subr.bf16.mxu0 0
        %1217 = vmatpush1.bf16.msra.mxu0 %v998
        %1218 = vmatprep.subr.bf16.mxu0 0
        %1219 = vmatpush1.bf16.msra.mxu0 %v999
        %1220 = vmatprep.subr.bf16.mxu0 0
        %1221 = vmatpush1.bf16.msra.mxu0 %v1000
        %1222 = vmatprep.subr.bf16.mxu0 0
        %1223 = vmatpush1.bf16.msra.mxu0 %v1001
        %1224 = vmatprep.subr.bf16.mxu0 0
        %1225 = vmatpush1.bf16.msra.mxu0 %v1002
        %1226 = vmatprep.subr.bf16.mxu0 0
        %1227 = vmatpush1.bf16.msra.mxu0 %v1003
        %1228 = vmatprep.mubr.bf16.mxu0 %v547
        %1229 = vmatmul.mubr.bf16.gmra.mrb[0].mxu0 %v546
        %v1230 = vpop.f32.mrb[0].mxu0
        %v1231 = vadd.f32 %v504, %v1230
        %v1232 = vpop.f32.mrb[0].mxu0
        %v1233 = vpop.f32.mrb[0].mxu0
        %v1234 = vadd.f32 %v504, %v1233
        %v1235 = vpop.f32.mrb[0].mxu0
        %1236 = vdwg.mxu0
        %1237 = vmatprep.subr.bf16.mxu0 0
        %1238 = vmatpush1.bf16.msra.mxu0 %v1004
        %1239 = vmatprep.subr.bf16.mxu0 0
        %1240 = vmatpush1.bf16.msra.mxu0 %v1005
        %1241 = vmatprep.subr.bf16.mxu0 0
        %1242 = vmatpush1.bf16.msra.mxu0 %v1006
        %1243 = vmatprep.subr.bf16.mxu0 0
        %1244 = vmatpush1.bf16.msra.mxu0 %v1007
        %1245 = vmatprep.subr.bf16.mxu0 0
        %1246 = vmatpush1.bf16.msra.mxu0 %v1008
        %1247 = vmatprep.subr.bf16.mxu0 0
        %1248 = vmatpush1.bf16.msra.mxu0 %v1009
        %1249 = vmatprep.subr.bf16.mxu0 0
        %1250 = vmatpush1.bf16.msra.mxu0 %v1010
        %1251 = vmatprep.subr.bf16.mxu0 0
        %1252 = vmatpush1.bf16.msra.mxu0 %v1011
        %1253 = vmatprep.subr.bf16.mxu0 0
        %1254 = vmatpush1.bf16.msra.mxu0 %v1012
        %1255 = vmatprep.subr.bf16.mxu0 0
        %1256 = vmatpush1.bf16.msra.mxu0 %v1013
        %1257 = vmatprep.subr.bf16.mxu0 0
        %1258 = vmatpush1.bf16.msra.mxu0 %v1014
        %1259 = vmatprep.subr.bf16.mxu0 0
        %1260 = vmatpush1.bf16.msra.mxu0 %v1015
        %1261 = vmatprep.subr.bf16.mxu0 0
        %1262 = vmatpush1.bf16.msra.mxu0 %v1016
        %1263 = vmatprep.subr.bf16.mxu0 0
        %1264 = vmatpush1.bf16.msra.mxu0 %v1017
        %1265 = vmatprep.subr.bf16.mxu0 0
        %1266 = vmatpush1.bf16.msra.mxu0 %v1018
        %1267 = vmatprep.subr.bf16.mxu0 0
        %1268 = vmatpush1.bf16.msra.mxu0 %v1019
        %1269 = vmatprep.mubr.bf16.mxu0 %v549
        %1270 = vmatmul.mubr.bf16.gmra.mrb[0].mxu0 %v548
        %v1271 = vpop.f32.mrb[0].mxu0
        %v1272 = vadd.f32 %v1231, %v1271
        %v1273 = vpop.f32.mrb[0].mxu0
        %v1274 = vpop.f32.mrb[0].mxu0
        %v1275 = vadd.f32 %v1234, %v1274
        %v1276 = vpop.f32.mrb[0].mxu0
        %1277 = vdwg.mxu0
        %1278 = vmatprep.subr.bf16.mxu0 0
        %1279 = vmatpush1.bf16.msra.mxu0 %v1020
        %1280 = vmatprep.subr.bf16.mxu0 0
        %1281 = vmatpush1.bf16.msra.mxu0 %v1021
        %1282 = vmatprep.subr.bf16.mxu0 0
        %1283 = vmatpush1.bf16.msra.mxu0 %v1022
        %1284 = vmatprep.subr.bf16.mxu0 0
        %1285 = vmatpush1.bf16.msra.mxu0 %v1023
        %1286 = vmatprep.subr.bf16.mxu0 0
        %1287 = vmatpush1.bf16.msra.mxu0 %v1024
        %1288 = vmatprep.subr.bf16.mxu0 0
        %1289 = vmatpush1.bf16.msra.mxu0 %v1025
        %1290 = vmatprep.subr.bf16.mxu0 0
        %1291 = vmatpush1.bf16.msra.mxu0 %v1026
        %1292 = vmatprep.subr.bf16.mxu0 0
        %1293 = vmatpush1.bf16.msra.mxu0 %v1027
        %1294 = vmatprep.subr.bf16.mxu0 0
        %1295 = vmatpush1.bf16.msra.mxu0 %v1028
        %1296 = vmatprep.subr.bf16.mxu0 0
        %1297 = vmatpush1.bf16.msra.mxu0 %v1029
        %1298 = vmatprep.subr.bf16.mxu0 0
        %1299 = vmatpush1.bf16.msra.mxu0 %v1030
        %1300 = vmatprep.subr.bf16.mxu0 0
        %1301 = vmatpush1.bf16.msra.mxu0 %v1031
        %1302 = vmatprep.subr.bf16.mxu0 0
        %1303 = vmatpush1.bf16.msra.mxu0 %v1032
        %1304 = vmatprep.subr.bf16.mxu0 0
        %1305 = vmatpush1.bf16.msra.mxu0 %v1033
        %1306 = vmatprep.subr.bf16.mxu0 0
        %1307 = vmatpush1.bf16.msra.mxu0 %v1034
        %1308 = vmatprep.subr.bf16.mxu0 0
        %1309 = vmatpush1.bf16.msra.mxu0 %v1035
        %1310 = vmatprep.mubr.bf16.mxu0 %v551
        %1311 = vmatmul.mubr.bf16.gmra.mrb[0].mxu0 %v550
        %v1312 = vpop.f32.mrb[0].mxu0
        %v1313 = vadd.f32 %v1272, %v1312
        %v1314 = vpop.f32.mrb[0].mxu0
        %v1315 = vpop.f32.mrb[0].mxu0
        %v1316 = vadd.f32 %v1275, %v1315
        %v1317 = vpop.f32.mrb[0].mxu0
        %1318 = vdwg.mxu0
        %1319 = vmatprep.subr.bf16.mxu0 0
        %1320 = vmatpush1.bf16.msra.mxu0 %v1036
        %1321 = vmatprep.subr.bf16.mxu0 0
        %1322 = vmatpush1.bf16.msra.mxu0 %v1037
        %1323 = vmatprep.subr.bf16.mxu0 0
        %1324 = vmatpush1.bf16.msra.mxu0 %v1038
        %1325 = vmatprep.subr.bf16.mxu0 0
        %1326 = vmatpush1.bf16.msra.mxu0 %v1039
        %1327 = vmatprep.subr.bf16.mxu0 0
        %1328 = vmatpush1.bf16.msra.mxu0 %v1040
        %1329 = vmatprep.subr.bf16.mxu0 0
        %1330 = vmatpush1.bf16.msra.mxu0 %v1041
        %1331 = vmatprep.subr.bf16.mxu0 0
        %1332 = vmatpush1.bf16.msra.mxu0 %v1042
        %1333 = vmatprep.subr.bf16.mxu0 0
        %1334 = vmatpush1.bf16.msra.mxu0 %v1043
        %1335 = vmatprep.subr.bf16.mxu0 0
        %1336 = vmatpush1.bf16.msra.mxu0 %v1044
        %1337 = vmatprep.subr.bf16.mxu0 0
        %1338 = vmatpush1.bf16.msra.mxu0 %v1045
        %1339 = vmatprep.subr.bf16.mxu0 0
        %1340 = vmatpush1.bf16.msra.mxu0 %v1046
        %1341 = vmatprep.subr.bf16.mxu0 0
        %1342 = vmatpush1.bf16.msra.mxu0 %v1047
        %1343 = vmatprep.subr.bf16.mxu0 0
        %1344 = vmatpush1.bf16.msra.mxu0 %v1048
        %1345 = vmatprep.subr.bf16.mxu0 0
        %1346 = vmatpush1.bf16.msra.mxu0 %v1049
        %1347 = vmatprep.subr.bf16.mxu0 0
        %1348 = vmatpush1.bf16.msra.mxu0 %v1050
        %1349 = vmatprep.subr.bf16.mxu0 0
        %1350 = vmatpush1.bf16.msra.mxu0 %v1051
        %1351 = vmatprep.mubr.bf16.mxu0 %v553
        %1352 = vmatmul.mubr.bf16.gmra.mrb[0].mxu0 %v552
        %v1353 = vpop.f32.mrb[0].mxu0
        %v1354 = vadd.f32 %v1313, %v1353
        %v1355 = vpop.f32.mrb[0].mxu0
        %v1356 = vpop.f32.mrb[0].mxu0
        %v1357 = vadd.f32 %v1316, %v1356
        %v1358 = vpop.f32.mrb[0].mxu0
        %1359 = vdwg.mxu0
        %1360 = vmatprep.subr.bf16.mxu0 0
        %1361 = vmatpush1.bf16.msra.mxu0 %v1052
        %1362 = vmatprep.subr.bf16.mxu0 0
        %1363 = vmatpush1.bf16.msra.mxu0 %v1053
        %1364 = vmatprep.subr.bf16.mxu0 0
        %1365 = vmatpush1.bf16.msra.mxu0 %v1054
        %1366 = vmatprep.subr.bf16.mxu0 0
        %1367 = vmatpush1.bf16.msra.mxu0 %v1055
        %1368 = vmatprep.subr.bf16.mxu0 0
        %1369 = vmatpush1.bf16.msra.mxu0 %v1056
        %1370 = vmatprep.subr.bf16.mxu0 0
        %1371 = vmatpush1.bf16.msra.mxu0 %v1057
        %1372 = vmatprep.subr.bf16.mxu0 0
        %1373 = vmatpush1.bf16.msra.mxu0 %v1058
        %1374 = vmatprep.subr.bf16.mxu0 0
        %1375 = vmatpush1.bf16.msra.mxu0 %v1059
        %1376 = vmatprep.subr.bf16.mxu0 0
        %1377 = vmatpush1.bf16.msra.mxu0 %v1060
        %1378 = vmatprep.subr.bf16.mxu0 0
        %1379 = vmatpush1.bf16.msra.mxu0 %v1061
        %1380 = vmatprep.subr.bf16.mxu0 0
        %1381 = vmatpush1.bf16.msra.mxu0 %v1062
        %1382 = vmatprep.subr.bf16.mxu0 0
        %1383 = vmatpush1.bf16.msra.mxu0 %v1063
        %1384 = vmatprep.subr.bf16.mxu0 0
        %1385 = vmatpush1.bf16.msra.mxu0 %v1064
        %1386 = vmatprep.subr.bf16.mxu0 0
        %1387 = vmatpush1.bf16.msra.mxu0 %v1065
        %1388 = vmatprep.subr.bf16.mxu0 0
        %1389 = vmatpush1.bf16.msra.mxu0 %v1066
        %1390 = vmatprep.subr.bf16.mxu0 0
        %1391 = vmatpush1.bf16.msra.mxu0 %v1067
        %1392 = vmatprep.mubr.bf16.mxu0 %v555
        %1393 = vmatmul.mubr.bf16.gmra.mrb[0].mxu0 %v554
        %v1394 = vpop.f32.mrb[0].mxu0
        %v1395 = vadd.f32 %v1354, %v1394
        %v1396 = vpop.f32.mrb[0].mxu0
        %v1397 = vpop.f32.mrb[0].mxu0
        %v1398 = vadd.f32 %v1357, %v1397
        %v1399 = vpop.f32.mrb[0].mxu0
        %1400 = vdwg.mxu0
        %1401 = vmatprep.subr.bf16.mxu0 0
        %1402 = vmatpush1.bf16.msra.mxu0 %v1068
        %1403 = vmatprep.subr.bf16.mxu0 0
        %1404 = vmatpush1.bf16.msra.mxu0 %v1069
        %1405 = vmatprep.subr.bf16.mxu0 0
        %1406 = vmatpush1.bf16.msra.mxu0 %v1070
        %1407 = vmatprep.subr.bf16.mxu0 0
        %1408 = vmatpush1.bf16.msra.mxu0 %v1071
        %1409 = vmatprep.subr.bf16.mxu0 0
        %1410 = vmatpush1.bf16.msra.mxu0 %v1072
        %1411 = vmatprep.subr.bf16.mxu0 0
        %1412 = vmatpush1.bf16.msra.mxu0 %v1073
        %1413 = vmatprep.subr.bf16.mxu0 0
        %1414 = vmatpush1.bf16.msra.mxu0 %v1074
        %1415 = vmatprep.subr.bf16.mxu0 0
        %1416 = vmatpush1.bf16.msra.mxu0 %v1075
        %1417 = vmatprep.subr.bf16.mxu0 0
        %1418 = vmatpush1.bf16.msra.mxu0 %v1076
        %1419 = vmatprep.subr.bf16.mxu0 0
        %1420 = vmatpush1.bf16.msra.mxu0 %v1077
        %1421 = vmatprep.subr.bf16.mxu0 0
        %1422 = vmatpush1.bf16.msra.mxu0 %v1078
        %1423 = vmatprep.subr.bf16.mxu0 0
        %1424 = vmatpush1.bf16.msra.mxu0 %v1079
        %1425 = vmatprep.subr.bf16.mxu0 0
        %1426 = vmatpush1.bf16.msra.mxu0 %v1080
        %1427 = vmatprep.subr.bf16.mxu0 0
        %1428 = vmatpush1.bf16.msra.mxu0 %v1081
        %1429 = vmatprep.subr.bf16.mxu0 0
        %1430 = vmatpush1.bf16.msra.mxu0 %v1082
        %1431 = vmatprep.subr.bf16.mxu0 0
        %1432 = vmatpush1.bf16.msra.mxu0 %v1083
        %1433 = vmatprep.mubr.bf16.mxu0 %v557
        %1434 = vmatmul.mubr.bf16.gmra.mrb[0].mxu0 %v556
        %v1435 = vpop.f32.mrb[0].mxu0
        %v1436 = vadd.f32 %v1395, %v1435
        %v1437 = vpop.f32.mrb[0].mxu0
        %v1438 = vpop.f32.mrb[0].mxu0
        %v1439 = vadd.f32 %v1398, %v1438
        %v1440 = vpop.f32.mrb[0].mxu0
        %1441 = vdwg.mxu0
        %1442 = vmatprep.subr.bf16.mxu0 0
        %1443 = vmatpush1.bf16.msra.mxu0 %v1084
        %1444 = vmatprep.subr.bf16.mxu0 0
        %1445 = vmatpush1.bf16.msra.mxu0 %v1085
        %1446 = vmatprep.subr.bf16.mxu0 0
        %1447 = vmatpush1.bf16.msra.mxu0 %v1086
        %1448 = vmatprep.subr.bf16.mxu0 0
        %1449 = vmatpush1.bf16.msra.mxu0 %v1087
        %1450 = vmatprep.subr.bf16.mxu0 0
        %1451 = vmatpush1.bf16.msra.mxu0 %v1088
        %1452 = vmatprep.subr.bf16.mxu0 0
        %1453 = vmatpush1.bf16.msra.mxu0 %v1089
        %1454 = vmatprep.subr.bf16.mxu0 0
        %1455 = vmatpush1.bf16.msra.mxu0 %v1090
        %1456 = vmatprep.subr.bf16.mxu0 0
        %1457 = vmatpush1.bf16.msra.mxu0 %v1091
        %1458 = vmatprep.subr.bf16.mxu0 0
        %1459 = vmatpush1.bf16.msra.mxu0 0
        %1460 = vmatprep.subr.bf16.mxu0 0
        %1461 = vmatpush1.bf16.msra.mxu0 0
        %1462 = vmatprep.subr.bf16.mxu0 0
        %1463 = vmatpush1.bf16.msra.mxu0 0
        %1464 = vmatprep.subr.bf16.mxu0 0
        %1465 = vmatpush1.bf16.msra.mxu0 0
        %1466 = vmatprep.subr.bf16.mxu0 0
        %1467 = vmatpush1.bf16.msra.mxu0 0
        %1468 = vmatprep.subr.bf16.mxu0 0
        %1469 = vmatpush1.bf16.msra.mxu0 0
        %1470 = vmatprep.subr.bf16.mxu0 0
        %1471 = vmatpush1.bf16.msra.mxu0 0
        %1472 = vmatprep.subr.bf16.mxu0 0
        %1473 = vmatpush1.bf16.msra.mxu0 0
        %1474 = vmatprep.mubr.bf16.mxu0 0
        %1475 = vmatmul.mubr.bf16.gmra.mrb[0].mxu0 %v558
        %v1476 = vpop.f32.mrb[0].mxu0
        %v1477 = vadd.f32 %v1436, %v1476
        %v1478 = vpop.f32.mrb[0].mxu0
        %v1479 = vpop.f32.mrb[0].mxu0
        %v1480 = vadd.f32 %v1439, %v1479
        %v1481 = vpop.f32.mrb[0].mxu0
        %1482 = vdwg.mxu0
        %v1483 = vmax.f32 %v1477, 0.0
        %v1484 = vmax.f32 %v1480, 0.0
        %v1485 = vpack.c.bf16 %v1484, %v1483
        %v1486 = vld [vmem:[%s3] sm:$0xf]
        %v1487 = vld [vmem:[%s3 + $0x4] sm:$0xf]
        %v1488 = vld [vmem:[%s3 + $0x8] sm:$0xf]
        %v1489 = vld [vmem:[%s3 + $0xc] sm:$0xf]
        %v1490 = vld [vmem:[%s3 + $0x10] sm:$0xf]
        %v1491 = vld [vmem:[%s3 + $0x14] sm:$0xf]
        %v1492 = vld [vmem:[%s3 + $0x18] sm:$0xf]
        %v1493 = vld [vmem:[%s3 + $0x1c] sm:$0xf]
        %s1494 = scalar_lea.vmem %s3, 32
        %v1495 = vld [vmem:[%s1494] sm:$0xf]
        %v1496 = vld [vmem:[%s1494 + $0x4] sm:$0xf]
        %v1497 = vld [vmem:[%s1494 + $0x8] sm:$0xf]
        %v1498 = vld [vmem:[%s1494 + $0xc] sm:$0xf]
        %v1499 = vld [vmem:[%s1494 + $0x10] sm:$0xf]
        %v1500 = vld [vmem:[%s1494 + $0x14] sm:$0xf]
        %v1501 = vld [vmem:[%s1494 + $0x18] sm:$0xf]
        %v1502 = vld [vmem:[%s1494 + $0x1c] sm:$0xf]
        %v1504 = vshrl.u32 %v1485, 16
        %v1514 = vunpack.c.l.b16 %v1495
        %v1515 = vunpack.c.l.b16 %v1496
        %v1516 = vunpack.c.l.b16 %v1497
        %v1517 = vunpack.c.l.b16 %v1498
        %v1518 = vunpack.c.l.b16 %v1499
        %v1519 = vunpack.c.l.b16 %v1500
        %v1520 = vunpack.c.l.b16 %v1501
        %v1521 = vunpack.c.l.b16 %v1502
        %v1522 = vpack.c.b16 %v1515, %v1514
        %v1523 = vpack.c.b16 %v1517, %v1516
        %v1524 = vpack.c.b16 %v1519, %v1518
        %v1525 = vpack.c.b16 %v1521, %v1520
        %vm1530 = vcmask 523264
        %v1532 = vsel %vm1530, %v1504, 0
        %1534 = vmatprep.subr.bf16.mxu0 0
        %1535 = vmatpush1.bf16.msra.mxu0 %v1522
        %1536 = vmatprep.subr.bf16.mxu0 0
        %1537 = vmatpush1.bf16.msra.mxu0 %v1523
        %1538 = vmatprep.subr.bf16.mxu0 0
        %1539 = vmatpush1.bf16.msra.mxu0 %v1524
        %1540 = vmatprep.subr.bf16.mxu0 0
        %1541 = vmatpush1.bf16.msra.mxu0 %v1525
        %1542 = vmatprep.subr.bf16.mxu0 0
        %1543 = vmatpush1.bf16.msra.mxu0 0
        %1544 = vmatprep.subr.bf16.mxu0 0
        %1545 = vmatpush1.bf16.msra.mxu0 0
        %1546 = vmatprep.subr.bf16.mxu0 0
        %1547 = vmatpush1.bf16.msra.mxu0 0
        %1548 = vmatprep.subr.bf16.mxu0 0
        %1549 = vmatpush1.bf16.msra.mxu0 0
        %1550 = vmatprep.subr.bf16.mxu0 0
        %1551 = vmatpush1.bf16.msra.mxu0 0
        %1552 = vmatprep.subr.bf16.mxu0 0
        %1553 = vmatpush1.bf16.msra.mxu0 0
        %1554 = vmatprep.subr.bf16.mxu0 0
        %1555 = vmatpush1.bf16.msra.mxu0 0
        %1556 = vmatprep.subr.bf16.mxu0 0
        %1557 = vmatpush1.bf16.msra.mxu0 0
        %1558 = vmatprep.subr.bf16.mxu0 0
        %1559 = vmatpush1.bf16.msra.mxu0 0
        %1560 = vmatprep.subr.bf16.mxu0 0
        %1561 = vmatpush1.bf16.msra.mxu0 0
        %1562 = vmatprep.subr.bf16.mxu0 0
        %1563 = vmatpush1.bf16.msra.mxu0 0
        %1564 = vmatprep.subr.bf16.mxu0 0
        %1565 = vmatpush1.bf16.msra.mxu0 0
        %1566 = vmatprep.mubr.bf16.mxu0 0
        %1567 = vmatmul.mubr.bf16.gmra.mrb[0].mxu0 %v1532
        %v1568 = vpop.f32.mrb[0].mxu0
        %v1569 = vadd.f32 0.0, %v1568
        %v1570 = vpop.f32.mrb[0].mxu0
        %v1571 = vpop.f32.mrb[0].mxu0
        %v1572 = vpop.f32.mrb[0].mxu0
        %1573 = vdwg.mxu0
        %v1582 = vunpack.c.l.b16 %v1486
        %v1583 = vunpack.c.l.b16 %v1487
        %v1584 = vunpack.c.l.b16 %v1488
        %v1585 = vunpack.c.l.b16 %v1489
        %v1586 = vunpack.c.l.b16 %v1490
        %v1587 = vunpack.c.l.b16 %v1491
        %v1588 = vunpack.c.l.b16 %v1492
        %v1589 = vunpack.c.l.b16 %v1493
        %v1590 = vpack.c.b16 %v1583, %v1582
        %v1591 = vpack.c.b16 %v1585, %v1584
        %v1592 = vpack.c.b16 %v1587, %v1586
        %v1593 = vpack.c.b16 %v1589, %v1588
        %v1598 = vsel %vm1530, %v1485, 0
        %1600 = vmatprep.subr.bf16.mxu0 0
        %1601 = vmatpush1.bf16.msra.mxu0 %v1590
        %1602 = vmatprep.subr.bf16.mxu0 0
        %1603 = vmatpush1.bf16.msra.mxu0 %v1591
        %1604 = vmatprep.subr.bf16.mxu0 0
        %1605 = vmatpush1.bf16.msra.mxu0 %v1592
        %1606 = vmatprep.subr.bf16.mxu0 0
        %1607 = vmatpush1.bf16.msra.mxu0 %v1593
        %1608 = vmatprep.subr.bf16.mxu0 0
        %1609 = vmatpush1.bf16.msra.mxu0 0
        %1610 = vmatprep.subr.bf16.mxu0 0
        %1611 = vmatpush1.bf16.msra.mxu0 0
        %1612 = vmatprep.subr.bf16.mxu0 0
        %1613 = vmatpush1.bf16.msra.mxu0 0
        %1614 = vmatprep.subr.bf16.mxu0 0
        %1615 = vmatpush1.bf16.msra.mxu0 0
        %1616 = vmatprep.subr.bf16.mxu0 0
        %1617 = vmatpush1.bf16.msra.mxu0 0
        %1618 = vmatprep.subr.bf16.mxu0 0
        %1619 = vmatpush1.bf16.msra.mxu0 0
        %1620 = vmatprep.subr.bf16.mxu0 0
        %1621 = vmatpush1.bf16.msra.mxu0 0
        %1622 = vmatprep.subr.bf16.mxu0 0
        %1623 = vmatpush1.bf16.msra.mxu0 0
        %1624 = vmatprep.subr.bf16.mxu0 0
        %1625 = vmatpush1.bf16.msra.mxu0 0
        %1626 = vmatprep.subr.bf16.mxu0 0
        %1627 = vmatpush1.bf16.msra.mxu0 0
        %1628 = vmatprep.subr.bf16.mxu0 0
        %1629 = vmatpush1.bf16.msra.mxu0 0
        %1630 = vmatprep.subr.bf16.mxu0 0
        %1631 = vmatpush1.bf16.msra.mxu0 0
        %1632 = vmatprep.mubr.bf16.mxu0 0
        %1633 = vmatmul.mubr.bf16.gmra.mrb[0].mxu0 %v1598
        %v1634 = vpop.f32.mrb[0].mxu0
        %v1635 = vadd.f32 %v1569, %v1634
        %v1636 = vpop.f32.mrb[0].mxu0
        %v1637 = vpop.f32.mrb[0].mxu0
        %v1638 = vpop.f32.mrb[0].mxu0
        %1639 = vdwg.mxu0
        %s1640 = scalar_lea.vmem %s3, 64
        %v1641 = vld [vmem:[%s1640] sm:$0xf]
        %v1642 = vld [vmem:[%s1640 + $0x4] sm:$0xf]
        %v1643 = vld [vmem:[%s1640 + $0x8] sm:$0xf]
        %v1644 = vld [vmem:[%s1640 + $0xc] sm:$0xf]
        %v1645 = vld [vmem:[%s1640 + $0x10] sm:$0xf]
        %v1646 = vld [vmem:[%s1640 + $0x14] sm:$0xf]
        %v1647 = vld [vmem:[%s1640 + $0x18] sm:$0xf]
        %v1648 = vld [vmem:[%s1640 + $0x1c] sm:$0xf]
        %v1650 = vrot.slane %v1485, 1
        %v1659 = vunpack.c.l.b16 %v1641
        %v1660 = vunpack.c.l.b16 %v1642
        %v1661 = vunpack.c.l.b16 %v1643
        %v1662 = vunpack.c.l.b16 %v1644
        %v1663 = vunpack.c.l.b16 %v1645
        %v1664 = vunpack.c.l.b16 %v1646
        %v1665 = vunpack.c.l.b16 %v1647
        %v1666 = vunpack.c.l.b16 %v1648
        %v1667 = vpack.c.b16 %v1660, %v1659
        %v1668 = vpack.c.b16 %v1662, %v1661
        %v1669 = vpack.c.b16 %v1664, %v1663
        %v1670 = vpack.c.b16 %v1666, %v1665
        %v1676 = vsel %vm1530, %v1650, 0
        %1678 = vmatprep.subr.bf16.mxu0 0
        %1679 = vmatpush1.bf16.msra.mxu0 %v1667
        %1680 = vmatprep.subr.bf16.mxu0 0
        %1681 = vmatpush1.bf16.msra.mxu0 %v1668
        %1682 = vmatprep.subr.bf16.mxu0 0
        %1683 = vmatpush1.bf16.msra.mxu0 %v1669
        %1684 = vmatprep.subr.bf16.mxu0 0
        %1685 = vmatpush1.bf16.msra.mxu0 %v1670
        %1686 = vmatprep.subr.bf16.mxu0 0
        %1687 = vmatpush1.bf16.msra.mxu0 0
        %1688 = vmatprep.subr.bf16.mxu0 0
        %1689 = vmatpush1.bf16.msra.mxu0 0
        %1690 = vmatprep.subr.bf16.mxu0 0
        %1691 = vmatpush1.bf16.msra.mxu0 0
        %1692 = vmatprep.subr.bf16.mxu0 0
        %1693 = vmatpush1.bf16.msra.mxu0 0
        %1694 = vmatprep.subr.bf16.mxu0 0
        %1695 = vmatpush1.bf16.msra.mxu0 0
        %1696 = vmatprep.subr.bf16.mxu0 0
        %1697 = vmatpush1.bf16.msra.mxu0 0
        %1698 = vmatprep.subr.bf16.mxu0 0
        %1699 = vmatpush1.bf16.msra.mxu0 0
        %1700 = vmatprep.subr.bf16.mxu0 0
        %1701 = vmatpush1.bf16.msra.mxu0 0
        %1702 = vmatprep.subr.bf16.mxu0 0
        %1703 = vmatpush1.bf16.msra.mxu0 0
        %1704 = vmatprep.subr.bf16.mxu0 0
        %1705 = vmatpush1.bf16.msra.mxu0 0
        %1706 = vmatprep.subr.bf16.mxu0 0
        %1707 = vmatpush1.bf16.msra.mxu0 0
        %1708 = vmatprep.subr.bf16.mxu0 0
        %1709 = vmatpush1.bf16.msra.mxu0 0
        %1710 = vmatprep.mubr.bf16.mxu0 0
        %1711 = vmatmul.mubr.bf16.gmra.mrb[0].mxu0 %v1676
        %v1712 = vpop.f32.mrb[0].mxu0
        %v1713 = vadd.f32 0.0, %v1712
        %v1714 = vpop.f32.mrb[0].mxu0
        %v1715 = vpop.f32.mrb[0].mxu0
        %v1716 = vpop.f32.mrb[0].mxu0
        %1717 = vdwg.mxu0
        %v1718 = vadd.f32 %v1635, %v1713
        %s1719 = scalar_lea.vmem %s3, 96
        %v1720 = vld [vmem:[%s1719] sm:$0xf]
        %v1721 = vld [vmem:[%s1719 + $0x4] sm:$0xf]
        %v1722 = vld [vmem:[%s1719 + $0x8] sm:$0xf]
        %v1723 = vld [vmem:[%s1719 + $0xc] sm:$0xf]
        %v1724 = vld [vmem:[%s1719 + $0x10] sm:$0xf]
        %v1725 = vld [vmem:[%s1719 + $0x14] sm:$0xf]
        %v1726 = vld [vmem:[%s1719 + $0x18] sm:$0xf]
        %v1727 = vld [vmem:[%s1719 + $0x1c] sm:$0xf]
        %v1728 = vrot.slane %v1504, 1
        %v1737 = vunpack.c.l.b16 %v1720
        %v1738 = vunpack.c.l.b16 %v1721
        %v1739 = vunpack.c.l.b16 %v1722
        %v1740 = vunpack.c.l.b16 %v1723
        %v1741 = vunpack.c.l.b16 %v1724
        %v1742 = vunpack.c.l.b16 %v1725
        %v1743 = vunpack.c.l.b16 %v1726
        %v1744 = vunpack.c.l.b16 %v1727
        %v1745 = vpack.c.b16 %v1738, %v1737
        %v1746 = vpack.c.b16 %v1740, %v1739
        %v1747 = vpack.c.b16 %v1742, %v1741
        %v1748 = vpack.c.b16 %v1744, %v1743
        %v1754 = vsel %vm1530, %v1728, 0
        %1756 = vmatprep.subr.bf16.mxu0 0
        %1757 = vmatpush1.bf16.msra.mxu0 %v1745
        %1758 = vmatprep.subr.bf16.mxu0 0
        %1759 = vmatpush1.bf16.msra.mxu0 %v1746
        %1760 = vmatprep.subr.bf16.mxu0 0
        %1761 = vmatpush1.bf16.msra.mxu0 %v1747
        %1762 = vmatprep.subr.bf16.mxu0 0
        %1763 = vmatpush1.bf16.msra.mxu0 %v1748
        %1764 = vmatprep.subr.bf16.mxu0 0
        %1765 = vmatpush1.bf16.msra.mxu0 0
        %1766 = vmatprep.subr.bf16.mxu0 0
        %1767 = vmatpush1.bf16.msra.mxu0 0
        %1768 = vmatprep.subr.bf16.mxu0 0
        %1769 = vmatpush1.bf16.msra.mxu0 0
        %1770 = vmatprep.subr.bf16.mxu0 0
        %1771 = vmatpush1.bf16.msra.mxu0 0
        %1772 = vmatprep.subr.bf16.mxu0 0
        %1773 = vmatpush1.bf16.msra.mxu0 0
        %1774 = vmatprep.subr.bf16.mxu0 0
        %1775 = vmatpush1.bf16.msra.mxu0 0
        %1776 = vmatprep.subr.bf16.mxu0 0
        %1777 = vmatpush1.bf16.msra.mxu0 0
        %1778 = vmatprep.subr.bf16.mxu0 0
        %1779 = vmatpush1.bf16.msra.mxu0 0
        %1780 = vmatprep.subr.bf16.mxu0 0
        %1781 = vmatpush1.bf16.msra.mxu0 0
        %1782 = vmatprep.subr.bf16.mxu0 0
        %1783 = vmatpush1.bf16.msra.mxu0 0
        %1784 = vmatprep.subr.bf16.mxu0 0
        %1785 = vmatpush1.bf16.msra.mxu0 0
        %1786 = vmatprep.subr.bf16.mxu0 0
        %1787 = vmatpush1.bf16.msra.mxu0 0
        %1788 = vmatprep.mubr.bf16.mxu0 0
        %1789 = vmatmul.mubr.bf16.gmra.mrb[0].mxu0 %v1754
        %v1790 = vpop.f32.mrb[0].mxu0
        %v1791 = vadd.f32 0.0, %v1790
        %v1792 = vpop.f32.mrb[0].mxu0
        %v1793 = vpop.f32.mrb[0].mxu0
        %v1794 = vpop.f32.mrb[0].mxu0
        %1795 = vdwg.mxu0
        %v1796 = vadd.f32 %v1718, %v1791
        %s1797 = scalar_lea.vmem %s3, 128
        %v1798 = vld [vmem:[%s1797] sm:$0xf]
        %v1799 = vld [vmem:[%s1797 + $0x4] sm:$0xf]
        %v1800 = vld [vmem:[%s1797 + $0x8] sm:$0xf]
        %v1801 = vld [vmem:[%s1797 + $0xc] sm:$0xf]
        %v1802 = vld [vmem:[%s1797 + $0x10] sm:$0xf]
        %v1803 = vld [vmem:[%s1797 + $0x14] sm:$0xf]
        %v1804 = vld [vmem:[%s1797 + $0x18] sm:$0xf]
        %v1805 = vld [vmem:[%s1797 + $0x1c] sm:$0xf]
        %v1806 = vrot.slane %v1485, 2
        %v1815 = vunpack.c.l.b16 %v1798
        %v1816 = vunpack.c.l.b16 %v1799
        %v1817 = vunpack.c.l.b16 %v1800
        %v1818 = vunpack.c.l.b16 %v1801
        %v1819 = vunpack.c.l.b16 %v1802
        %v1820 = vunpack.c.l.b16 %v1803
        %v1821 = vunpack.c.l.b16 %v1804
        %v1822 = vunpack.c.l.b16 %v1805
        %v1823 = vpack.c.b16 %v1816, %v1815
        %v1824 = vpack.c.b16 %v1818, %v1817
        %v1825 = vpack.c.b16 %v1820, %v1819
        %v1826 = vpack.c.b16 %v1822, %v1821
        %v1832 = vsel %vm1530, %v1806, 0
        %1834 = vmatprep.subr.bf16.mxu0 0
        %1835 = vmatpush1.bf16.msra.mxu0 %v1823
        %1836 = vmatprep.subr.bf16.mxu0 0
        %1837 = vmatpush1.bf16.msra.mxu0 %v1824
        %1838 = vmatprep.subr.bf16.mxu0 0
        %1839 = vmatpush1.bf16.msra.mxu0 %v1825
        %1840 = vmatprep.subr.bf16.mxu0 0
        %1841 = vmatpush1.bf16.msra.mxu0 %v1826
        %1842 = vmatprep.subr.bf16.mxu0 0
        %1843 = vmatpush1.bf16.msra.mxu0 0
        %1844 = vmatprep.subr.bf16.mxu0 0
        %1845 = vmatpush1.bf16.msra.mxu0 0
        %1846 = vmatprep.subr.bf16.mxu0 0
        %1847 = vmatpush1.bf16.msra.mxu0 0
        %1848 = vmatprep.subr.bf16.mxu0 0
        %1849 = vmatpush1.bf16.msra.mxu0 0
        %1850 = vmatprep.subr.bf16.mxu0 0
        %1851 = vmatpush1.bf16.msra.mxu0 0
        %1852 = vmatprep.subr.bf16.mxu0 0
        %1853 = vmatpush1.bf16.msra.mxu0 0
        %1854 = vmatprep.subr.bf16.mxu0 0
        %1855 = vmatpush1.bf16.msra.mxu0 0
        %1856 = vmatprep.subr.bf16.mxu0 0
        %1857 = vmatpush1.bf16.msra.mxu0 0
        %1858 = vmatprep.subr.bf16.mxu0 0
        %1859 = vmatpush1.bf16.msra.mxu0 0
        %1860 = vmatprep.subr.bf16.mxu0 0
        %1861 = vmatpush1.bf16.msra.mxu0 0
        %1862 = vmatprep.subr.bf16.mxu0 0
        %1863 = vmatpush1.bf16.msra.mxu0 0
        %1864 = vmatprep.subr.bf16.mxu0 0
        %1865 = vmatpush1.bf16.msra.mxu0 0
        %1866 = vmatprep.mubr.bf16.mxu0 0
        %1867 = vmatmul.mubr.bf16.gmra.mrb[0].mxu0 %v1832
        %v1868 = vpop.f32.mrb[0].mxu0
        %v1869 = vadd.f32 0.0, %v1868
        %v1870 = vpop.f32.mrb[0].mxu0
        %v1871 = vpop.f32.mrb[0].mxu0
        %v1872 = vpop.f32.mrb[0].mxu0
        %1873 = vdwg.mxu0
        %v1874 = vadd.f32 %v1796, %v1869
        %s1875 = scalar_lea.vmem %s3, 160
        %v1876 = vld [vmem:[%s1875] sm:$0xf]
        %v1877 = vld [vmem:[%s1875 + $0x4] sm:$0xf]
        %v1878 = vld [vmem:[%s1875 + $0x8] sm:$0xf]
        %v1879 = vld [vmem:[%s1875 + $0xc] sm:$0xf]
        %v1880 = vld [vmem:[%s1875 + $0x10] sm:$0xf]
        %v1881 = vld [vmem:[%s1875 + $0x14] sm:$0xf]
        %v1882 = vld [vmem:[%s1875 + $0x18] sm:$0xf]
        %v1883 = vld [vmem:[%s1875 + $0x1c] sm:$0xf]
        %v1884 = vrot.slane %v1504, 2
        %v1893 = vunpack.c.l.b16 %v1876
        %v1894 = vunpack.c.l.b16 %v1877
        %v1895 = vunpack.c.l.b16 %v1878
        %v1896 = vunpack.c.l.b16 %v1879
        %v1897 = vunpack.c.l.b16 %v1880
        %v1898 = vunpack.c.l.b16 %v1881
        %v1899 = vunpack.c.l.b16 %v1882
        %v1900 = vunpack.c.l.b16 %v1883
        %v1901 = vpack.c.b16 %v1894, %v1893
        %v1902 = vpack.c.b16 %v1896, %v1895
        %v1903 = vpack.c.b16 %v1898, %v1897
        %v1904 = vpack.c.b16 %v1900, %v1899
        %v1910 = vsel %vm1530, %v1884, 0
        %1912 = vmatprep.subr.bf16.mxu0 0
        %1913 = vmatpush1.bf16.msra.mxu0 %v1901
        %1914 = vmatprep.subr.bf16.mxu0 0
        %1915 = vmatpush1.bf16.msra.mxu0 %v1902
        %1916 = vmatprep.subr.bf16.mxu0 0
        %1917 = vmatpush1.bf16.msra.mxu0 %v1903
        %1918 = vmatprep.subr.bf16.mxu0 0
        %1919 = vmatpush1.bf16.msra.mxu0 %v1904
        %1920 = vmatprep.subr.bf16.mxu0 0
        %1921 = vmatpush1.bf16.msra.mxu0 0
        %1922 = vmatprep.subr.bf16.mxu0 0
        %1923 = vmatpush1.bf16.msra.mxu0 0
        %1924 = vmatprep.subr.bf16.mxu0 0
        %1925 = vmatpush1.bf16.msra.mxu0 0
        %1926 = vmatprep.subr.bf16.mxu0 0
        %1927 = vmatpush1.bf16.msra.mxu0 0
        %1928 = vmatprep.subr.bf16.mxu0 0
        %1929 = vmatpush1.bf16.msra.mxu0 0
        %1930 = vmatprep.subr.bf16.mxu0 0
        %1931 = vmatpush1.bf16.msra.mxu0 0
        %1932 = vmatprep.subr.bf16.mxu0 0
        %1933 = vmatpush1.bf16.msra.mxu0 0
        %1934 = vmatprep.subr.bf16.mxu0 0
        %1935 = vmatpush1.bf16.msra.mxu0 0
        %1936 = vmatprep.subr.bf16.mxu0 0
        %1937 = vmatpush1.bf16.msra.mxu0 0
        %1938 = vmatprep.subr.bf16.mxu0 0
        %1939 = vmatpush1.bf16.msra.mxu0 0
        %1940 = vmatprep.subr.bf16.mxu0 0
        %1941 = vmatpush1.bf16.msra.mxu0 0
        %1942 = vmatprep.subr.bf16.mxu0 0
        %1943 = vmatpush1.bf16.msra.mxu0 0
        %1944 = vmatprep.mubr.bf16.mxu0 0
        %1945 = vmatmul.mubr.bf16.gmra.mrb[0].mxu0 %v1910
        %v1946 = vpop.f32.mrb[0].mxu0
        %v1947 = vadd.f32 0.0, %v1946
        %v1948 = vpop.f32.mrb[0].mxu0
        %v1949 = vpop.f32.mrb[0].mxu0
        %v1950 = vpop.f32.mrb[0].mxu0
        %1951 = vdwg.mxu0
        %v1952 = vadd.f32 %v1874, %v1947
        %s1953 = scalar_lea.vmem %s3, 192
        %v1954 = vld [vmem:[%s1953] sm:$0xf]
        %v1955 = vld [vmem:[%s1953 + $0x4] sm:$0xf]
        %v1956 = vld [vmem:[%s1953 + $0x8] sm:$0xf]
        %v1957 = vld [vmem:[%s1953 + $0xc] sm:$0xf]
        %v1958 = vld [vmem:[%s1953 + $0x10] sm:$0xf]
        %v1959 = vld [vmem:[%s1953 + $0x14] sm:$0xf]
        %v1960 = vld [vmem:[%s1953 + $0x18] sm:$0xf]
        %v1961 = vld [vmem:[%s1953 + $0x1c] sm:$0xf]
        %v1962 = vrot.slane %v1485, 3
        %v1971 = vunpack.c.l.b16 %v1954
        %v1972 = vunpack.c.l.b16 %v1955
        %v1973 = vunpack.c.l.b16 %v1956
        %v1974 = vunpack.c.l.b16 %v1957
        %v1975 = vunpack.c.l.b16 %v1958
        %v1976 = vunpack.c.l.b16 %v1959
        %v1977 = vunpack.c.l.b16 %v1960
        %v1978 = vunpack.c.l.b16 %v1961
        %v1979 = vpack.c.b16 %v1972, %v1971
        %v1980 = vpack.c.b16 %v1974, %v1973
        %v1981 = vpack.c.b16 %v1976, %v1975
        %v1982 = vpack.c.b16 %v1978, %v1977
        %v1988 = vsel %vm1530, %v1962, 0
        %1990 = vmatprep.subr.bf16.mxu0 0
        %1991 = vmatpush1.bf16.msra.mxu0 %v1979
        %1992 = vmatprep.subr.bf16.mxu0 0
        %1993 = vmatpush1.bf16.msra.mxu0 %v1980
        %1994 = vmatprep.subr.bf16.mxu0 0
        %1995 = vmatpush1.bf16.msra.mxu0 %v1981
        %1996 = vmatprep.subr.bf16.mxu0 0
        %1997 = vmatpush1.bf16.msra.mxu0 %v1982
        %1998 = vmatprep.subr.bf16.mxu0 0
        %1999 = vmatpush1.bf16.msra.mxu0 0
        %2000 = vmatprep.subr.bf16.mxu0 0
        %2001 = vmatpush1.bf16.msra.mxu0 0
        %2002 = vmatprep.subr.bf16.mxu0 0
        %2003 = vmatpush1.bf16.msra.mxu0 0
        %2004 = vmatprep.subr.bf16.mxu0 0
        %2005 = vmatpush1.bf16.msra.mxu0 0
        %2006 = vmatprep.subr.bf16.mxu0 0
        %2007 = vmatpush1.bf16.msra.mxu0 0
        %2008 = vmatprep.subr.bf16.mxu0 0
        %2009 = vmatpush1.bf16.msra.mxu0 0
        %2010 = vmatprep.subr.bf16.mxu0 0
        %2011 = vmatpush1.bf16.msra.mxu0 0
        %2012 = vmatprep.subr.bf16.mxu0 0
        %2013 = vmatpush1.bf16.msra.mxu0 0
        %2014 = vmatprep.subr.bf16.mxu0 0
        %2015 = vmatpush1.bf16.msra.mxu0 0
        %2016 = vmatprep.subr.bf16.mxu0 0
        %2017 = vmatpush1.bf16.msra.mxu0 0
        %2018 = vmatprep.subr.bf16.mxu0 0
        %2019 = vmatpush1.bf16.msra.mxu0 0
        %2020 = vmatprep.subr.bf16.mxu0 0
        %2021 = vmatpush1.bf16.msra.mxu0 0
        %2022 = vmatprep.mubr.bf16.mxu0 0
        %2023 = vmatmul.mubr.bf16.gmra.mrb[0].mxu0 %v1988
        %v2024 = vpop.f32.mrb[0].mxu0
        %v2025 = vadd.f32 0.0, %v2024
        %v2026 = vpop.f32.mrb[0].mxu0
        %v2027 = vpop.f32.mrb[0].mxu0
        %v2028 = vpop.f32.mrb[0].mxu0
        %2029 = vdwg.mxu0
        %v2030 = vadd.f32 %v1952, %v2025
        %s2031 = scalar_lea.vmem %s3, 224
        %v2032 = vld [vmem:[%s2031] sm:$0xf]
        %v2033 = vld [vmem:[%s2031 + $0x4] sm:$0xf]
        %v2034 = vld [vmem:[%s2031 + $0x8] sm:$0xf]
        %v2035 = vld [vmem:[%s2031 + $0xc] sm:$0xf]
        %v2036 = vld [vmem:[%s2031 + $0x10] sm:$0xf]
        %v2037 = vld [vmem:[%s2031 + $0x14] sm:$0xf]
        %v2038 = vld [vmem:[%s2031 + $0x18] sm:$0xf]
        %v2039 = vld [vmem:[%s2031 + $0x1c] sm:$0xf]
        %v2040 = vrot.slane %v1504, 3
        %v2049 = vunpack.c.l.b16 %v2032
        %v2050 = vunpack.c.l.b16 %v2033
        %v2051 = vunpack.c.l.b16 %v2034
        %v2052 = vunpack.c.l.b16 %v2035
        %v2053 = vunpack.c.l.b16 %v2036
        %v2054 = vunpack.c.l.b16 %v2037
        %v2055 = vunpack.c.l.b16 %v2038
        %v2056 = vunpack.c.l.b16 %v2039
        %v2057 = vpack.c.b16 %v2050, %v2049
        %v2058 = vpack.c.b16 %v2052, %v2051
        %v2059 = vpack.c.b16 %v2054, %v2053
        %v2060 = vpack.c.b16 %v2056, %v2055
        %v2066 = vsel %vm1530, %v2040, 0
        %2068 = vmatprep.subr.bf16.mxu0 0
        %2069 = vmatpush1.bf16.msra.mxu0 %v2057
        %2070 = vmatprep.subr.bf16.mxu0 0
        %2071 = vmatpush1.bf16.msra.mxu0 %v2058
        %2072 = vmatprep.subr.bf16.mxu0 0
        %2073 = vmatpush1.bf16.msra.mxu0 %v2059
        %2074 = vmatprep.subr.bf16.mxu0 0
        %2075 = vmatpush1.bf16.msra.mxu0 %v2060
        %2076 = vmatprep.subr.bf16.mxu0 0
        %2077 = vmatpush1.bf16.msra.mxu0 0
        %2078 = vmatprep.subr.bf16.mxu0 0
        %2079 = vmatpush1.bf16.msra.mxu0 0
        %2080 = vmatprep.subr.bf16.mxu0 0
        %2081 = vmatpush1.bf16.msra.mxu0 0
        %2082 = vmatprep.subr.bf16.mxu0 0
        %2083 = vmatpush1.bf16.msra.mxu0 0
        %2084 = vmatprep.subr.bf16.mxu0 0
        %2085 = vmatpush1.bf16.msra.mxu0 0
        %2086 = vmatprep.subr.bf16.mxu0 0
        %2087 = vmatpush1.bf16.msra.mxu0 0
        %2088 = vmatprep.subr.bf16.mxu0 0
        %2089 = vmatpush1.bf16.msra.mxu0 0
        %2090 = vmatprep.subr.bf16.mxu0 0
        %2091 = vmatpush1.bf16.msra.mxu0 0
        %2092 = vmatprep.subr.bf16.mxu0 0
        %2093 = vmatpush1.bf16.msra.mxu0 0
        %2094 = vmatprep.subr.bf16.mxu0 0
        %2095 = vmatpush1.bf16.msra.mxu0 0
        %2096 = vmatprep.subr.bf16.mxu0 0
        %2097 = vmatpush1.bf16.msra.mxu0 0
        %2098 = vmatprep.subr.bf16.mxu0 0
        %2099 = vmatpush1.bf16.msra.mxu0 0
        %2100 = vmatprep.mubr.bf16.mxu0 0
        %2101 = vmatmul.mubr.bf16.gmra.mrb[0].mxu0 %v2066
        %v2102 = vpop.f32.mrb[0].mxu0
        %v2103 = vadd.f32 0.0, %v2102
        %v2104 = vpop.f32.mrb[0].mxu0
        %v2105 = vpop.f32.mrb[0].mxu0
        %v2106 = vpop.f32.mrb[0].mxu0
        %2107 = vdwg.mxu0
        %v2108 = vadd.f32 %v2030, %v2103
        %s2109 = scalar_lea.vmem %s3, 256
        %v2110 = vld [vmem:[%s2109] sm:$0xf]
        %v2111 = vld [vmem:[%s2109 + $0x4] sm:$0xf]
        %v2112 = vld [vmem:[%s2109 + $0x8] sm:$0xf]
        %v2113 = vld [vmem:[%s2109 + $0xc] sm:$0xf]
        %v2114 = vld [vmem:[%s2109 + $0x10] sm:$0xf]
        %v2115 = vld [vmem:[%s2109 + $0x14] sm:$0xf]
        %v2116 = vld [vmem:[%s2109 + $0x18] sm:$0xf]
        %v2117 = vld [vmem:[%s2109 + $0x1c] sm:$0xf]
        %v2118 = vrot.slane %v1485, 4
        %v2127 = vunpack.c.l.b16 %v2110
        %v2128 = vunpack.c.l.b16 %v2111
        %v2129 = vunpack.c.l.b16 %v2112
        %v2130 = vunpack.c.l.b16 %v2113
        %v2131 = vunpack.c.l.b16 %v2114
        %v2132 = vunpack.c.l.b16 %v2115
        %v2133 = vunpack.c.l.b16 %v2116
        %v2134 = vunpack.c.l.b16 %v2117
        %v2135 = vpack.c.b16 %v2128, %v2127
        %v2136 = vpack.c.b16 %v2130, %v2129
        %v2137 = vpack.c.b16 %v2132, %v2131
        %v2138 = vpack.c.b16 %v2134, %v2133
        %v2144 = vsel %vm1530, %v2118, 0
        %2146 = vmatprep.subr.bf16.mxu0 0
        %2147 = vmatpush1.bf16.msra.mxu0 %v2135
        %2148 = vmatprep.subr.bf16.mxu0 0
        %2149 = vmatpush1.bf16.msra.mxu0 %v2136
        %2150 = vmatprep.subr.bf16.mxu0 0
        %2151 = vmatpush1.bf16.msra.mxu0 %v2137
        %2152 = vmatprep.subr.bf16.mxu0 0
        %2153 = vmatpush1.bf16.msra.mxu0 %v2138
        %2154 = vmatprep.subr.bf16.mxu0 0
        %2155 = vmatpush1.bf16.msra.mxu0 0
        %2156 = vmatprep.subr.bf16.mxu0 0
        %2157 = vmatpush1.bf16.msra.mxu0 0
        %2158 = vmatprep.subr.bf16.mxu0 0
        %2159 = vmatpush1.bf16.msra.mxu0 0
        %2160 = vmatprep.subr.bf16.mxu0 0
        %2161 = vmatpush1.bf16.msra.mxu0 0
        %2162 = vmatprep.subr.bf16.mxu0 0
        %2163 = vmatpush1.bf16.msra.mxu0 0
        %2164 = vmatprep.subr.bf16.mxu0 0
        %2165 = vmatpush1.bf16.msra.mxu0 0
        %2166 = vmatprep.subr.bf16.mxu0 0
        %2167 = vmatpush1.bf16.msra.mxu0 0
        %2168 = vmatprep.subr.bf16.mxu0 0
        %2169 = vmatpush1.bf16.msra.mxu0 0
        %2170 = vmatprep.subr.bf16.mxu0 0
        %2171 = vmatpush1.bf16.msra.mxu0 0
        %2172 = vmatprep.subr.bf16.mxu0 0
        %2173 = vmatpush1.bf16.msra.mxu0 0
        %2174 = vmatprep.subr.bf16.mxu0 0
        %2175 = vmatpush1.bf16.msra.mxu0 0
        %2176 = vmatprep.subr.bf16.mxu0 0
        %2177 = vmatpush1.bf16.msra.mxu0 0
        %2178 = vmatprep.mubr.bf16.mxu0 0
        %2179 = vmatmul.mubr.bf16.gmra.mrb[0].mxu0 %v2144
        %v2180 = vpop.f32.mrb[0].mxu0
        %v2181 = vadd.f32 0.0, %v2180
        %v2182 = vpop.f32.mrb[0].mxu0
        %v2183 = vpop.f32.mrb[0].mxu0
        %v2184 = vpop.f32.mrb[0].mxu0
        %2185 = vdwg.mxu0
        %v2186 = vadd.f32 %v2108, %v2181
        %s2187 = scalar_lea.vmem %s3, 288
        %v2188 = vld [vmem:[%s2187] sm:$0xf]
        %v2189 = vld [vmem:[%s2187 + $0x4] sm:$0xf]
        %v2190 = vld [vmem:[%s2187 + $0x8] sm:$0xf]
        %v2191 = vld [vmem:[%s2187 + $0xc] sm:$0xf]
        %v2192 = vld [vmem:[%s2187 + $0x10] sm:$0xf]
        %v2193 = vld [vmem:[%s2187 + $0x14] sm:$0xf]
        %v2194 = vld [vmem:[%s2187 + $0x18] sm:$0xf]
        %v2195 = vld [vmem:[%s2187 + $0x1c] sm:$0xf]
        %v2196 = vrot.slane %v1504, 4
        %v2205 = vunpack.c.l.b16 %v2188
        %v2206 = vunpack.c.l.b16 %v2189
        %v2207 = vunpack.c.l.b16 %v2190
        %v2208 = vunpack.c.l.b16 %v2191
        %v2209 = vunpack.c.l.b16 %v2192
        %v2210 = vunpack.c.l.b16 %v2193
        %v2211 = vunpack.c.l.b16 %v2194
        %v2212 = vunpack.c.l.b16 %v2195
        %v2213 = vpack.c.b16 %v2206, %v2205
        %v2214 = vpack.c.b16 %v2208, %v2207
        %v2215 = vpack.c.b16 %v2210, %v2209
        %v2216 = vpack.c.b16 %v2212, %v2211
        %v2222 = vsel %vm1530, %v2196, 0
        %2224 = vmatprep.subr.bf16.mxu0 0
        %2225 = vmatpush1.bf16.msra.mxu0 %v2213
        %2226 = vmatprep.subr.bf16.mxu0 0
        %2227 = vmatpush1.bf16.msra.mxu0 %v2214
        %2228 = vmatprep.subr.bf16.mxu0 0
        %2229 = vmatpush1.bf16.msra.mxu0 %v2215
        %2230 = vmatprep.subr.bf16.mxu0 0
        %2231 = vmatpush1.bf16.msra.mxu0 %v2216
        %2232 = vmatprep.subr.bf16.mxu0 0
        %2233 = vmatpush1.bf16.msra.mxu0 0
        %2234 = vmatprep.subr.bf16.mxu0 0
        %2235 = vmatpush1.bf16.msra.mxu0 0
        %2236 = vmatprep.subr.bf16.mxu0 0
        %2237 = vmatpush1.bf16.msra.mxu0 0
        %2238 = vmatprep.subr.bf16.mxu0 0
        %2239 = vmatpush1.bf16.msra.mxu0 0
        %2240 = vmatprep.subr.bf16.mxu0 0
        %2241 = vmatpush1.bf16.msra.mxu0 0
        %2242 = vmatprep.subr.bf16.mxu0 0
        %2243 = vmatpush1.bf16.msra.mxu0 0
        %2244 = vmatprep.subr.bf16.mxu0 0
        %2245 = vmatpush1.bf16.msra.mxu0 0
        %2246 = vmatprep.subr.bf16.mxu0 0
        %2247 = vmatpush1.bf16.msra.mxu0 0
        %2248 = vmatprep.subr.bf16.mxu0 0
        %2249 = vmatpush1.bf16.msra.mxu0 0
        %2250 = vmatprep.subr.bf16.mxu0 0
        %2251 = vmatpush1.bf16.msra.mxu0 0
        %2252 = vmatprep.subr.bf16.mxu0 0
        %2253 = vmatpush1.bf16.msra.mxu0 0
        %2254 = vmatprep.subr.bf16.mxu0 0
        %2255 = vmatpush1.bf16.msra.mxu0 0
        %2256 = vmatprep.mubr.bf16.mxu0 0
        %2257 = vmatmul.mubr.bf16.gmra.mrb[0].mxu0 %v2222
        %v2258 = vpop.f32.mrb[0].mxu0
        %v2259 = vadd.f32 0.0, %v2258
        %v2260 = vpop.f32.mrb[0].mxu0
        %v2261 = vpop.f32.mrb[0].mxu0
        %v2262 = vpop.f32.mrb[0].mxu0
        %2263 = vdwg.mxu0
        %v2264 = vadd.f32 %v2186, %v2259
        %s2265 = scalar_lea.vmem %s3, 320
        %v2266 = vld [vmem:[%s2265] sm:$0xf]
        %v2267 = vld [vmem:[%s2265 + $0x4] sm:$0xf]
        %v2268 = vld [vmem:[%s2265 + $0x8] sm:$0xf]
        %v2269 = vld [vmem:[%s2265 + $0xc] sm:$0xf]
        %v2270 = vld [vmem:[%s2265 + $0x10] sm:$0xf]
        %v2271 = vld [vmem:[%s2265 + $0x14] sm:$0xf]
        %v2272 = vld [vmem:[%s2265 + $0x18] sm:$0xf]
        %v2273 = vld [vmem:[%s2265 + $0x1c] sm:$0xf]
        %v2274 = vrot.slane %v1485, 5
        %v2283 = vunpack.c.l.b16 %v2266
        %v2284 = vunpack.c.l.b16 %v2267
        %v2285 = vunpack.c.l.b16 %v2268
        %v2286 = vunpack.c.l.b16 %v2269
        %v2287 = vunpack.c.l.b16 %v2270
        %v2288 = vunpack.c.l.b16 %v2271
        %v2289 = vunpack.c.l.b16 %v2272
        %v2290 = vunpack.c.l.b16 %v2273
        %v2291 = vpack.c.b16 %v2284, %v2283
        %v2292 = vpack.c.b16 %v2286, %v2285
        %v2293 = vpack.c.b16 %v2288, %v2287
        %v2294 = vpack.c.b16 %v2290, %v2289
        %v2300 = vsel %vm1530, %v2274, 0
        %2302 = vmatprep.subr.bf16.mxu0 0
        %2303 = vmatpush1.bf16.msra.mxu0 %v2291
        %2304 = vmatprep.subr.bf16.mxu0 0
        %2305 = vmatpush1.bf16.msra.mxu0 %v2292
        %2306 = vmatprep.subr.bf16.mxu0 0
        %2307 = vmatpush1.bf16.msra.mxu0 %v2293
        %2308 = vmatprep.subr.bf16.mxu0 0
        %2309 = vmatpush1.bf16.msra.mxu0 %v2294
        %2310 = vmatprep.subr.bf16.mxu0 0
        %2311 = vmatpush1.bf16.msra.mxu0 0
        %2312 = vmatprep.subr.bf16.mxu0 0
        %2313 = vmatpush1.bf16.msra.mxu0 0
        %2314 = vmatprep.subr.bf16.mxu0 0
        %2315 = vmatpush1.bf16.msra.mxu0 0
        %2316 = vmatprep.subr.bf16.mxu0 0
        %2317 = vmatpush1.bf16.msra.mxu0 0
        %2318 = vmatprep.subr.bf16.mxu0 0
        %2319 = vmatpush1.bf16.msra.mxu0 0
        %2320 = vmatprep.subr.bf16.mxu0 0
        %2321 = vmatpush1.bf16.msra.mxu0 0
        %2322 = vmatprep.subr.bf16.mxu0 0
        %2323 = vmatpush1.bf16.msra.mxu0 0
        %2324 = vmatprep.subr.bf16.mxu0 0
        %2325 = vmatpush1.bf16.msra.mxu0 0
        %2326 = vmatprep.subr.bf16.mxu0 0
        %2327 = vmatpush1.bf16.msra.mxu0 0
        %2328 = vmatprep.subr.bf16.mxu0 0
        %2329 = vmatpush1.bf16.msra.mxu0 0
        %2330 = vmatprep.subr.bf16.mxu0 0
        %2331 = vmatpush1.bf16.msra.mxu0 0
        %2332 = vmatprep.subr.bf16.mxu0 0
        %2333 = vmatpush1.bf16.msra.mxu0 0
        %2334 = vmatprep.mubr.bf16.mxu0 0
        %2335 = vmatmul.mubr.bf16.gmra.mrb[0].mxu0 %v2300
        %v2336 = vpop.f32.mrb[0].mxu0
        %v2337 = vadd.f32 0.0, %v2336
        %v2338 = vpop.f32.mrb[0].mxu0
        %v2339 = vpop.f32.mrb[0].mxu0
        %v2340 = vpop.f32.mrb[0].mxu0
        %2341 = vdwg.mxu0
        %v2342 = vadd.f32 %v2264, %v2337
        %s2343 = scalar_lea.vmem %s3, 352
        %v2344 = vld [vmem:[%s2343] sm:$0xf]
        %v2345 = vld [vmem:[%s2343 + $0x4] sm:$0xf]
        %v2346 = vld [vmem:[%s2343 + $0x8] sm:$0xf]
        %v2347 = vld [vmem:[%s2343 + $0xc] sm:$0xf]
        %v2348 = vld [vmem:[%s2343 + $0x10] sm:$0xf]
        %v2349 = vld [vmem:[%s2343 + $0x14] sm:$0xf]
        %v2350 = vld [vmem:[%s2343 + $0x18] sm:$0xf]
        %v2351 = vld [vmem:[%s2343 + $0x1c] sm:$0xf]
        %v2352 = vrot.slane %v1504, 5
        %v2361 = vunpack.c.l.b16 %v2344
        %v2362 = vunpack.c.l.b16 %v2345
        %v2363 = vunpack.c.l.b16 %v2346
        %v2364 = vunpack.c.l.b16 %v2347
        %v2365 = vunpack.c.l.b16 %v2348
        %v2366 = vunpack.c.l.b16 %v2349
        %v2367 = vunpack.c.l.b16 %v2350
        %v2368 = vunpack.c.l.b16 %v2351
        %v2369 = vpack.c.b16 %v2362, %v2361
        %v2370 = vpack.c.b16 %v2364, %v2363
        %v2371 = vpack.c.b16 %v2366, %v2365
        %v2372 = vpack.c.b16 %v2368, %v2367
        %v2378 = vsel %vm1530, %v2352, 0
        %2380 = vmatprep.subr.bf16.mxu0 0
        %2381 = vmatpush1.bf16.msra.mxu0 %v2369
        %2382 = vmatprep.subr.bf16.mxu0 0
        %2383 = vmatpush1.bf16.msra.mxu0 %v2370
        %2384 = vmatprep.subr.bf16.mxu0 0
        %2385 = vmatpush1.bf16.msra.mxu0 %v2371
        %2386 = vmatprep.subr.bf16.mxu0 0
        %2387 = vmatpush1.bf16.msra.mxu0 %v2372
        %2388 = vmatprep.subr.bf16.mxu0 0
        %2389 = vmatpush1.bf16.msra.mxu0 0
        %2390 = vmatprep.subr.bf16.mxu0 0
        %2391 = vmatpush1.bf16.msra.mxu0 0
        %2392 = vmatprep.subr.bf16.mxu0 0
        %2393 = vmatpush1.bf16.msra.mxu0 0
        %2394 = vmatprep.subr.bf16.mxu0 0
        %2395 = vmatpush1.bf16.msra.mxu0 0
        %2396 = vmatprep.subr.bf16.mxu0 0
        %2397 = vmatpush1.bf16.msra.mxu0 0
        %2398 = vmatprep.subr.bf16.mxu0 0
        %2399 = vmatpush1.bf16.msra.mxu0 0
        %2400 = vmatprep.subr.bf16.mxu0 0
        %2401 = vmatpush1.bf16.msra.mxu0 0
        %2402 = vmatprep.subr.bf16.mxu0 0
        %2403 = vmatpush1.bf16.msra.mxu0 0
        %2404 = vmatprep.subr.bf16.mxu0 0
        %2405 = vmatpush1.bf16.msra.mxu0 0
        %2406 = vmatprep.subr.bf16.mxu0 0
        %2407 = vmatpush1.bf16.msra.mxu0 0
        %2408 = vmatprep.subr.bf16.mxu0 0
        %2409 = vmatpush1.bf16.msra.mxu0 0
        %2410 = vmatprep.subr.bf16.mxu0 0
        %2411 = vmatpush1.bf16.msra.mxu0 0
        %2412 = vmatprep.mubr.bf16.mxu0 0
        %2413 = vmatmul.mubr.bf16.gmra.mrb[0].mxu0 %v2378
        %v2414 = vpop.f32.mrb[0].mxu0
        %v2415 = vadd.f32 0.0, %v2414
        %v2416 = vpop.f32.mrb[0].mxu0
        %v2417 = vpop.f32.mrb[0].mxu0
        %v2418 = vpop.f32.mrb[0].mxu0
        %2419 = vdwg.mxu0
        %v2420 = vadd.f32 %v2342, %v2415
        %s2421 = scalar_lea.vmem %s3, 384
        %v2422 = vld [vmem:[%s2421] sm:$0xf]
        %v2423 = vld [vmem:[%s2421 + $0x4] sm:$0xf]
        %v2424 = vld [vmem:[%s2421 + $0x8] sm:$0xf]
        %v2425 = vld [vmem:[%s2421 + $0xc] sm:$0xf]
        %v2426 = vld [vmem:[%s2421 + $0x10] sm:$0xf]
        %v2427 = vld [vmem:[%s2421 + $0x14] sm:$0xf]
        %v2428 = vld [vmem:[%s2421 + $0x18] sm:$0xf]
        %v2429 = vld [vmem:[%s2421 + $0x1c] sm:$0xf]
        %v2430 = vrot.slane %v1485, 6
        %v2439 = vunpack.c.l.b16 %v2422
        %v2440 = vunpack.c.l.b16 %v2423
        %v2441 = vunpack.c.l.b16 %v2424
        %v2442 = vunpack.c.l.b16 %v2425
        %v2443 = vunpack.c.l.b16 %v2426
        %v2444 = vunpack.c.l.b16 %v2427
        %v2445 = vunpack.c.l.b16 %v2428
        %v2446 = vunpack.c.l.b16 %v2429
        %v2447 = vpack.c.b16 %v2440, %v2439
        %v2448 = vpack.c.b16 %v2442, %v2441
        %v2449 = vpack.c.b16 %v2444, %v2443
        %v2450 = vpack.c.b16 %v2446, %v2445
        %v2456 = vsel %vm1530, %v2430, 0
        %2458 = vmatprep.subr.bf16.mxu0 0
        %2459 = vmatpush1.bf16.msra.mxu0 %v2447
        %2460 = vmatprep.subr.bf16.mxu0 0
        %2461 = vmatpush1.bf16.msra.mxu0 %v2448
        %2462 = vmatprep.subr.bf16.mxu0 0
        %2463 = vmatpush1.bf16.msra.mxu0 %v2449
        %2464 = vmatprep.subr.bf16.mxu0 0
        %2465 = vmatpush1.bf16.msra.mxu0 %v2450
        %2466 = vmatprep.subr.bf16.mxu0 0
        %2467 = vmatpush1.bf16.msra.mxu0 0
        %2468 = vmatprep.subr.bf16.mxu0 0
        %2469 = vmatpush1.bf16.msra.mxu0 0
        %2470 = vmatprep.subr.bf16.mxu0 0
        %2471 = vmatpush1.bf16.msra.mxu0 0
        %2472 = vmatprep.subr.bf16.mxu0 0
        %2473 = vmatpush1.bf16.msra.mxu0 0
        %2474 = vmatprep.subr.bf16.mxu0 0
        %2475 = vmatpush1.bf16.msra.mxu0 0
        %2476 = vmatprep.subr.bf16.mxu0 0
        %2477 = vmatpush1.bf16.msra.mxu0 0
        %2478 = vmatprep.subr.bf16.mxu0 0
        %2479 = vmatpush1.bf16.msra.mxu0 0
        %2480 = vmatprep.subr.bf16.mxu0 0
        %2481 = vmatpush1.bf16.msra.mxu0 0
        %2482 = vmatprep.subr.bf16.mxu0 0
        %2483 = vmatpush1.bf16.msra.mxu0 0
        %2484 = vmatprep.subr.bf16.mxu0 0
        %2485 = vmatpush1.bf16.msra.mxu0 0
        %2486 = vmatprep.subr.bf16.mxu0 0
        %2487 = vmatpush1.bf16.msra.mxu0 0
        %2488 = vmatprep.subr.bf16.mxu0 0
        %2489 = vmatpush1.bf16.msra.mxu0 0
        %2490 = vmatprep.mubr.bf16.mxu0 0
        %2491 = vmatmul.mubr.bf16.gmra.mrb[0].mxu0 %v2456
        %v2492 = vpop.f32.mrb[0].mxu0
        %v2493 = vadd.f32 0.0, %v2492
        %v2494 = vpop.f32.mrb[0].mxu0
        %v2495 = vpop.f32.mrb[0].mxu0
        %v2496 = vpop.f32.mrb[0].mxu0
        %2497 = vdwg.mxu0
        %v2498 = vadd.f32 %v2420, %v2493
        %s2499 = scalar_lea.vmem %s3, 416
        %v2500 = vld [vmem:[%s2499] sm:$0xf]
        %v2501 = vld [vmem:[%s2499 + $0x4] sm:$0xf]
        %v2502 = vld [vmem:[%s2499 + $0x8] sm:$0xf]
        %v2503 = vld [vmem:[%s2499 + $0xc] sm:$0xf]
        %v2504 = vld [vmem:[%s2499 + $0x10] sm:$0xf]
        %v2505 = vld [vmem:[%s2499 + $0x14] sm:$0xf]
        %v2506 = vld [vmem:[%s2499 + $0x18] sm:$0xf]
        %v2507 = vld [vmem:[%s2499 + $0x1c] sm:$0xf]
        %v2508 = vrot.slane %v1504, 6
        %v2517 = vunpack.c.l.b16 %v2500
        %v2518 = vunpack.c.l.b16 %v2501
        %v2519 = vunpack.c.l.b16 %v2502
        %v2520 = vunpack.c.l.b16 %v2503
        %v2521 = vunpack.c.l.b16 %v2504
        %v2522 = vunpack.c.l.b16 %v2505
        %v2523 = vunpack.c.l.b16 %v2506
        %v2524 = vunpack.c.l.b16 %v2507
        %v2525 = vpack.c.b16 %v2518, %v2517
        %v2526 = vpack.c.b16 %v2520, %v2519
        %v2527 = vpack.c.b16 %v2522, %v2521
        %v2528 = vpack.c.b16 %v2524, %v2523
        %v2534 = vsel %vm1530, %v2508, 0
        %2536 = vmatprep.subr.bf16.mxu0 0
        %2537 = vmatpush1.bf16.msra.mxu0 %v2525
        %2538 = vmatprep.subr.bf16.mxu0 0
        %2539 = vmatpush1.bf16.msra.mxu0 %v2526
        %2540 = vmatprep.subr.bf16.mxu0 0
        %2541 = vmatpush1.bf16.msra.mxu0 %v2527
        %2542 = vmatprep.subr.bf16.mxu0 0
        %2543 = vmatpush1.bf16.msra.mxu0 %v2528
        %2544 = vmatprep.subr.bf16.mxu0 0
        %2545 = vmatpush1.bf16.msra.mxu0 0
        %2546 = vmatprep.subr.bf16.mxu0 0
        %2547 = vmatpush1.bf16.msra.mxu0 0
        %2548 = vmatprep.subr.bf16.mxu0 0
        %2549 = vmatpush1.bf16.msra.mxu0 0
        %2550 = vmatprep.subr.bf16.mxu0 0
        %2551 = vmatpush1.bf16.msra.mxu0 0
        %2552 = vmatprep.subr.bf16.mxu0 0
        %2553 = vmatpush1.bf16.msra.mxu0 0
        %2554 = vmatprep.subr.bf16.mxu0 0
        %2555 = vmatpush1.bf16.msra.mxu0 0
        %2556 = vmatprep.subr.bf16.mxu0 0
        %2557 = vmatpush1.bf16.msra.mxu0 0
        %2558 = vmatprep.subr.bf16.mxu0 0
        %2559 = vmatpush1.bf16.msra.mxu0 0
        %2560 = vmatprep.subr.bf16.mxu0 0
        %2561 = vmatpush1.bf16.msra.mxu0 0
        %2562 = vmatprep.subr.bf16.mxu0 0
        %2563 = vmatpush1.bf16.msra.mxu0 0
        %2564 = vmatprep.subr.bf16.mxu0 0
        %2565 = vmatpush1.bf16.msra.mxu0 0
        %2566 = vmatprep.subr.bf16.mxu0 0
        %2567 = vmatpush1.bf16.msra.mxu0 0
        %2568 = vmatprep.mubr.bf16.mxu0 0
        %2569 = vmatmul.mubr.bf16.gmra.mrb[0].mxu0 %v2534
        %v2570 = vpop.f32.mrb[0].mxu0
        %v2571 = vadd.f32 0.0, %v2570
        %v2572 = vpop.f32.mrb[0].mxu0
        %v2573 = vpop.f32.mrb[0].mxu0
        %v2574 = vpop.f32.mrb[0].mxu0
        %2575 = vdwg.mxu0
        %v2576 = vadd.f32 %v2498, %v2571
        %s2577 = scalar_lea.vmem %s3, 448
        %v2578 = vld [vmem:[%s2577] sm:$0xf]
        %v2579 = vld [vmem:[%s2577 + $0x4] sm:$0xf]
        %v2580 = vld [vmem:[%s2577 + $0x8] sm:$0xf]
        %v2581 = vld [vmem:[%s2577 + $0xc] sm:$0xf]
        %v2582 = vld [vmem:[%s2577 + $0x10] sm:$0xf]
        %v2583 = vld [vmem:[%s2577 + $0x14] sm:$0xf]
        %v2584 = vld [vmem:[%s2577 + $0x18] sm:$0xf]
        %v2585 = vld [vmem:[%s2577 + $0x1c] sm:$0xf]
        %v2586 = vrot.slane %v1485, 7
        %v2595 = vunpack.c.l.b16 %v2578
        %v2596 = vunpack.c.l.b16 %v2579
        %v2597 = vunpack.c.l.b16 %v2580
        %v2598 = vunpack.c.l.b16 %v2581
        %v2599 = vunpack.c.l.b16 %v2582
        %v2600 = vunpack.c.l.b16 %v2583
        %v2601 = vunpack.c.l.b16 %v2584
        %v2602 = vunpack.c.l.b16 %v2585
        %v2603 = vpack.c.b16 %v2596, %v2595
        %v2604 = vpack.c.b16 %v2598, %v2597
        %v2605 = vpack.c.b16 %v2600, %v2599
        %v2606 = vpack.c.b16 %v2602, %v2601
        %v2612 = vsel %vm1530, %v2586, 0
        %2614 = vmatprep.subr.bf16.mxu0 0
        %2615 = vmatpush1.bf16.msra.mxu0 %v2603
        %2616 = vmatprep.subr.bf16.mxu0 0
        %2617 = vmatpush1.bf16.msra.mxu0 %v2604
        %2618 = vmatprep.subr.bf16.mxu0 0
        %2619 = vmatpush1.bf16.msra.mxu0 %v2605
        %2620 = vmatprep.subr.bf16.mxu0 0
        %2621 = vmatpush1.bf16.msra.mxu0 %v2606
        %2622 = vmatprep.subr.bf16.mxu0 0
        %2623 = vmatpush1.bf16.msra.mxu0 0
        %2624 = vmatprep.subr.bf16.mxu0 0
        %2625 = vmatpush1.bf16.msra.mxu0 0
        %2626 = vmatprep.subr.bf16.mxu0 0
        %2627 = vmatpush1.bf16.msra.mxu0 0
        %2628 = vmatprep.subr.bf16.mxu0 0
        %2629 = vmatpush1.bf16.msra.mxu0 0
        %2630 = vmatprep.subr.bf16.mxu0 0
        %2631 = vmatpush1.bf16.msra.mxu0 0
        %2632 = vmatprep.subr.bf16.mxu0 0
        %2633 = vmatpush1.bf16.msra.mxu0 0
        %2634 = vmatprep.subr.bf16.mxu0 0
        %2635 = vmatpush1.bf16.msra.mxu0 0
        %2636 = vmatprep.subr.bf16.mxu0 0
        %2637 = vmatpush1.bf16.msra.mxu0 0
        %2638 = vmatprep.subr.bf16.mxu0 0
        %2639 = vmatpush1.bf16.msra.mxu0 0
        %2640 = vmatprep.subr.bf16.mxu0 0
        %2641 = vmatpush1.bf16.msra.mxu0 0
        %2642 = vmatprep.subr.bf16.mxu0 0
        %2643 = vmatpush1.bf16.msra.mxu0 0
        %2644 = vmatprep.subr.bf16.mxu0 0
        %2645 = vmatpush1.bf16.msra.mxu0 0
        %2646 = vmatprep.mubr.bf16.mxu0 0
        %2647 = vmatmul.mubr.bf16.gmra.mrb[0].mxu0 %v2612
        %v2648 = vpop.f32.mrb[0].mxu0
        %v2649 = vadd.f32 0.0, %v2648
        %v2650 = vpop.f32.mrb[0].mxu0
        %v2651 = vpop.f32.mrb[0].mxu0
        %v2652 = vpop.f32.mrb[0].mxu0
        %2653 = vdwg.mxu0
        %v2654 = vadd.f32 %v2576, %v2649
        %s2655 = scalar_lea.vmem %s3, 480
        %v2656 = vld [vmem:[%s2655] sm:$0xf]
        %v2657 = vld [vmem:[%s2655 + $0x4] sm:$0xf]
        %v2658 = vld [vmem:[%s2655 + $0x8] sm:$0xf]
        %v2659 = vld [vmem:[%s2655 + $0xc] sm:$0xf]
        %v2660 = vld [vmem:[%s2655 + $0x10] sm:$0xf]
        %v2661 = vld [vmem:[%s2655 + $0x14] sm:$0xf]
        %v2662 = vld [vmem:[%s2655 + $0x18] sm:$0xf]
        %v2663 = vld [vmem:[%s2655 + $0x1c] sm:$0xf]
        %v2664 = vrot.slane %v1504, 7
        %v2673 = vunpack.c.l.b16 %v2656
        %v2674 = vunpack.c.l.b16 %v2657
        %v2675 = vunpack.c.l.b16 %v2658
        %v2676 = vunpack.c.l.b16 %v2659
        %v2677 = vunpack.c.l.b16 %v2660
        %v2678 = vunpack.c.l.b16 %v2661
        %v2679 = vunpack.c.l.b16 %v2662
        %v2680 = vunpack.c.l.b16 %v2663
        %v2681 = vpack.c.b16 %v2674, %v2673
        %v2682 = vpack.c.b16 %v2676, %v2675
        %v2683 = vpack.c.b16 %v2678, %v2677
        %v2684 = vpack.c.b16 %v2680, %v2679
        %v2690 = vsel %vm1530, %v2664, 0
        %2692 = vmatprep.subr.bf16.mxu0 0
        %2693 = vmatpush1.bf16.msra.mxu0 %v2681
        %2694 = vmatprep.subr.bf16.mxu0 0
        %2695 = vmatpush1.bf16.msra.mxu0 %v2682
        %2696 = vmatprep.subr.bf16.mxu0 0
        %2697 = vmatpush1.bf16.msra.mxu0 %v2683
        %2698 = vmatprep.subr.bf16.mxu0 0
        %2699 = vmatpush1.bf16.msra.mxu0 %v2684
        %2700 = vmatprep.subr.bf16.mxu0 0
        %2701 = vmatpush1.bf16.msra.mxu0 0
        %2702 = vmatprep.subr.bf16.mxu0 0
        %2703 = vmatpush1.bf16.msra.mxu0 0
        %2704 = vmatprep.subr.bf16.mxu0 0
        %2705 = vmatpush1.bf16.msra.mxu0 0
        %2706 = vmatprep.subr.bf16.mxu0 0
        %2707 = vmatpush1.bf16.msra.mxu0 0
        %2708 = vmatprep.subr.bf16.mxu0 0
        %2709 = vmatpush1.bf16.msra.mxu0 0
        %2710 = vmatprep.subr.bf16.mxu0 0
        %2711 = vmatpush1.bf16.msra.mxu0 0
        %2712 = vmatprep.subr.bf16.mxu0 0
        %2713 = vmatpush1.bf16.msra.mxu0 0
        %2714 = vmatprep.subr.bf16.mxu0 0
        %2715 = vmatpush1.bf16.msra.mxu0 0
        %2716 = vmatprep.subr.bf16.mxu0 0
        %2717 = vmatpush1.bf16.msra.mxu0 0
        %2718 = vmatprep.subr.bf16.mxu0 0
        %2719 = vmatpush1.bf16.msra.mxu0 0
        %2720 = vmatprep.subr.bf16.mxu0 0
        %2721 = vmatpush1.bf16.msra.mxu0 0
        %2722 = vmatprep.subr.bf16.mxu0 0
        %2723 = vmatpush1.bf16.msra.mxu0 0
        %2724 = vmatprep.mubr.bf16.mxu0 0
        %2725 = vmatmul.mubr.bf16.gmra.mrb[0].mxu0 %v2690
        %v2726 = vpop.f32.mrb[0].mxu0
        %v2727 = vadd.f32 0.0, %v2726
        %v2728 = vpop.f32.mrb[0].mxu0
        %v2729 = vpop.f32.mrb[0].mxu0
        %v2730 = vpop.f32.mrb[0].mxu0
        %2731 = vdwg.mxu0
        %v2732 = vadd.f32 %v2654, %v2727
        %v2733 = vld [vmem:[%s4] sm:$0x1]
        %v2734 = vadd.f32 %v2732, %v2733
        %v2735 = vmax.f32 %v2734, 0.0
        %v2736 = vpack.c.bf16 %v2735, %v2735
        %v2737 = vld [vmem:[%s5] sm:$0xf]
        %v2738 = vld [vmem:[%s5 + $0x4] sm:$0xf]
        %v2739 = vld [vmem:[%s5 + $0x8] sm:$0xf]
        %v2740 = vld [vmem:[%s5 + $0xc] sm:$0xf]
        %v2741 = vld [vmem:[%s5 + $0x10] sm:$0xf]
        %v2742 = vld [vmem:[%s5 + $0x14] sm:$0xf]
        %v2743 = vld [vmem:[%s5 + $0x18] sm:$0xf]
        %v2744 = vld [vmem:[%s5 + $0x1c] sm:$0xf]
        %v2745 = vld [vmem:[%s6] sm:$0x1]
        %v2754 = vunpack.c.l.b16 %v2737
        %v2755 = vunpack.c.l.b16 %v2738
        %v2756 = vunpack.c.l.b16 %v2739
        %v2757 = vunpack.c.l.b16 %v2740
        %v2758 = vunpack.c.l.b16 %v2741
        %v2759 = vunpack.c.l.b16 %v2742
        %v2760 = vunpack.c.l.b16 %v2743
        %v2761 = vunpack.c.l.b16 %v2744
        %v2762 = vpack.c.b16 %v2755, %v2754
        %v2763 = vpack.c.b16 %v2757, %v2756
        %v2764 = vpack.c.b16 %v2759, %v2758
        %v2765 = vpack.c.b16 %v2761, %v2760
        %v2771 = vsel %vm1530, %v2736, 0
        %2773 = vmatprep.subr.bf16.mxu0 0
        %2774 = vmatpush1.bf16.msra.mxu0 %v2762
        %2775 = vmatprep.subr.bf16.mxu0 0
        %2776 = vmatpush1.bf16.msra.mxu0 %v2763
        %2777 = vmatprep.subr.bf16.mxu0 0
        %2778 = vmatpush1.bf16.msra.mxu0 %v2764
        %2779 = vmatprep.subr.bf16.mxu0 0
        %2780 = vmatpush1.bf16.msra.mxu0 %v2765
        %2781 = vmatprep.subr.bf16.mxu0 0
        %2782 = vmatpush1.bf16.msra.mxu0 0
        %2783 = vmatprep.subr.bf16.mxu0 0
        %2784 = vmatpush1.bf16.msra.mxu0 0
        %2785 = vmatprep.subr.bf16.mxu0 0
        %2786 = vmatpush1.bf16.msra.mxu0 0
        %2787 = vmatprep.subr.bf16.mxu0 0
        %2788 = vmatpush1.bf16.msra.mxu0 0
        %2789 = vmatprep.subr.bf16.mxu0 0
        %2790 = vmatpush1.bf16.msra.mxu0 0
        %2791 = vmatprep.subr.bf16.mxu0 0
        %2792 = vmatpush1.bf16.msra.mxu0 0
        %2793 = vmatprep.subr.bf16.mxu0 0
        %2794 = vmatpush1.bf16.msra.mxu0 0
        %2795 = vmatprep.subr.bf16.mxu0 0
        %2796 = vmatpush1.bf16.msra.mxu0 0
        %2797 = vmatprep.subr.bf16.mxu0 0
        %2798 = vmatpush1.bf16.msra.mxu0 0
        %2799 = vmatprep.subr.bf16.mxu0 0
        %2800 = vmatpush1.bf16.msra.mxu0 0
        %2801 = vmatprep.subr.bf16.mxu0 0
        %2802 = vmatpush1.bf16.msra.mxu0 0
        %2803 = vmatprep.subr.bf16.mxu0 0
        %2804 = vmatpush1.bf16.msra.mxu0 0
        %2805 = vmatprep.mubr.bf16.mxu0 0
        %2806 = vmatmul.mubr.bf16.gmra.mrb[0].mxu0 %v2771
        %v2807 = vpop.f32.mrb[0].mxu0
        %v2808 = vadd.f32 %v2745, %v2807
        %v2809 = vpop.f32.mrb[0].mxu0
        %v2810 = vpop.f32.mrb[0].mxu0
        %v2811 = vpop.f32.mrb[0].mxu0
        %2812 = vdwg.mxu0
        %2813 = vst [vmem:[%s270] sm:$0x1] %v2808
        %s2814 = sand.u32 %s181, 1
        %s2815 = scalar_lea.sflag [#allocation3], %s2814
        %s2816 = sand.u32 %s181, 1
        %s2817 = scalar_lea.vmem [#allocation2], %s2816
        // Predicated region
        $region49: #{cnn_forward.5} parent=47 // pred_check
          %p2818 = pneg %p191
        $region50: #{cnn_forward.5} parent=47 // pred_check_branch
          %2820 = sbr.rel (%p2818) target = $region52
        $region51: #{cnn_forward.5} parent=47 // pred_region
          %s2822 = ssub.s32 16, 16
          %2823 = vsyncadd %s2815, %s2822
          %s2824 = smul.addr %s21, 16
          %s2825 = scalar_lea.hbm %s7, %s2824
          %s2827 = sshll.u32 %s2817, 4
          %s2828 = int_to_ptr.vmem [resolvable:$true] %s2827
          %2830 = dma.vmem_to_hbm [thread:$0]  %s2828, 16, %s2825, %s2815
        $region52: #{cnn_forward.5} parent=47 // pred_fallthru
          _
      $region48: #{cnn_forward.5} parent=5 // pred_fallthru
        _
      %p2831 = scmp.le.s32.totalorder 2, %s16
      // Predicated region
      $region53: #{cnn_forward.5} parent=5 // pred_check
        %p2832 = pneg %p2831
      $region54: #{cnn_forward.5} parent=5 // pred_check_branch
        %2834 = sbr.rel (%p2832) target = $region56
      $region55: #{cnn_forward.5} parent=5 // pred_region
        %s2835 = ssub.s32 %s16, 2
        // Predicated region
        $region57: #{cnn_forward.5} parent=55 // pred_check
          %p2836 = pneg %p197
        $region58: #{cnn_forward.5} parent=55 // pred_check_branch
          %2838 = sbr.rel (%p2836) target = $region60
        $region59: #{cnn_forward.5} parent=55 // pred_region
          %s2839 = sand.u32 %s182, 1
          %s2840 = scalar_lea.sflag [#allocation3], %s2839
          %s2841 = sand.u32 %s182, 1
          %s2842 = scalar_lea.vmem [#allocation2], %s2841
          %2843 = dma.done %s2840, 16
        $region60: #{cnn_forward.5} parent=55 // pred_fallthru
          _
      $region56: #{cnn_forward.5} parent=5 // pred_fallthru
        _
    $region6: #{cnn_forward.5} parent=1 // loop_footer
      %s20 = sadd.s32 1, %s16
    $region7: #{cnn_forward.5} parent=1 // loop_footer_branch
      %15 = sbr.rel target = $region3
    $region8: #{cnn_forward.5} parent=1 // loop_exit
      _
    %2844 = vsyncpa [#allocation3], 1
    %s2845 = scalar_lea.sflag [#allocation3], 1
    %2846 = vsyncpa %s2845, 1

</llo_original>
